<compile_context>
chip_gen: v5e
topology: v5e:2x2
jax: 0.10.0
libtpu: 0.0.40
codegen_flags: <defaults>
</compile_context>

<pallas_src>
import functools

import jax
import jax.numpy as jnp
from jax import lax
from jax.experimental import pallas as pl
from jax.experimental.pallas import tpu as pltpu


# ------------------------------ helpers -------------------------------------

def _round_up(x, m):
    return (x + m - 1) // m * m


def _pad_gate_cols(w, h, hp):
    """Zero-pad each of the 4 LSTM gate column-blocks from width h to hp."""
    parts = jnp.split(w, 4, axis=-1)
    widths = [(0, 0)] * (w.ndim - 1) + [(0, hp - h)]
    return jnp.concatenate([jnp.pad(p, widths) for p in parts], axis=-1)


# ------------------------------ fused kernel --------------------------------

def seq2seq_fused_kernel(x_enc_ref, x_dec_ref, w_true_ref, b_true_ref, row_w_ref,
                         enc_wih_ref, enc_whh_ref, enc_b_ref,
                         dec_wih_ref, dec_whh_ref, dec_b_ref,
                         wcls_ref, bcls_ref,
                         loss_ref,
                         gx_enc_scr, gx_dec_scr, hs_scr,
                         *, S, T, Bp, Hp):
    # ---- 1) hoisted, time-parallel input projections (bf16 MXU, f32 acc) ----
    gx_enc_scr[...] = (jnp.dot(x_enc_ref[...], enc_wih_ref[...],
                               preferred_element_type=jnp.float32)
                       + enc_b_ref[...])                          # (S*Bp, 4Hp) f32
    gx_dec_scr[...] = (jnp.dot(x_dec_ref[...], dec_wih_ref[...],
                               preferred_element_type=jnp.float32)
                       + dec_b_ref[...])                          # (T*Bp, 4Hp) f32

    enc_whh = enc_whh_ref[...]                                    # (Hp, 4Hp) bf16
    dec_whh = dec_whh_ref[...]                                    # (Hp, 4Hp) bf16

    def gates_to_hc(gates, c):
        # PyTorch nn.LSTM gate order (i, f, g, o); each gate is a lane-aligned
        # 128-wide (Hp) span -> whole-vreg slices, no lane shuffles.
        i = jax.nn.sigmoid(gates[:, 0 * Hp:1 * Hp])
        f = jax.nn.sigmoid(gates[:, 1 * Hp:2 * Hp])
        g = jnp.tanh(gates[:, 2 * Hp:3 * Hp])
        o = jax.nn.sigmoid(gates[:, 3 * Hp:4 * Hp])
        c_new = f * c + i * g
        h_new = o * jnp.tanh(c_new)
        return h_new, c_new

    # ---- 2) encoder recurrence (only h @ W_hh is serial) ----
    def enc_body(t, carry):
        h, c = carry
        r0 = pl.multiple_of(t * Bp, Bp)
        gx = gx_enc_scr[pl.ds(r0, Bp), :]                         # (Bp, 4Hp) f32
        gates = gx + jnp.dot(h.astype(jnp.bfloat16), enc_whh,
                             preferred_element_type=jnp.float32)
        return gates_to_hc(gates, c)

    h0 = jnp.zeros((Bp, Hp), jnp.float32)
    c0 = jnp.zeros((Bp, Hp), jnp.float32)
    h_enc, c_enc = lax.fori_loop(0, S, enc_body, (h0, c0), unroll=min(8, S))

    # ---- 3) decoder recurrence; h states stored (bf16) into VMEM scratch ----
    def dec_body(t, carry):
        h, c = carry
        r0 = pl.multiple_of(t * Bp, Bp)
        gx = gx_dec_scr[pl.ds(r0, Bp), :]
        gates = gx + jnp.dot(h.astype(jnp.bfloat16), dec_whh,
                             preferred_element_type=jnp.float32)
        h_new, c_new = gates_to_hc(gates, c)
        hs_scr[pl.ds(r0, Bp), :] = h_new.astype(hs_scr.dtype)
        return h_new, c_new

    lax.fori_loop(0, T, dec_body, (h_enc, c_enc), unroll=min(8, T))

    # ---- 4) deferred classifier + cross-entropy over all T*Bp tokens ----
    hs = hs_scr[...]                                              # (T*Bp, Hp) bf16
    logits = (jnp.dot(hs, wcls_ref[...],
                      preferred_element_type=jnp.float32)
              + bcls_ref[...])                                    # (T*Bp, Vp) f32
    m = jnp.max(logits, axis=-1, keepdims=True)                   # (T*Bp, 1)
    lse = m + jnp.log(jnp.sum(jnp.exp(logits - m), axis=-1, keepdims=True))
    # true-class logit from pre-gathered classifier column + bias (no iota/mask)
    true_logit = (jnp.sum(hs.astype(jnp.float32) * w_true_ref[...],
                          axis=-1, keepdims=True)
                  + b_true_ref[...])                              # (T*Bp, 1)
    contrib = row_w_ref[...] * (lse - true_logit)                 # padded rows -> 0
    loss_ref[...] = jnp.sum(contrib, axis=0, keepdims=True)


# ------------------------------ full forward --------------------------------

def seq2seq_loss(params, src_index, tgt_index, target_corpus_len):
    B, S = src_index.shape
    decoder_input = tgt_index[:, :-1]                 # (B, T)
    label = tgt_index[:, 1:]                          # (B, T)
    T = decoder_input.shape[1]

    E_enc = params["emb_enc"].shape[1]
    E_dec = params["emb_dec"].shape[1]
    H = params["enc_whh"].shape[0]
    V = target_corpus_len

    # padded dims: batch -> sublane width, gates -> one 128-lane span per gate,
    # vocab -> 128-lane multiple
    Bp = _round_up(max(B, 8), 8)
    Hp = _round_up(max(H, 128), 128)
    Vp = _round_up(max(V, 128), 128)

    # ---- weight padding / bf16 casting (plain-JAX glue, outside the kernel) ----
    enc_wih = _pad_gate_cols(params["enc_wih"], H, Hp).astype(jnp.bfloat16)       # (E, 4Hp)
    enc_whh = _pad_gate_cols(jnp.pad(params["enc_whh"], ((0, Hp - H), (0, 0))),
                             H, Hp).astype(jnp.bfloat16)                          # (Hp, 4Hp)
    enc_b = _pad_gate_cols(params["enc_b"], H, Hp).astype(jnp.float32)            # (1, 4Hp)
    dec_wih = _pad_gate_cols(params["dec_wih"], H, Hp).astype(jnp.bfloat16)
    dec_whh = _pad_gate_cols(jnp.pad(params["dec_whh"], ((0, Hp - H), (0, 0))),
                             H, Hp).astype(jnp.bfloat16)
    dec_b = _pad_gate_cols(params["dec_b"], H, Hp).astype(jnp.float32)
    cls_w = jnp.pad(params["cls_w"], ((0, Hp - H), (0, Vp - V))).astype(jnp.bfloat16)
    cls_b = jnp.pad(params["cls_b"], ((0, 0), (0, Vp - V)),
                    mode="constant", constant_values=-1e9).astype(jnp.float32)

    # ---- embedding gathers + time-major flattening + batch padding ----
    x_enc = jnp.transpose(params["emb_enc"][src_index], (1, 0, 2))      # (S, B, E)
    x_enc = jnp.pad(x_enc, ((0, 0), (0, Bp - B), (0, 0)))
    x_enc = x_enc.reshape(S * Bp, E_enc).astype(jnp.bfloat16)
    x_dec = jnp.transpose(params["emb_dec"][decoder_input], (1, 0, 2))  # (T, B, E)
    x_dec = jnp.pad(x_dec, ((0, 0), (0, Bp - B), (0, 0)))
    x_dec = x_dec.reshape(T * Bp, E_dec).astype(jnp.bfloat16)

    # ---- true-class gather (instead of an in-kernel one-hot / iota mask) ----
    labels_tm = jnp.pad(jnp.transpose(label, (1, 0)),
                        ((0, 0), (0, Bp - B))).reshape(T * Bp).astype(jnp.int32)
    w_true = jnp.take(cls_w.T, labels_tm, axis=0).astype(jnp.float32)   # (T*Bp, Hp)
    b_true = cls_b[0, labels_tm].reshape(T * Bp, 1).astype(jnp.float32)

    # per-row loss weight: 1/(T*B) for real batch rows, 0 for padded rows
    valid = (jnp.arange(Bp) < B).astype(jnp.float32) / float(T * B)
    row_w = jnp.broadcast_to(valid[None, :], (T, Bp)).reshape(T * Bp, 1)

    kernel = functools.partial(seq2seq_fused_kernel, S=S, T=T, Bp=Bp, Hp=Hp)
    in_specs = [pl.BlockSpec(memory_space=pltpu.MemorySpace.VMEM) for _ in range(13)]

    loss = pl.pallas_call(
        kernel,
        out_shape=jax.ShapeDtypeStruct((1, 1), jnp.float32),
        in_specs=in_specs,
        out_specs=pl.BlockSpec(memory_space=pltpu.MemorySpace.VMEM),
        scratch_shapes=[
            pltpu.VMEM((S * Bp, 4 * Hp), jnp.float32),   # encoder x-gates
            pltpu.VMEM((T * Bp, 4 * Hp), jnp.float32),   # decoder x-gates
            pltpu.VMEM((T * Bp, Hp), jnp.bfloat16),      # decoder hidden states
        ],
    )(x_enc, x_dec, w_true, b_true, row_w,
      enc_wih, enc_whh, enc_b,
      dec_wih, dec_whh, dec_b,
      cls_w, cls_b)
    return loss[0, 0]


def init_params(key, source_corpus_len, target_corpus_len,
                dim_enc_emb, dim_dec_emb, dim_hidden):
    keys = jax.random.split(key, 9)
    s = 0.1
    H = dim_hidden
    return {
        "emb_enc": jax.random.normal(keys[0], (source_corpus_len, dim_enc_emb), jnp.float32) * s,
        "emb_dec": jax.random.normal(keys[1], (target_corpus_len, dim_dec_emb), jnp.float32) * s,
        "enc_wih": jax.random.normal(keys[2], (dim_enc_emb, 4 * H), jnp.float32) * s,
        "enc_whh": jax.random.normal(keys[3], (H, 4 * H), jnp.float32) * s,
        "enc_b":   jax.random.normal(keys[4], (1, 4 * H), jnp.float32) * s,   # = b_ih + b_hh
        "dec_wih": jax.random.normal(keys[5], (dim_dec_emb, 4 * H), jnp.float32) * s,
        "dec_whh": jax.random.normal(keys[6], (H, 4 * H), jnp.float32) * s,
        "dec_b":   jax.random.normal(keys[7], (1, 4 * H), jnp.float32) * s,   # = b_ih + b_hh
        "cls_w":   jax.random.normal(keys[8], (H, target_corpus_len), jnp.float32) * s,
        "cls_b":   jnp.zeros((1, target_corpus_len), jnp.float32),
    }


if __name__ == "__main__":
    # small shapes consistent with the module
    B = 2
    S_SRC = 8          # encoder sequence length
    S_TGT = 9          # decoder sequence length (shifted -> 8 steps)
    SRC_VOCAB = 50
    TGT_VOCAB = 40
    E_ENC = 16
    E_DEC = 16
    HIDDEN = 32        # encoder hidden == decoder hidden (as in the module's usage)

    key = jax.random.PRNGKey(0)
    k_param, k_src, k_tgt = jax.random.split(key, 3)

    params = init_params(k_param, SRC_VOCAB, TGT_VOCAB, E_ENC, E_DEC, HIDDEN)
    src_index = jax.random.randint(k_src, (B, S_SRC), 0, SRC_VOCAB, dtype=jnp.int32)
    tgt_index = jax.random.randint(k_tgt, (B, S_TGT), 0, TGT_VOCAB, dtype=jnp.int32)

    loss = seq2seq_loss(params, src_index, tgt_index, TGT_VOCAB)
    jax.block_until_ready(loss)
    print("KERNEL_OK")
</pallas_src>

<mosaic_0001>
module attributes {stable_mosaic.version = 11 : i64} {
  func.func @seq2seq_fused_kernel(%arg0: memref<64x16xbf16, #tpu.memory_space<vmem>>, %arg1: memref<64x16xbf16, #tpu.memory_space<vmem>>, %arg2: memref<64x128xf32, #tpu.memory_space<vmem>>, %arg3: memref<64x1xf32, #tpu.memory_space<vmem>>, %arg4: memref<64x1xf32, #tpu.memory_space<vmem>>, %arg5: memref<16x512xbf16, #tpu.memory_space<vmem>>, %arg6: memref<128x512xbf16, #tpu.memory_space<vmem>>, %arg7: memref<1x512xf32, #tpu.memory_space<vmem>>, %arg8: memref<16x512xbf16, #tpu.memory_space<vmem>>, %arg9: memref<128x512xbf16, #tpu.memory_space<vmem>>, %arg10: memref<1x512xf32, #tpu.memory_space<vmem>>, %arg11: memref<128x128xbf16, #tpu.memory_space<vmem>>, %arg12: memref<1x128xf32, #tpu.memory_space<vmem>>, %arg13: memref<1x1xf32, #tpu.memory_space<vmem>>, %arg14: memref<64x512xf32, #tpu.memory_space<vmem>>, %arg15: memref<64x512xf32, #tpu.memory_space<vmem>>, %arg16: memref<64x128xbf16, #tpu.memory_space<vmem>>) attributes {dimension_semantics = [], scalar_prefetch = 0 : i64, scratch_operands = 3 : i64, tpu.core_type = #tpu.core_type<tc>} {
    %c0 = arith.constant 0 : index
    %c0_0 = arith.constant 0 : index
    %0 = vector.load %arg0[%c0, %c0_0] : memref<64x16xbf16, #tpu.memory_space<vmem>>, vector<64x16xbf16>
    %c0_1 = arith.constant 0 : index
    %c0_2 = arith.constant 0 : index
    %1 = vector.load %arg5[%c0_1, %c0_2] : memref<16x512xbf16, #tpu.memory_space<vmem>>, vector<16x512xbf16>
    %cst = arith.constant dense<0.000000e+00> : vector<64x512xf32>
    %2 = tpu.matmul %0, %1, %cst {dimension_numbers = #tpu.dot_dimension_numbers<[1], [0], [0], [1], [0, 0, 1, 1], [], []>} : vector<64x16xbf16>, vector<16x512xbf16>, vector<64x512xf32> -> vector<64x512xf32>
    %c0_3 = arith.constant 0 : index
    %c0_4 = arith.constant 0 : index
    %3 = vector.load %arg7[%c0_3, %c0_4] : memref<1x512xf32, #tpu.memory_space<vmem>>, vector<1x512xf32>
    %4 = vector.broadcast %3 : vector<1x512xf32> to vector<64x512xf32>
    %5 = arith.addf %2, %4 : vector<64x512xf32>
    %c0_5 = arith.constant 0 : index
    %c0_6 = arith.constant 0 : index
    %6 = vector.load %arg14[%c0_5, %c0_6] : memref<64x512xf32, #tpu.memory_space<vmem>>, vector<64x512xf32>
    tpu.vector_store %arg14[%c0_5, %c0_6], %5 {strides = array<i32>} : memref<64x512xf32, #tpu.memory_space<vmem>>, vector<64x512xf32>,
    %c0_7 = arith.constant 0 : index
    %c0_8 = arith.constant 0 : index
    %7 = vector.load %arg1[%c0_7, %c0_8] : memref<64x16xbf16, #tpu.memory_space<vmem>>, vector<64x16xbf16>
    %c0_9 = arith.constant 0 : index
    %c0_10 = arith.constant 0 : index
    %8 = vector.load %arg8[%c0_9, %c0_10] : memref<16x512xbf16, #tpu.memory_space<vmem>>, vector<16x512xbf16>
    %cst_11 = arith.constant dense<0.000000e+00> : vector<64x512xf32>
    %9 = tpu.matmul %7, %8, %cst_11 {dimension_numbers = #tpu.dot_dimension_numbers<[1], [0], [0], [1], [0, 0, 1, 1], [], []>} : vector<64x16xbf16>, vector<16x512xbf16>, vector<64x512xf32> -> vector<64x512xf32>
    %c0_12 = arith.constant 0 : index
    %c0_13 = arith.constant 0 : index
    %10 = vector.load %arg10[%c0_12, %c0_13] : memref<1x512xf32, #tpu.memory_space<vmem>>, vector<1x512xf32>
    %11 = vector.broadcast %10 : vector<1x512xf32> to vector<64x512xf32>
    %12 = arith.addf %9, %11 : vector<64x512xf32>
    %c0_14 = arith.constant 0 : index
    %c0_15 = arith.constant 0 : index
    %13 = vector.load %arg15[%c0_14, %c0_15] : memref<64x512xf32, #tpu.memory_space<vmem>>, vector<64x512xf32>
    tpu.vector_store %arg15[%c0_14, %c0_15], %12 {strides = array<i32>} : memref<64x512xf32, #tpu.memory_space<vmem>>, vector<64x512xf32>,
    %c0_16 = arith.constant 0 : index
    %c0_17 = arith.constant 0 : index
    %14 = vector.load %arg6[%c0_16, %c0_17] : memref<128x512xbf16, #tpu.memory_space<vmem>>, vector<128x512xbf16>
    %c0_18 = arith.constant 0 : index
    %c0_19 = arith.constant 0 : index
    %15 = vector.load %arg9[%c0_18, %c0_19] : memref<128x512xbf16, #tpu.memory_space<vmem>>, vector<128x512xbf16>
    %cst_20 = arith.constant 0.000000e+00 : f32
    %16 = vector.broadcast %cst_20 : f32 to vector<8x128xf32>
    %cst_21 = arith.constant 0.000000e+00 : f32
    %17 = vector.broadcast %cst_21 : f32 to vector<8x128xf32>
    %c0_i32 = arith.constant 0 : i32
    %c8_i32 = arith.constant 8 : i32
    %18 = arith.muli %c0_i32, %c8_i32 : i32
    %19 = tpu.assume_multiple %18, 8 : i32
    %20 = arith.index_cast %19 : i32 to index
    %c0_22 = arith.constant 0 : index
    %21 = vector.load %arg14[%20, %c0_22] : memref<64x512xf32, #tpu.memory_space<vmem>>, vector<8x512xf32>
    %22 = arith.truncf %16 : vector<8x128xf32> to vector<8x128xbf16>
    %cst_23 = arith.constant dense<0.000000e+00> : vector<8x512xf32>
    %23 = tpu.matmul %22, %14, %cst_23 {dimension_numbers = #tpu.dot_dimension_numbers<[1], [0], [0], [1], [0, 0, 1, 1], [], []>} : vector<8x128xbf16>, vector<128x512xbf16>, vector<8x512xf32> -> vector<8x512xf32>
    %24 = arith.addf %21, %23 : vector<8x512xf32>
    %25 = vector.extract_strided_slice %24 {offsets = [0, 0], sizes = [8, 128], strides = [1, 1]} : vector<8x512xf32> to vector<8x128xf32>
    %26 = arith.negf %25 : vector<8x128xf32>
    %27 = math.exp %26 : vector<8x128xf32>
    %cst_24 = arith.constant 1.000000e+00 : f32
    %28 = vector.broadcast %cst_24 : f32 to vector<8x128xf32>
    %29 = arith.addf %28, %27 : vector<8x128xf32>
    %30 = arith.divf %28, %29 : vector<8x128xf32>
    %31 = vector.extract_strided_slice %24 {offsets = [0, 128], sizes = [8, 128], strides = [1, 1]} : vector<8x512xf32> to vector<8x128xf32>
    %32 = arith.negf %31 : vector<8x128xf32>
    %33 = math.exp %32 : vector<8x128xf32>
    %cst_25 = arith.constant 1.000000e+00 : f32
    %34 = vector.broadcast %cst_25 : f32 to vector<8x128xf32>
    %35 = arith.addf %34, %33 : vector<8x128xf32>
    %36 = arith.divf %34, %35 : vector<8x128xf32>
    %37 = vector.extract_strided_slice %24 {offsets = [0, 256], sizes = [8, 128], strides = [1, 1]} : vector<8x512xf32> to vector<8x128xf32>
    %38 = math.tanh %37 : vector<8x128xf32>
    %39 = vector.extract_strided_slice %24 {offsets = [0, 384], sizes = [8, 128], strides = [1, 1]} : vector<8x512xf32> to vector<8x128xf32>
    %40 = arith.negf %39 : vector<8x128xf32>
    %41 = math.exp %40 : vector<8x128xf32>
    %cst_26 = arith.constant 1.000000e+00 : f32
    %42 = vector.broadcast %cst_26 : f32 to vector<8x128xf32>
    %43 = arith.addf %42, %41 : vector<8x128xf32>
    %44 = arith.divf %42, %43 : vector<8x128xf32>
    %45 = arith.mulf %36, %17 : vector<8x128xf32>
    %46 = arith.mulf %30, %38 : vector<8x128xf32>
    %47 = arith.addf %45, %46 : vector<8x128xf32>
    %48 = math.tanh %47 : vector<8x128xf32>
    %49 = arith.mulf %44, %48 : vector<8x128xf32>
    %c1_i32 = arith.constant 1 : i32
    %c8_i32_27 = arith.constant 8 : i32
    %50 = arith.muli %c1_i32, %c8_i32_27 : i32
    %51 = tpu.assume_multiple %50, 8 : i32
    %52 = arith.index_cast %51 : i32 to index
    %c0_28 = arith.constant 0 : index
    %53 = vector.load %arg14[%52, %c0_28] : memref<64x512xf32, #tpu.memory_space<vmem>>, vector<8x512xf32>
    %54 = arith.truncf %49 : vector<8x128xf32> to vector<8x128xbf16>
    %cst_29 = arith.constant dense<0.000000e+00> : vector<8x512xf32>
    %55 = tpu.matmul %54, %14, %cst_29 {dimension_numbers = #tpu.dot_dimension_numbers<[1], [0], [0], [1], [0, 0, 1, 1], [], []>} : vector<8x128xbf16>, vector<128x512xbf16>, vector<8x512xf32> -> vector<8x512xf32>
    %56 = arith.addf %53, %55 : vector<8x512xf32>
    %57 = vector.extract_strided_slice %56 {offsets = [0, 0], sizes = [8, 128], strides = [1, 1]} : vector<8x512xf32> to vector<8x128xf32>
    %58 = arith.negf %57 : vector<8x128xf32>
    %59 = math.exp %58 : vector<8x128xf32>
    %cst_30 = arith.constant 1.000000e+00 : f32
    %60 = vector.broadcast %cst_30 : f32 to vector<8x128xf32>
    %61 = arith.addf %60, %59 : vector<8x128xf32>
    %62 = arith.divf %60, %61 : vector<8x128xf32>
    %63 = vector.extract_strided_slice %56 {offsets = [0, 128], sizes = [8, 128], strides = [1, 1]} : vector<8x512xf32> to vector<8x128xf32>
    %64 = arith.negf %63 : vector<8x128xf32>
    %65 = math.exp %64 : vector<8x128xf32>
    %cst_31 = arith.constant 1.000000e+00 : f32
    %66 = vector.broadcast %cst_31 : f32 to vector<8x128xf32>
    %67 = arith.addf %66, %65 : vector<8x128xf32>
    %68 = arith.divf %66, %67 : vector<8x128xf32>
    %69 = vector.extract_strided_slice %56 {offsets = [0, 256], sizes = [8, 128], strides = [1, 1]} : vector<8x512xf32> to vector<8x128xf32>
    %70 = math.tanh %69 : vector<8x128xf32>
    %71 = vector.extract_strided_slice %56 {offsets = [0, 384], sizes = [8, 128], strides = [1, 1]} : vector<8x512xf32> to vector<8x128xf32>
    %72 = arith.negf %71 : vector<8x128xf32>
    %73 = math.exp %72 : vector<8x128xf32>
    %cst_32 = arith.constant 1.000000e+00 : f32
    %74 = vector.broadcast %cst_32 : f32 to vector<8x128xf32>
    %75 = arith.addf %74, %73 : vector<8x128xf32>
    %76 = arith.divf %74, %75 : vector<8x128xf32>
    %77 = arith.mulf %68, %47 : vector<8x128xf32>
    %78 = arith.mulf %62, %70 : vector<8x128xf32>
    %79 = arith.addf %77, %78 : vector<8x128xf32>
    %80 = math.tanh %79 : vector<8x128xf32>
    %81 = arith.mulf %76, %80 : vector<8x128xf32>
    %c2_i32 = arith.constant 2 : i32
    %c8_i32_33 = arith.constant 8 : i32
    %82 = arith.muli %c2_i32, %c8_i32_33 : i32
    %83 = tpu.assume_multiple %82, 8 : i32
    %84 = arith.index_cast %83 : i32 to index
    %c0_34 = arith.constant 0 : index
    %85 = vector.load %arg14[%84, %c0_34] : memref<64x512xf32, #tpu.memory_space<vmem>>, vector<8x512xf32>
    %86 = arith.truncf %81 : vector<8x128xf32> to vector<8x128xbf16>
    %cst_35 = arith.constant dense<0.000000e+00> : vector<8x512xf32>
    %87 = tpu.matmul %86, %14, %cst_35 {dimension_numbers = #tpu.dot_dimension_numbers<[1], [0], [0], [1], [0, 0, 1, 1], [], []>} : vector<8x128xbf16>, vector<128x512xbf16>, vector<8x512xf32> -> vector<8x512xf32>
    %88 = arith.addf %85, %87 : vector<8x512xf32>
    %89 = vector.extract_strided_slice %88 {offsets = [0, 0], sizes = [8, 128], strides = [1, 1]} : vector<8x512xf32> to vector<8x128xf32>
    %90 = arith.negf %89 : vector<8x128xf32>
    %91 = math.exp %90 : vector<8x128xf32>
    %cst_36 = arith.constant 1.000000e+00 : f32
    %92 = vector.broadcast %cst_36 : f32 to vector<8x128xf32>
    %93 = arith.addf %92, %91 : vector<8x128xf32>
    %94 = arith.divf %92, %93 : vector<8x128xf32>
    %95 = vector.extract_strided_slice %88 {offsets = [0, 128], sizes = [8, 128], strides = [1, 1]} : vector<8x512xf32> to vector<8x128xf32>
    %96 = arith.negf %95 : vector<8x128xf32>
    %97 = math.exp %96 : vector<8x128xf32>
    %cst_37 = arith.constant 1.000000e+00 : f32
    %98 = vector.broadcast %cst_37 : f32 to vector<8x128xf32>
    %99 = arith.addf %98, %97 : vector<8x128xf32>
    %100 = arith.divf %98, %99 : vector<8x128xf32>
    %101 = vector.extract_strided_slice %88 {offsets = [0, 256], sizes = [8, 128], strides = [1, 1]} : vector<8x512xf32> to vector<8x128xf32>
    %102 = math.tanh %101 : vector<8x128xf32>
    %103 = vector.extract_strided_slice %88 {offsets = [0, 384], sizes = [8, 128], strides = [1, 1]} : vector<8x512xf32> to vector<8x128xf32>
    %104 = arith.negf %103 : vector<8x128xf32>
    %105 = math.exp %104 : vector<8x128xf32>
    %cst_38 = arith.constant 1.000000e+00 : f32
    %106 = vector.broadcast %cst_38 : f32 to vector<8x128xf32>
    %107 = arith.addf %106, %105 : vector<8x128xf32>
    %108 = arith.divf %106, %107 : vector<8x128xf32>
    %109 = arith.mulf %100, %79 : vector<8x128xf32>
    %110 = arith.mulf %94, %102 : vector<8x128xf32>
    %111 = arith.addf %109, %110 : vector<8x128xf32>
    %112 = math.tanh %111 : vector<8x128xf32>
    %113 = arith.mulf %108, %112 : vector<8x128xf32>
    %c3_i32 = arith.constant 3 : i32
    %c8_i32_39 = arith.constant 8 : i32
    %114 = arith.muli %c3_i32, %c8_i32_39 : i32
    %115 = tpu.assume_multiple %114, 8 : i32
    %116 = arith.index_cast %115 : i32 to index
    %c0_40 = arith.constant 0 : index
    %117 = vector.load %arg14[%116, %c0_40] : memref<64x512xf32, #tpu.memory_space<vmem>>, vector<8x512xf32>
    %118 = arith.truncf %113 : vector<8x128xf32> to vector<8x128xbf16>
    %cst_41 = arith.constant dense<0.000000e+00> : vector<8x512xf32>
    %119 = tpu.matmul %118, %14, %cst_41 {dimension_numbers = #tpu.dot_dimension_numbers<[1], [0], [0], [1], [0, 0, 1, 1], [], []>} : vector<8x128xbf16>, vector<128x512xbf16>, vector<8x512xf32> -> vector<8x512xf32>
    %120 = arith.addf %117, %119 : vector<8x512xf32>
    %121 = vector.extract_strided_slice %120 {offsets = [0, 0], sizes = [8, 128], strides = [1, 1]} : vector<8x512xf32> to vector<8x128xf32>
    %122 = arith.negf %121 : vector<8x128xf32>
    %123 = math.exp %122 : vector<8x128xf32>
    %cst_42 = arith.constant 1.000000e+00 : f32
    %124 = vector.broadcast %cst_42 : f32 to vector<8x128xf32>
    %125 = arith.addf %124, %123 : vector<8x128xf32>
    %126 = arith.divf %124, %125 : vector<8x128xf32>
    %127 = vector.extract_strided_slice %120 {offsets = [0, 128], sizes = [8, 128], strides = [1, 1]} : vector<8x512xf32> to vector<8x128xf32>
    %128 = arith.negf %127 : vector<8x128xf32>
    %129 = math.exp %128 : vector<8x128xf32>
    %cst_43 = arith.constant 1.000000e+00 : f32
    %130 = vector.broadcast %cst_43 : f32 to vector<8x128xf32>
    %131 = arith.addf %130, %129 : vector<8x128xf32>
    %132 = arith.divf %130, %131 : vector<8x128xf32>
    %133 = vector.extract_strided_slice %120 {offsets = [0, 256], sizes = [8, 128], strides = [1, 1]} : vector<8x512xf32> to vector<8x128xf32>
    %134 = math.tanh %133 : vector<8x128xf32>
    %135 = vector.extract_strided_slice %120 {offsets = [0, 384], sizes = [8, 128], strides = [1, 1]} : vector<8x512xf32> to vector<8x128xf32>
    %136 = arith.negf %135 : vector<8x128xf32>
    %137 = math.exp %136 : vector<8x128xf32>
    %cst_44 = arith.constant 1.000000e+00 : f32
    %138 = vector.broadcast %cst_44 : f32 to vector<8x128xf32>
    %139 = arith.addf %138, %137 : vector<8x128xf32>
    %140 = arith.divf %138, %139 : vector<8x128xf32>
    %141 = arith.mulf %132, %111 : vector<8x128xf32>
    %142 = arith.mulf %126, %134 : vector<8x128xf32>
    %143 = arith.addf %141, %142 : vector<8x128xf32>
    %144 = math.tanh %143 : vector<8x128xf32>
    %145 = arith.mulf %140, %144 : vector<8x128xf32>
    %c4_i32 = arith.constant 4 : i32
    %c8_i32_45 = arith.constant 8 : i32
    %146 = arith.muli %c4_i32, %c8_i32_45 : i32
    %147 = tpu.assume_multiple %146, 8 : i32
    %148 = arith.index_cast %147 : i32 to index
    %c0_46 = arith.constant 0 : index
    %149 = vector.load %arg14[%148, %c0_46] : memref<64x512xf32, #tpu.memory_space<vmem>>, vector<8x512xf32>
    %150 = arith.truncf %145 : vector<8x128xf32> to vector<8x128xbf16>
    %cst_47 = arith.constant dense<0.000000e+00> : vector<8x512xf32>
    %151 = tpu.matmul %150, %14, %cst_47 {dimension_numbers = #tpu.dot_dimension_numbers<[1], [0], [0], [1], [0, 0, 1, 1], [], []>} : vector<8x128xbf16>, vector<128x512xbf16>, vector<8x512xf32> -> vector<8x512xf32>
    %152 = arith.addf %149, %151 : vector<8x512xf32>
    %153 = vector.extract_strided_slice %152 {offsets = [0, 0], sizes = [8, 128], strides = [1, 1]} : vector<8x512xf32> to vector<8x128xf32>
    %154 = arith.negf %153 : vector<8x128xf32>
    %155 = math.exp %154 : vector<8x128xf32>
    %cst_48 = arith.constant 1.000000e+00 : f32
    %156 = vector.broadcast %cst_48 : f32 to vector<8x128xf32>
    %157 = arith.addf %156, %155 : vector<8x128xf32>
    %158 = arith.divf %156, %157 : vector<8x128xf32>
    %159 = vector.extract_strided_slice %152 {offsets = [0, 128], sizes = [8, 128], strides = [1, 1]} : vector<8x512xf32> to vector<8x128xf32>
    %160 = arith.negf %159 : vector<8x128xf32>
    %161 = math.exp %160 : vector<8x128xf32>
    %cst_49 = arith.constant 1.000000e+00 : f32
    %162 = vector.broadcast %cst_49 : f32 to vector<8x128xf32>
    %163 = arith.addf %162, %161 : vector<8x128xf32>
    %164 = arith.divf %162, %163 : vector<8x128xf32>
    %165 = vector.extract_strided_slice %152 {offsets = [0, 256], sizes = [8, 128], strides = [1, 1]} : vector<8x512xf32> to vector<8x128xf32>
    %166 = math.tanh %165 : vector<8x128xf32>
    %167 = vector.extract_strided_slice %152 {offsets = [0, 384], sizes = [8, 128], strides = [1, 1]} : vector<8x512xf32> to vector<8x128xf32>
    %168 = arith.negf %167 : vector<8x128xf32>
    %169 = math.exp %168 : vector<8x128xf32>
    %cst_50 = arith.constant 1.000000e+00 : f32
    %170 = vector.broadcast %cst_50 : f32 to vector<8x128xf32>
    %171 = arith.addf %170, %169 : vector<8x128xf32>
    %172 = arith.divf %170, %171 : vector<8x128xf32>
    %173 = arith.mulf %164, %143 : vector<8x128xf32>
    %174 = arith.mulf %158, %166 : vector<8x128xf32>
    %175 = arith.addf %173, %174 : vector<8x128xf32>
    %176 = math.tanh %175 : vector<8x128xf32>
    %177 = arith.mulf %172, %176 : vector<8x128xf32>
    %c5_i32 = arith.constant 5 : i32
    %c8_i32_51 = arith.constant 8 : i32
    %178 = arith.muli %c5_i32, %c8_i32_51 : i32
    %179 = tpu.assume_multiple %178, 8 : i32
    %180 = arith.index_cast %179 : i32 to index
    %c0_52 = arith.constant 0 : index
    %181 = vector.load %arg14[%180, %c0_52] : memref<64x512xf32, #tpu.memory_space<vmem>>, vector<8x512xf32>
    %182 = arith.truncf %177 : vector<8x128xf32> to vector<8x128xbf16>
    %cst_53 = arith.constant dense<0.000000e+00> : vector<8x512xf32>
    %183 = tpu.matmul %182, %14, %cst_53 {dimension_numbers = #tpu.dot_dimension_numbers<[1], [0], [0], [1], [0, 0, 1, 1], [], []>} : vector<8x128xbf16>, vector<128x512xbf16>, vector<8x512xf32> -> vector<8x512xf32>
    %184 = arith.addf %181, %183 : vector<8x512xf32>
    %185 = vector.extract_strided_slice %184 {offsets = [0, 0], sizes = [8, 128], strides = [1, 1]} : vector<8x512xf32> to vector<8x128xf32>
    %186 = arith.negf %185 : vector<8x128xf32>
    %187 = math.exp %186 : vector<8x128xf32>
    %cst_54 = arith.constant 1.000000e+00 : f32
    %188 = vector.broadcast %cst_54 : f32 to vector<8x128xf32>
    %189 = arith.addf %188, %187 : vector<8x128xf32>
    %190 = arith.divf %188, %189 : vector<8x128xf32>
    %191 = vector.extract_strided_slice %184 {offsets = [0, 128], sizes = [8, 128], strides = [1, 1]} : vector<8x512xf32> to vector<8x128xf32>
    %192 = arith.negf %191 : vector<8x128xf32>
    %193 = math.exp %192 : vector<8x128xf32>
    %cst_55 = arith.constant 1.000000e+00 : f32
    %194 = vector.broadcast %cst_55 : f32 to vector<8x128xf32>
    %195 = arith.addf %194, %193 : vector<8x128xf32>
    %196 = arith.divf %194, %195 : vector<8x128xf32>
    %197 = vector.extract_strided_slice %184 {offsets = [0, 256], sizes = [8, 128], strides = [1, 1]} : vector<8x512xf32> to vector<8x128xf32>
    %198 = math.tanh %197 : vector<8x128xf32>
    %199 = vector.extract_strided_slice %184 {offsets = [0, 384], sizes = [8, 128], strides = [1, 1]} : vector<8x512xf32> to vector<8x128xf32>
    %200 = arith.negf %199 : vector<8x128xf32>
    %201 = math.exp %200 : vector<8x128xf32>
    %cst_56 = arith.constant 1.000000e+00 : f32
    %202 = vector.broadcast %cst_56 : f32 to vector<8x128xf32>
    %203 = arith.addf %202, %201 : vector<8x128xf32>
    %204 = arith.divf %202, %203 : vector<8x128xf32>
    %205 = arith.mulf %196, %175 : vector<8x128xf32>
    %206 = arith.mulf %190, %198 : vector<8x128xf32>
    %207 = arith.addf %205, %206 : vector<8x128xf32>
    %208 = math.tanh %207 : vector<8x128xf32>
    %209 = arith.mulf %204, %208 : vector<8x128xf32>
    %c6_i32 = arith.constant 6 : i32
    %c8_i32_57 = arith.constant 8 : i32
    %210 = arith.muli %c6_i32, %c8_i32_57 : i32
    %211 = tpu.assume_multiple %210, 8 : i32
    %212 = arith.index_cast %211 : i32 to index
    %c0_58 = arith.constant 0 : index
    %213 = vector.load %arg14[%212, %c0_58] : memref<64x512xf32, #tpu.memory_space<vmem>>, vector<8x512xf32>
    %214 = arith.truncf %209 : vector<8x128xf32> to vector<8x128xbf16>
    %cst_59 = arith.constant dense<0.000000e+00> : vector<8x512xf32>
    %215 = tpu.matmul %214, %14, %cst_59 {dimension_numbers = #tpu.dot_dimension_numbers<[1], [0], [0], [1], [0, 0, 1, 1], [], []>} : vector<8x128xbf16>, vector<128x512xbf16>, vector<8x512xf32> -> vector<8x512xf32>
    %216 = arith.addf %213, %215 : vector<8x512xf32>
    %217 = vector.extract_strided_slice %216 {offsets = [0, 0], sizes = [8, 128], strides = [1, 1]} : vector<8x512xf32> to vector<8x128xf32>
    %218 = arith.negf %217 : vector<8x128xf32>
    %219 = math.exp %218 : vector<8x128xf32>
    %cst_60 = arith.constant 1.000000e+00 : f32
    %220 = vector.broadcast %cst_60 : f32 to vector<8x128xf32>
    %221 = arith.addf %220, %219 : vector<8x128xf32>
    %222 = arith.divf %220, %221 : vector<8x128xf32>
    %223 = vector.extract_strided_slice %216 {offsets = [0, 128], sizes = [8, 128], strides = [1, 1]} : vector<8x512xf32> to vector<8x128xf32>
    %224 = arith.negf %223 : vector<8x128xf32>
    %225 = math.exp %224 : vector<8x128xf32>
    %cst_61 = arith.constant 1.000000e+00 : f32
    %226 = vector.broadcast %cst_61 : f32 to vector<8x128xf32>
    %227 = arith.addf %226, %225 : vector<8x128xf32>
    %228 = arith.divf %226, %227 : vector<8x128xf32>
    %229 = vector.extract_strided_slice %216 {offsets = [0, 256], sizes = [8, 128], strides = [1, 1]} : vector<8x512xf32> to vector<8x128xf32>
    %230 = math.tanh %229 : vector<8x128xf32>
    %231 = vector.extract_strided_slice %216 {offsets = [0, 384], sizes = [8, 128], strides = [1, 1]} : vector<8x512xf32> to vector<8x128xf32>
    %232 = arith.negf %231 : vector<8x128xf32>
    %233 = math.exp %232 : vector<8x128xf32>
    %cst_62 = arith.constant 1.000000e+00 : f32
    %234 = vector.broadcast %cst_62 : f32 to vector<8x128xf32>
    %235 = arith.addf %234, %233 : vector<8x128xf32>
    %236 = arith.divf %234, %235 : vector<8x128xf32>
    %237 = arith.mulf %228, %207 : vector<8x128xf32>
    %238 = arith.mulf %222, %230 : vector<8x128xf32>
    %239 = arith.addf %237, %238 : vector<8x128xf32>
    %240 = math.tanh %239 : vector<8x128xf32>
    %241 = arith.mulf %236, %240 : vector<8x128xf32>
    %c7_i32 = arith.constant 7 : i32
    %c8_i32_63 = arith.constant 8 : i32
    %242 = arith.muli %c7_i32, %c8_i32_63 : i32
    %243 = tpu.assume_multiple %242, 8 : i32
    %244 = arith.index_cast %243 : i32 to index
    %c0_64 = arith.constant 0 : index
    %245 = vector.load %arg14[%244, %c0_64] : memref<64x512xf32, #tpu.memory_space<vmem>>, vector<8x512xf32>
    %246 = arith.truncf %241 : vector<8x128xf32> to vector<8x128xbf16>
    %cst_65 = arith.constant dense<0.000000e+00> : vector<8x512xf32>
    %247 = tpu.matmul %246, %14, %cst_65 {dimension_numbers = #tpu.dot_dimension_numbers<[1], [0], [0], [1], [0, 0, 1, 1], [], []>} : vector<8x128xbf16>, vector<128x512xbf16>, vector<8x512xf32> -> vector<8x512xf32>
    %248 = arith.addf %245, %247 : vector<8x512xf32>
    %249 = vector.extract_strided_slice %248 {offsets = [0, 0], sizes = [8, 128], strides = [1, 1]} : vector<8x512xf32> to vector<8x128xf32>
    %250 = arith.negf %249 : vector<8x128xf32>
    %251 = math.exp %250 : vector<8x128xf32>
    %cst_66 = arith.constant 1.000000e+00 : f32
    %252 = vector.broadcast %cst_66 : f32 to vector<8x128xf32>
    %253 = arith.addf %252, %251 : vector<8x128xf32>
    %254 = arith.divf %252, %253 : vector<8x128xf32>
    %255 = vector.extract_strided_slice %248 {offsets = [0, 128], sizes = [8, 128], strides = [1, 1]} : vector<8x512xf32> to vector<8x128xf32>
    %256 = arith.negf %255 : vector<8x128xf32>
    %257 = math.exp %256 : vector<8x128xf32>
    %cst_67 = arith.constant 1.000000e+00 : f32
    %258 = vector.broadcast %cst_67 : f32 to vector<8x128xf32>
    %259 = arith.addf %258, %257 : vector<8x128xf32>
    %260 = arith.divf %258, %259 : vector<8x128xf32>
    %261 = vector.extract_strided_slice %248 {offsets = [0, 256], sizes = [8, 128], strides = [1, 1]} : vector<8x512xf32> to vector<8x128xf32>
    %262 = math.tanh %261 : vector<8x128xf32>
    %263 = vector.extract_strided_slice %248 {offsets = [0, 384], sizes = [8, 128], strides = [1, 1]} : vector<8x512xf32> to vector<8x128xf32>
    %264 = arith.negf %263 : vector<8x128xf32>
    %265 = math.exp %264 : vector<8x128xf32>
    %cst_68 = arith.constant 1.000000e+00 : f32
    %266 = vector.broadcast %cst_68 : f32 to vector<8x128xf32>
    %267 = arith.addf %266, %265 : vector<8x128xf32>
    %268 = arith.divf %266, %267 : vector<8x128xf32>
    %269 = arith.mulf %260, %239 : vector<8x128xf32>
    %270 = arith.mulf %254, %262 : vector<8x128xf32>
    %271 = arith.addf %269, %270 : vector<8x128xf32>
    %272 = math.tanh %271 : vector<8x128xf32>
    %273 = arith.mulf %268, %272 : vector<8x128xf32>
    %c8_i32_69 = arith.constant 8 : i32
    %c0_i32_70 = arith.constant 0 : i32
    %c8_i32_71 = arith.constant 8 : i32
    %274 = arith.muli %c0_i32_70, %c8_i32_71 : i32
    %275 = tpu.assume_multiple %274, 8 : i32
    %276 = arith.index_cast %275 : i32 to index
    %c0_72 = arith.constant 0 : index
    %277 = vector.load %arg15[%276, %c0_72] : memref<64x512xf32, #tpu.memory_space<vmem>>, vector<8x512xf32>
    %278 = arith.truncf %273 : vector<8x128xf32> to vector<8x128xbf16>
    %cst_73 = arith.constant dense<0.000000e+00> : vector<8x512xf32>
    %279 = tpu.matmul %278, %15, %cst_73 {dimension_numbers = #tpu.dot_dimension_numbers<[1], [0], [0], [1], [0, 0, 1, 1], [], []>} : vector<8x128xbf16>, vector<128x512xbf16>, vector<8x512xf32> -> vector<8x512xf32>
    %280 = arith.addf %277, %279 : vector<8x512xf32>
    %281 = vector.extract_strided_slice %280 {offsets = [0, 0], sizes = [8, 128], strides = [1, 1]} : vector<8x512xf32> to vector<8x128xf32>
    %282 = arith.negf %281 : vector<8x128xf32>
    %283 = math.exp %282 : vector<8x128xf32>
    %cst_74 = arith.constant 1.000000e+00 : f32
    %284 = vector.broadcast %cst_74 : f32 to vector<8x128xf32>
    %285 = arith.addf %284, %283 : vector<8x128xf32>
    %286 = arith.divf %284, %285 : vector<8x128xf32>
    %287 = vector.extract_strided_slice %280 {offsets = [0, 128], sizes = [8, 128], strides = [1, 1]} : vector<8x512xf32> to vector<8x128xf32>
    %288 = arith.negf %287 : vector<8x128xf32>
    %289 = math.exp %288 : vector<8x128xf32>
    %cst_75 = arith.constant 1.000000e+00 : f32
    %290 = vector.broadcast %cst_75 : f32 to vector<8x128xf32>
    %291 = arith.addf %290, %289 : vector<8x128xf32>
    %292 = arith.divf %290, %291 : vector<8x128xf32>
    %293 = vector.extract_strided_slice %280 {offsets = [0, 256], sizes = [8, 128], strides = [1, 1]} : vector<8x512xf32> to vector<8x128xf32>
    %294 = math.tanh %293 : vector<8x128xf32>
    %295 = vector.extract_strided_slice %280 {offsets = [0, 384], sizes = [8, 128], strides = [1, 1]} : vector<8x512xf32> to vector<8x128xf32>
    %296 = arith.negf %295 : vector<8x128xf32>
    %297 = math.exp %296 : vector<8x128xf32>
    %cst_76 = arith.constant 1.000000e+00 : f32
    %298 = vector.broadcast %cst_76 : f32 to vector<8x128xf32>
    %299 = arith.addf %298, %297 : vector<8x128xf32>
    %300 = arith.divf %298, %299 : vector<8x128xf32>
    %301 = arith.mulf %292, %271 : vector<8x128xf32>
    %302 = arith.mulf %286, %294 : vector<8x128xf32>
    %303 = arith.addf %301, %302 : vector<8x128xf32>
    %304 = math.tanh %303 : vector<8x128xf32>
    %305 = arith.mulf %300, %304 : vector<8x128xf32>
    %306 = arith.truncf %305 : vector<8x128xf32> to vector<8x128xbf16>
    %307 = arith.index_cast %275 : i32 to index
    %c0_77 = arith.constant 0 : index
    %308 = vector.load %arg16[%307, %c0_77] : memref<64x128xbf16, #tpu.memory_space<vmem>>, vector<8x128xbf16>
    tpu.vector_store %arg16[%307, %c0_77], %306 {strides = array<i32>} : memref<64x128xbf16, #tpu.memory_space<vmem>>, vector<8x128xbf16>,
    %c1_i32_78 = arith.constant 1 : i32
    %c8_i32_79 = arith.constant 8 : i32
    %309 = arith.muli %c1_i32_78, %c8_i32_79 : i32
    %310 = tpu.assume_multiple %309, 8 : i32
    %311 = arith.index_cast %310 : i32 to index
    %c0_80 = arith.constant 0 : index
    %312 = vector.load %arg15[%311, %c0_80] : memref<64x512xf32, #tpu.memory_space<vmem>>, vector<8x512xf32>
    %313 = arith.truncf %305 : vector<8x128xf32> to vector<8x128xbf16>
    %cst_81 = arith.constant dense<0.000000e+00> : vector<8x512xf32>
    %314 = tpu.matmul %313, %15, %cst_81 {dimension_numbers = #tpu.dot_dimension_numbers<[1], [0], [0], [1], [0, 0, 1, 1], [], []>} : vector<8x128xbf16>, vector<128x512xbf16>, vector<8x512xf32> -> vector<8x512xf32>
    %315 = arith.addf %312, %314 : vector<8x512xf32>
    %316 = vector.extract_strided_slice %315 {offsets = [0, 0], sizes = [8, 128], strides = [1, 1]} : vector<8x512xf32> to vector<8x128xf32>
    %317 = arith.negf %316 : vector<8x128xf32>
    %318 = math.exp %317 : vector<8x128xf32>
    %cst_82 = arith.constant 1.000000e+00 : f32
    %319 = vector.broadcast %cst_82 : f32 to vector<8x128xf32>
    %320 = arith.addf %319, %318 : vector<8x128xf32>
    %321 = arith.divf %319, %320 : vector<8x128xf32>
    %322 = vector.extract_strided_slice %315 {offsets = [0, 128], sizes = [8, 128], strides = [1, 1]} : vector<8x512xf32> to vector<8x128xf32>
    %323 = arith.negf %322 : vector<8x128xf32>
    %324 = math.exp %323 : vector<8x128xf32>
    %cst_83 = arith.constant 1.000000e+00 : f32
    %325 = vector.broadcast %cst_83 : f32 to vector<8x128xf32>
    %326 = arith.addf %325, %324 : vector<8x128xf32>
    %327 = arith.divf %325, %326 : vector<8x128xf32>
    %328 = vector.extract_strided_slice %315 {offsets = [0, 256], sizes = [8, 128], strides = [1, 1]} : vector<8x512xf32> to vector<8x128xf32>
    %329 = math.tanh %328 : vector<8x128xf32>
    %330 = vector.extract_strided_slice %315 {offsets = [0, 384], sizes = [8, 128], strides = [1, 1]} : vector<8x512xf32> to vector<8x128xf32>
    %331 = arith.negf %330 : vector<8x128xf32>
    %332 = math.exp %331 : vector<8x128xf32>
    %cst_84 = arith.constant 1.000000e+00 : f32
    %333 = vector.broadcast %cst_84 : f32 to vector<8x128xf32>
    %334 = arith.addf %333, %332 : vector<8x128xf32>
    %335 = arith.divf %333, %334 : vector<8x128xf32>
    %336 = arith.mulf %327, %303 : vector<8x128xf32>
    %337 = arith.mulf %321, %329 : vector<8x128xf32>
    %338 = arith.addf %336, %337 : vector<8x128xf32>
    %339 = math.tanh %338 : vector<8x128xf32>
    %340 = arith.mulf %335, %339 : vector<8x128xf32>
    %341 = arith.truncf %340 : vector<8x128xf32> to vector<8x128xbf16>
    %342 = arith.index_cast %310 : i32 to index
    %c0_85 = arith.constant 0 : index
    %343 = vector.load %arg16[%342, %c0_85] : memref<64x128xbf16, #tpu.memory_space<vmem>>, vector<8x128xbf16>
    tpu.vector_store %arg16[%342, %c0_85], %341 {strides = array<i32>} : memref<64x128xbf16, #tpu.memory_space<vmem>>, vector<8x128xbf16>,
    %c2_i32_86 = arith.constant 2 : i32
    %c8_i32_87 = arith.constant 8 : i32
    %344 = arith.muli %c2_i32_86, %c8_i32_87 : i32
    %345 = tpu.assume_multiple %344, 8 : i32
    %346 = arith.index_cast %345 : i32 to index
    %c0_88 = arith.constant 0 : index
    %347 = vector.load %arg15[%346, %c0_88] : memref<64x512xf32, #tpu.memory_space<vmem>>, vector<8x512xf32>
    %348 = arith.truncf %340 : vector<8x128xf32> to vector<8x128xbf16>
    %cst_89 = arith.constant dense<0.000000e+00> : vector<8x512xf32>
    %349 = tpu.matmul %348, %15, %cst_89 {dimension_numbers = #tpu.dot_dimension_numbers<[1], [0], [0], [1], [0, 0, 1, 1], [], []>} : vector<8x128xbf16>, vector<128x512xbf16>, vector<8x512xf32> -> vector<8x512xf32>
    %350 = arith.addf %347, %349 : vector<8x512xf32>
    %351 = vector.extract_strided_slice %350 {offsets = [0, 0], sizes = [8, 128], strides = [1, 1]} : vector<8x512xf32> to vector<8x128xf32>
    %352 = arith.negf %351 : vector<8x128xf32>
    %353 = math.exp %352 : vector<8x128xf32>
    %cst_90 = arith.constant 1.000000e+00 : f32
    %354 = vector.broadcast %cst_90 : f32 to vector<8x128xf32>
    %355 = arith.addf %354, %353 : vector<8x128xf32>
    %356 = arith.divf %354, %355 : vector<8x128xf32>
    %357 = vector.extract_strided_slice %350 {offsets = [0, 128], sizes = [8, 128], strides = [1, 1]} : vector<8x512xf32> to vector<8x128xf32>
    %358 = arith.negf %357 : vector<8x128xf32>
    %359 = math.exp %358 : vector<8x128xf32>
    %cst_91 = arith.constant 1.000000e+00 : f32
    %360 = vector.broadcast %cst_91 : f32 to vector<8x128xf32>
    %361 = arith.addf %360, %359 : vector<8x128xf32>
    %362 = arith.divf %360, %361 : vector<8x128xf32>
    %363 = vector.extract_strided_slice %350 {offsets = [0, 256], sizes = [8, 128], strides = [1, 1]} : vector<8x512xf32> to vector<8x128xf32>
    %364 = math.tanh %363 : vector<8x128xf32>
    %365 = vector.extract_strided_slice %350 {offsets = [0, 384], sizes = [8, 128], strides = [1, 1]} : vector<8x512xf32> to vector<8x128xf32>
    %366 = arith.negf %365 : vector<8x128xf32>
    %367 = math.exp %366 : vector<8x128xf32>
    %cst_92 = arith.constant 1.000000e+00 : f32
    %368 = vector.broadcast %cst_92 : f32 to vector<8x128xf32>
    %369 = arith.addf %368, %367 : vector<8x128xf32>
    %370 = arith.divf %368, %369 : vector<8x128xf32>
    %371 = arith.mulf %362, %338 : vector<8x128xf32>
    %372 = arith.mulf %356, %364 : vector<8x128xf32>
    %373 = arith.addf %371, %372 : vector<8x128xf32>
    %374 = math.tanh %373 : vector<8x128xf32>
    %375 = arith.mulf %370, %374 : vector<8x128xf32>
    %376 = arith.truncf %375 : vector<8x128xf32> to vector<8x128xbf16>
    %377 = arith.index_cast %345 : i32 to index
    %c0_93 = arith.constant 0 : index
    %378 = vector.load %arg16[%377, %c0_93] : memref<64x128xbf16, #tpu.memory_space<vmem>>, vector<8x128xbf16>
    tpu.vector_store %arg16[%377, %c0_93], %376 {strides = array<i32>} : memref<64x128xbf16, #tpu.memory_space<vmem>>, vector<8x128xbf16>,
    %c3_i32_94 = arith.constant 3 : i32
    %c8_i32_95 = arith.constant 8 : i32
    %379 = arith.muli %c3_i32_94, %c8_i32_95 : i32
    %380 = tpu.assume_multiple %379, 8 : i32
    %381 = arith.index_cast %380 : i32 to index
    %c0_96 = arith.constant 0 : index
    %382 = vector.load %arg15[%381, %c0_96] : memref<64x512xf32, #tpu.memory_space<vmem>>, vector<8x512xf32>
    %383 = arith.truncf %375 : vector<8x128xf32> to vector<8x128xbf16>
    %cst_97 = arith.constant dense<0.000000e+00> : vector<8x512xf32>
    %384 = tpu.matmul %383, %15, %cst_97 {dimension_numbers = #tpu.dot_dimension_numbers<[1], [0], [0], [1], [0, 0, 1, 1], [], []>} : vector<8x128xbf16>, vector<128x512xbf16>, vector<8x512xf32> -> vector<8x512xf32>
    %385 = arith.addf %382, %384 : vector<8x512xf32>
    %386 = vector.extract_strided_slice %385 {offsets = [0, 0], sizes = [8, 128], strides = [1, 1]} : vector<8x512xf32> to vector<8x128xf32>
    %387 = arith.negf %386 : vector<8x128xf32>
    %388 = math.exp %387 : vector<8x128xf32>
    %cst_98 = arith.constant 1.000000e+00 : f32
    %389 = vector.broadcast %cst_98 : f32 to vector<8x128xf32>
    %390 = arith.addf %389, %388 : vector<8x128xf32>
    %391 = arith.divf %389, %390 : vector<8x128xf32>
    %392 = vector.extract_strided_slice %385 {offsets = [0, 128], sizes = [8, 128], strides = [1, 1]} : vector<8x512xf32> to vector<8x128xf32>
    %393 = arith.negf %392 : vector<8x128xf32>
    %394 = math.exp %393 : vector<8x128xf32>
    %cst_99 = arith.constant 1.000000e+00 : f32
    %395 = vector.broadcast %cst_99 : f32 to vector<8x128xf32>
    %396 = arith.addf %395, %394 : vector<8x128xf32>
    %397 = arith.divf %395, %396 : vector<8x128xf32>
    %398 = vector.extract_strided_slice %385 {offsets = [0, 256], sizes = [8, 128], strides = [1, 1]} : vector<8x512xf32> to vector<8x128xf32>
    %399 = math.tanh %398 : vector<8x128xf32>
    %400 = vector.extract_strided_slice %385 {offsets = [0, 384], sizes = [8, 128], strides = [1, 1]} : vector<8x512xf32> to vector<8x128xf32>
    %401 = arith.negf %400 : vector<8x128xf32>
    %402 = math.exp %401 : vector<8x128xf32>
    %cst_100 = arith.constant 1.000000e+00 : f32
    %403 = vector.broadcast %cst_100 : f32 to vector<8x128xf32>
    %404 = arith.addf %403, %402 : vector<8x128xf32>
    %405 = arith.divf %403, %404 : vector<8x128xf32>
    %406 = arith.mulf %397, %373 : vector<8x128xf32>
    %407 = arith.mulf %391, %399 : vector<8x128xf32>
    %408 = arith.addf %406, %407 : vector<8x128xf32>
    %409 = math.tanh %408 : vector<8x128xf32>
    %410 = arith.mulf %405, %409 : vector<8x128xf32>
    %411 = arith.truncf %410 : vector<8x128xf32> to vector<8x128xbf16>
    %412 = arith.index_cast %380 : i32 to index
    %c0_101 = arith.constant 0 : index
    %413 = vector.load %arg16[%412, %c0_101] : memref<64x128xbf16, #tpu.memory_space<vmem>>, vector<8x128xbf16>
    tpu.vector_store %arg16[%412, %c0_101], %411 {strides = array<i32>} : memref<64x128xbf16, #tpu.memory_space<vmem>>, vector<8x128xbf16>,
    %c4_i32_102 = arith.constant 4 : i32
    %c8_i32_103 = arith.constant 8 : i32
    %414 = arith.muli %c4_i32_102, %c8_i32_103 : i32
    %415 = tpu.assume_multiple %414, 8 : i32
    %416 = arith.index_cast %415 : i32 to index
    %c0_104 = arith.constant 0 : index
    %417 = vector.load %arg15[%416, %c0_104] : memref<64x512xf32, #tpu.memory_space<vmem>>, vector<8x512xf32>
    %418 = arith.truncf %410 : vector<8x128xf32> to vector<8x128xbf16>
    %cst_105 = arith.constant dense<0.000000e+00> : vector<8x512xf32>
    %419 = tpu.matmul %418, %15, %cst_105 {dimension_numbers = #tpu.dot_dimension_numbers<[1], [0], [0], [1], [0, 0, 1, 1], [], []>} : vector<8x128xbf16>, vector<128x512xbf16>, vector<8x512xf32> -> vector<8x512xf32>
    %420 = arith.addf %417, %419 : vector<8x512xf32>
    %421 = vector.extract_strided_slice %420 {offsets = [0, 0], sizes = [8, 128], strides = [1, 1]} : vector<8x512xf32> to vector<8x128xf32>
    %422 = arith.negf %421 : vector<8x128xf32>
    %423 = math.exp %422 : vector<8x128xf32>
    %cst_106 = arith.constant 1.000000e+00 : f32
    %424 = vector.broadcast %cst_106 : f32 to vector<8x128xf32>
    %425 = arith.addf %424, %423 : vector<8x128xf32>
    %426 = arith.divf %424, %425 : vector<8x128xf32>
    %427 = vector.extract_strided_slice %420 {offsets = [0, 128], sizes = [8, 128], strides = [1, 1]} : vector<8x512xf32> to vector<8x128xf32>
    %428 = arith.negf %427 : vector<8x128xf32>
    %429 = math.exp %428 : vector<8x128xf32>
    %cst_107 = arith.constant 1.000000e+00 : f32
    %430 = vector.broadcast %cst_107 : f32 to vector<8x128xf32>
    %431 = arith.addf %430, %429 : vector<8x128xf32>
    %432 = arith.divf %430, %431 : vector<8x128xf32>
    %433 = vector.extract_strided_slice %420 {offsets = [0, 256], sizes = [8, 128], strides = [1, 1]} : vector<8x512xf32> to vector<8x128xf32>
    %434 = math.tanh %433 : vector<8x128xf32>
    %435 = vector.extract_strided_slice %420 {offsets = [0, 384], sizes = [8, 128], strides = [1, 1]} : vector<8x512xf32> to vector<8x128xf32>
    %436 = arith.negf %435 : vector<8x128xf32>
    %437 = math.exp %436 : vector<8x128xf32>
    %cst_108 = arith.constant 1.000000e+00 : f32
    %438 = vector.broadcast %cst_108 : f32 to vector<8x128xf32>
    %439 = arith.addf %438, %437 : vector<8x128xf32>
    %440 = arith.divf %438, %439 : vector<8x128xf32>
    %441 = arith.mulf %432, %408 : vector<8x128xf32>
    %442 = arith.mulf %426, %434 : vector<8x128xf32>
    %443 = arith.addf %441, %442 : vector<8x128xf32>
    %444 = math.tanh %443 : vector<8x128xf32>
    %445 = arith.mulf %440, %444 : vector<8x128xf32>
    %446 = arith.truncf %445 : vector<8x128xf32> to vector<8x128xbf16>
    %447 = arith.index_cast %415 : i32 to index
    %c0_109 = arith.constant 0 : index
    %448 = vector.load %arg16[%447, %c0_109] : memref<64x128xbf16, #tpu.memory_space<vmem>>, vector<8x128xbf16>
    tpu.vector_store %arg16[%447, %c0_109], %446 {strides = array<i32>} : memref<64x128xbf16, #tpu.memory_space<vmem>>, vector<8x128xbf16>,
    %c5_i32_110 = arith.constant 5 : i32
    %c8_i32_111 = arith.constant 8 : i32
    %449 = arith.muli %c5_i32_110, %c8_i32_111 : i32
    %450 = tpu.assume_multiple %449, 8 : i32
    %451 = arith.index_cast %450 : i32 to index
    %c0_112 = arith.constant 0 : index
    %452 = vector.load %arg15[%451, %c0_112] : memref<64x512xf32, #tpu.memory_space<vmem>>, vector<8x512xf32>
    %453 = arith.truncf %445 : vector<8x128xf32> to vector<8x128xbf16>
    %cst_113 = arith.constant dense<0.000000e+00> : vector<8x512xf32>
    %454 = tpu.matmul %453, %15, %cst_113 {dimension_numbers = #tpu.dot_dimension_numbers<[1], [0], [0], [1], [0, 0, 1, 1], [], []>} : vector<8x128xbf16>, vector<128x512xbf16>, vector<8x512xf32> -> vector<8x512xf32>
    %455 = arith.addf %452, %454 : vector<8x512xf32>
    %456 = vector.extract_strided_slice %455 {offsets = [0, 0], sizes = [8, 128], strides = [1, 1]} : vector<8x512xf32> to vector<8x128xf32>
    %457 = arith.negf %456 : vector<8x128xf32>
    %458 = math.exp %457 : vector<8x128xf32>
    %cst_114 = arith.constant 1.000000e+00 : f32
    %459 = vector.broadcast %cst_114 : f32 to vector<8x128xf32>
    %460 = arith.addf %459, %458 : vector<8x128xf32>
    %461 = arith.divf %459, %460 : vector<8x128xf32>
    %462 = vector.extract_strided_slice %455 {offsets = [0, 128], sizes = [8, 128], strides = [1, 1]} : vector<8x512xf32> to vector<8x128xf32>
    %463 = arith.negf %462 : vector<8x128xf32>
    %464 = math.exp %463 : vector<8x128xf32>
    %cst_115 = arith.constant 1.000000e+00 : f32
    %465 = vector.broadcast %cst_115 : f32 to vector<8x128xf32>
    %466 = arith.addf %465, %464 : vector<8x128xf32>
    %467 = arith.divf %465, %466 : vector<8x128xf32>
    %468 = vector.extract_strided_slice %455 {offsets = [0, 256], sizes = [8, 128], strides = [1, 1]} : vector<8x512xf32> to vector<8x128xf32>
    %469 = math.tanh %468 : vector<8x128xf32>
    %470 = vector.extract_strided_slice %455 {offsets = [0, 384], sizes = [8, 128], strides = [1, 1]} : vector<8x512xf32> to vector<8x128xf32>
    %471 = arith.negf %470 : vector<8x128xf32>
    %472 = math.exp %471 : vector<8x128xf32>
    %cst_116 = arith.constant 1.000000e+00 : f32
    %473 = vector.broadcast %cst_116 : f32 to vector<8x128xf32>
    %474 = arith.addf %473, %472 : vector<8x128xf32>
    %475 = arith.divf %473, %474 : vector<8x128xf32>
    %476 = arith.mulf %467, %443 : vector<8x128xf32>
    %477 = arith.mulf %461, %469 : vector<8x128xf32>
    %478 = arith.addf %476, %477 : vector<8x128xf32>
    %479 = math.tanh %478 : vector<8x128xf32>
    %480 = arith.mulf %475, %479 : vector<8x128xf32>
    %481 = arith.truncf %480 : vector<8x128xf32> to vector<8x128xbf16>
    %482 = arith.index_cast %450 : i32 to index
    %c0_117 = arith.constant 0 : index
    %483 = vector.load %arg16[%482, %c0_117] : memref<64x128xbf16, #tpu.memory_space<vmem>>, vector<8x128xbf16>
    tpu.vector_store %arg16[%482, %c0_117], %481 {strides = array<i32>} : memref<64x128xbf16, #tpu.memory_space<vmem>>, vector<8x128xbf16>,
    %c6_i32_118 = arith.constant 6 : i32
    %c8_i32_119 = arith.constant 8 : i32
    %484 = arith.muli %c6_i32_118, %c8_i32_119 : i32
    %485 = tpu.assume_multiple %484, 8 : i32
    %486 = arith.index_cast %485 : i32 to index
    %c0_120 = arith.constant 0 : index
    %487 = vector.load %arg15[%486, %c0_120] : memref<64x512xf32, #tpu.memory_space<vmem>>, vector<8x512xf32>
    %488 = arith.truncf %480 : vector<8x128xf32> to vector<8x128xbf16>
    %cst_121 = arith.constant dense<0.000000e+00> : vector<8x512xf32>
    %489 = tpu.matmul %488, %15, %cst_121 {dimension_numbers = #tpu.dot_dimension_numbers<[1], [0], [0], [1], [0, 0, 1, 1], [], []>} : vector<8x128xbf16>, vector<128x512xbf16>, vector<8x512xf32> -> vector<8x512xf32>
    %490 = arith.addf %487, %489 : vector<8x512xf32>
    %491 = vector.extract_strided_slice %490 {offsets = [0, 0], sizes = [8, 128], strides = [1, 1]} : vector<8x512xf32> to vector<8x128xf32>
    %492 = arith.negf %491 : vector<8x128xf32>
    %493 = math.exp %492 : vector<8x128xf32>
    %cst_122 = arith.constant 1.000000e+00 : f32
    %494 = vector.broadcast %cst_122 : f32 to vector<8x128xf32>
    %495 = arith.addf %494, %493 : vector<8x128xf32>
    %496 = arith.divf %494, %495 : vector<8x128xf32>
    %497 = vector.extract_strided_slice %490 {offsets = [0, 128], sizes = [8, 128], strides = [1, 1]} : vector<8x512xf32> to vector<8x128xf32>
    %498 = arith.negf %497 : vector<8x128xf32>
    %499 = math.exp %498 : vector<8x128xf32>
    %cst_123 = arith.constant 1.000000e+00 : f32
    %500 = vector.broadcast %cst_123 : f32 to vector<8x128xf32>
    %501 = arith.addf %500, %499 : vector<8x128xf32>
    %502 = arith.divf %500, %501 : vector<8x128xf32>
    %503 = vector.extract_strided_slice %490 {offsets = [0, 256], sizes = [8, 128], strides = [1, 1]} : vector<8x512xf32> to vector<8x128xf32>
    %504 = math.tanh %503 : vector<8x128xf32>
    %505 = vector.extract_strided_slice %490 {offsets = [0, 384], sizes = [8, 128], strides = [1, 1]} : vector<8x512xf32> to vector<8x128xf32>
    %506 = arith.negf %505 : vector<8x128xf32>
    %507 = math.exp %506 : vector<8x128xf32>
    %cst_124 = arith.constant 1.000000e+00 : f32
    %508 = vector.broadcast %cst_124 : f32 to vector<8x128xf32>
    %509 = arith.addf %508, %507 : vector<8x128xf32>
    %510 = arith.divf %508, %509 : vector<8x128xf32>
    %511 = arith.mulf %502, %478 : vector<8x128xf32>
    %512 = arith.mulf %496, %504 : vector<8x128xf32>
    %513 = arith.addf %511, %512 : vector<8x128xf32>
    %514 = math.tanh %513 : vector<8x128xf32>
    %515 = arith.mulf %510, %514 : vector<8x128xf32>
    %516 = arith.truncf %515 : vector<8x128xf32> to vector<8x128xbf16>
    %517 = arith.index_cast %485 : i32 to index
    %c0_125 = arith.constant 0 : index
    %518 = vector.load %arg16[%517, %c0_125] : memref<64x128xbf16, #tpu.memory_space<vmem>>, vector<8x128xbf16>
    tpu.vector_store %arg16[%517, %c0_125], %516 {strides = array<i32>} : memref<64x128xbf16, #tpu.memory_space<vmem>>, vector<8x128xbf16>,
    %c7_i32_126 = arith.constant 7 : i32
    %c8_i32_127 = arith.constant 8 : i32
    %519 = arith.muli %c7_i32_126, %c8_i32_127 : i32
    %520 = tpu.assume_multiple %519, 8 : i32
    %521 = arith.index_cast %520 : i32 to index
    %c0_128 = arith.constant 0 : index
    %522 = vector.load %arg15[%521, %c0_128] : memref<64x512xf32, #tpu.memory_space<vmem>>, vector<8x512xf32>
    %523 = arith.truncf %515 : vector<8x128xf32> to vector<8x128xbf16>
    %cst_129 = arith.constant dense<0.000000e+00> : vector<8x512xf32>
    %524 = tpu.matmul %523, %15, %cst_129 {dimension_numbers = #tpu.dot_dimension_numbers<[1], [0], [0], [1], [0, 0, 1, 1], [], []>} : vector<8x128xbf16>, vector<128x512xbf16>, vector<8x512xf32> -> vector<8x512xf32>
    %525 = arith.addf %522, %524 : vector<8x512xf32>
    %526 = vector.extract_strided_slice %525 {offsets = [0, 0], sizes = [8, 128], strides = [1, 1]} : vector<8x512xf32> to vector<8x128xf32>
    %527 = arith.negf %526 : vector<8x128xf32>
    %528 = math.exp %527 : vector<8x128xf32>
    %cst_130 = arith.constant 1.000000e+00 : f32
    %529 = vector.broadcast %cst_130 : f32 to vector<8x128xf32>
    %530 = arith.addf %529, %528 : vector<8x128xf32>
    %531 = arith.divf %529, %530 : vector<8x128xf32>
    %532 = vector.extract_strided_slice %525 {offsets = [0, 128], sizes = [8, 128], strides = [1, 1]} : vector<8x512xf32> to vector<8x128xf32>
    %533 = arith.negf %532 : vector<8x128xf32>
    %534 = math.exp %533 : vector<8x128xf32>
    %cst_131 = arith.constant 1.000000e+00 : f32
    %535 = vector.broadcast %cst_131 : f32 to vector<8x128xf32>
    %536 = arith.addf %535, %534 : vector<8x128xf32>
    %537 = arith.divf %535, %536 : vector<8x128xf32>
    %538 = vector.extract_strided_slice %525 {offsets = [0, 256], sizes = [8, 128], strides = [1, 1]} : vector<8x512xf32> to vector<8x128xf32>
    %539 = math.tanh %538 : vector<8x128xf32>
    %540 = vector.extract_strided_slice %525 {offsets = [0, 384], sizes = [8, 128], strides = [1, 1]} : vector<8x512xf32> to vector<8x128xf32>
    %541 = arith.negf %540 : vector<8x128xf32>
    %542 = math.exp %541 : vector<8x128xf32>
    %cst_132 = arith.constant 1.000000e+00 : f32
    %543 = vector.broadcast %cst_132 : f32 to vector<8x128xf32>
    %544 = arith.addf %543, %542 : vector<8x128xf32>
    %545 = arith.divf %543, %544 : vector<8x128xf32>
    %546 = arith.mulf %537, %513 : vector<8x128xf32>
    %547 = arith.mulf %531, %539 : vector<8x128xf32>
    %548 = arith.addf %546, %547 : vector<8x128xf32>
    %549 = math.tanh %548 : vector<8x128xf32>
    %550 = arith.mulf %545, %549 : vector<8x128xf32>
    %551 = arith.truncf %550 : vector<8x128xf32> to vector<8x128xbf16>
    %552 = arith.index_cast %520 : i32 to index
    %c0_133 = arith.constant 0 : index
    %553 = vector.load %arg16[%552, %c0_133] : memref<64x128xbf16, #tpu.memory_space<vmem>>, vector<8x128xbf16>
    tpu.vector_store %arg16[%552, %c0_133], %551 {strides = array<i32>} : memref<64x128xbf16, #tpu.memory_space<vmem>>, vector<8x128xbf16>,
    %c8_i32_134 = arith.constant 8 : i32
    %c0_135 = arith.constant 0 : index
    %c0_136 = arith.constant 0 : index
    %554 = vector.load %arg16[%c0_135, %c0_136] : memref<64x128xbf16, #tpu.memory_space<vmem>>, vector<64x128xbf16>
    %c0_137 = arith.constant 0 : index
    %c0_138 = arith.constant 0 : index
    %555 = vector.load %arg11[%c0_137, %c0_138] : memref<128x128xbf16, #tpu.memory_space<vmem>>, vector<128x128xbf16>
    %cst_139 = arith.constant dense<0.000000e+00> : vector<64x128xf32>
    %556 = tpu.matmul %554, %555, %cst_139 {dimension_numbers = #tpu.dot_dimension_numbers<[1], [0], [0], [1], [0, 0, 1, 1], [], []>} : vector<64x128xbf16>, vector<128x128xbf16>, vector<64x128xf32> -> vector<64x128xf32>
    %c0_140 = arith.constant 0 : index
    %c0_141 = arith.constant 0 : index
    %557 = vector.load %arg12[%c0_140, %c0_141] : memref<1x128xf32, #tpu.memory_space<vmem>>, vector<1x128xf32>
    %558 = vector.broadcast %557 : vector<1x128xf32> to vector<64x128xf32>
    %559 = arith.addf %556, %558 : vector<64x128xf32>
    %cst_142 = arith.constant dense<0xFF800000> : vector<64xf32>
    %560 = vector.multi_reduction <maximumf>, %559, %cst_142 [1] : vector<64x128xf32> to vector<64xf32>
    %561 = vector.shape_cast %560 : vector<64xf32> to vector<64x1xf32>
    %562 = vector.broadcast %561 : vector<64x1xf32> to vector<64x128xf32>
    %563 = arith.subf %559, %562 : vector<64x128xf32>
    %564 = math.exp %563 : vector<64x128xf32>
    %cst_143 = arith.constant dense<0.000000e+00> : vector<64xf32>
    %565 = vector.multi_reduction <add>, %564, %cst_143 [1] : vector<64x128xf32> to vector<64xf32>
    %566 = vector.shape_cast %565 : vector<64xf32> to vector<64x1xf32>
    %567 = math.log %566 : vector<64x1xf32>
    %568 = arith.addf %561, %567 : vector<64x1xf32>
    %569 = arith.extf %554 : vector<64x128xbf16> to vector<64x128xf32>
    %c0_144 = arith.constant 0 : index
    %c0_145 = arith.constant 0 : index
    %570 = vector.load %arg2[%c0_144, %c0_145] : memref<64x128xf32, #tpu.memory_space<vmem>>, vector<64x128xf32>
    %571 = arith.mulf %569, %570 : vector<64x128xf32>
    %cst_146 = arith.constant dense<0.000000e+00> : vector<64xf32>
    %572 = vector.multi_reduction <add>, %571, %cst_146 [1] : vector<64x128xf32> to vector<64xf32>
    %573 = vector.shape_cast %572 : vector<64xf32> to vector<64x1xf32>
    %c0_147 = arith.constant 0 : index
    %c0_148 = arith.constant 0 : index
    %574 = vector.load %arg3[%c0_147, %c0_148] : memref<64x1xf32, #tpu.memory_space<vmem>>, vector<64x1xf32>
    %575 = arith.addf %573, %574 : vector<64x1xf32>
    %c0_149 = arith.constant 0 : index
    %c0_150 = arith.constant 0 : index
    %576 = vector.load %arg4[%c0_149, %c0_150] : memref<64x1xf32, #tpu.memory_space<vmem>>, vector<64x1xf32>
    %577 = arith.subf %568, %575 : vector<64x1xf32>
    %578 = arith.mulf %576, %577 : vector<64x1xf32>
    %cst_151 = arith.constant dense<0.000000e+00> : vector<1xf32>
    %579 = vector.multi_reduction <add>, %578, %cst_151 [0] : vector<64x1xf32> to vector<1xf32>
    %580 = vector.shape_cast %579 : vector<1xf32> to vector<1x1xf32>
    %c0_152 = arith.constant 0 : index
    %c0_153 = arith.constant 0 : index
    %581 = vector.load %arg13[%c0_152, %c0_153] : memref<1x1xf32, #tpu.memory_space<vmem>>, vector<1x1xf32>
    tpu.vector_store %arg13[%c0_152, %c0_153], %580 {strides = array<i32>} : memref<1x1xf32, #tpu.memory_space<vmem>>, vector<1x1xf32>,
    return
  }
}

</mosaic_0001>

<llo_original>
// kernel: tpu_custom_call.1
$region0: #{tpu_custom_call.1}
  #allocation0 [shape = 'u32[]', space=smem, size = 0x4, offset = 0x4, fixed_abs, tag = 'smem constant byte address 0x4 - core index']
  #allocation1 [shape = 'u32[72,128]{1,0:T(1,128)}', space=vmem, size = 0x9000, scoped, tag = 'internal scratch']
  #allocation2 [shape = 'f32[64,512]{1,0:T(8,128)}', space=vmem, size = 0x20000, scoped, tag = 'scratch operand']
  #allocation3 [shape = 'f32[64,512]{1,0:T(8,128)}', space=vmem, size = 0x20000, scoped, tag = 'scratch operand']
  #allocation4 [shape = 'bf16[64,128]{1,0:T(8,128)(2,1)}', space=vmem, size = 0x4000, scoped, tag = 'scratch operand']
  %s0 = inlined_call_operand.vmem [shape: bf16[64,16], index: 0, kind: input, shape index: {}]
  %s1 = inlined_call_operand.vmem [shape: bf16[64,16], index: 1, kind: input, shape index: {}]
  %s2 = inlined_call_operand.vmem [shape: f32[64,128], index: 2, kind: input, shape index: {}]
  %s3 = inlined_call_operand.vmem [shape: f32[64,1], index: 3, kind: input, shape index: {}]
  %s4 = inlined_call_operand.vmem [shape: f32[64,1], index: 4, kind: input, shape index: {}]
  %s5 = inlined_call_operand.vmem [shape: bf16[16,512], index: 5, kind: input, shape index: {}]
  %s6 = inlined_call_operand.hbm [shape: bf16[128,512], index: 6, kind: input, shape index: {}]
  %s7 = inlined_call_operand.vmem [shape: f32[1,512], index: 7, kind: input, shape index: {}]
  %s8 = inlined_call_operand.vmem [shape: bf16[16,512], index: 8, kind: input, shape index: {}]
  %s9 = inlined_call_operand.hbm [shape: bf16[128,512], index: 9, kind: input, shape index: {}]
  %s10 = inlined_call_operand.vmem [shape: f32[1,512], index: 10, kind: input, shape index: {}]
  %s11 = inlined_call_operand.vmem [shape: bf16[128,128], index: 11, kind: input, shape index: {}]
  %s12 = inlined_call_operand.vmem [shape: f32[1,128], index: 12, kind: input, shape index: {}]
  %s13 = inlined_call_operand.hbm [shape: f32[1,1], index: 13, kind: output, shape index: {}]
  %s14 = sld [smem:[#allocation0]]
  $region70: #{tpu_custom_call.1} parent=0
    _
  %s16 = ssub.s32 1, %s14
  %s17 = scalar_select 0, %s16, %s14
  $region1: #{tpu_custom_call.1} parent=0
    #allocation5 [shape = 'u8[131072]{0}', space=vmem, size = 0x20000, scoped, tag = 'input window, operand 6, single buffered']
    #allocation6 [shape = 's32[1]{0}', space=sflag, size = 0x4, scoped, tag = 'scoped memory for tpu_custom_call.1']
    #allocation7 [shape = 's32[1]{0}', space=sflag, size = 0x4, scoped, tag = 'scoped memory for tpu_custom_call.1']
    #allocation8 [shape = 'u8[131072]{0}', space=vmem, size = 0x20000, scoped, tag = 'input window, operand 9, single buffered']
    #allocation9 [shape = 's32[1]{0}', space=sflag, size = 0x4, scoped, tag = 'scoped memory for tpu_custom_call.1']
    #allocation10 [shape = 'u8[512]{0}', space=vmem, size = 0x400, scoped, tag = 'output window, operand 0, single buffered']
    %18 = vsyncpa [#allocation6], 0
    %19 = vsyncpa [#allocation9], 0
    %20 = vsyncpa [#allocation7], 0
    // Predicated region
    $region2: #{tpu_custom_call.1} parent=1 // pred_check
      _
    $region3: #{tpu_custom_call.1} parent=1 // pred_check_branch
      %22 = sbr.rel (0) target = $region5
    $region4: #{tpu_custom_call.1} parent=1 // pred_region
      _
    $region5: #{tpu_custom_call.1} parent=1 // pred_fallthru
      _
    // Predicated region
    $region6: #{tpu_custom_call.1} parent=1 // pred_check
      _
    $region7: #{tpu_custom_call.1} parent=1 // pred_check_branch
      %24 = sbr.rel (0) target = $region9
    $region8: #{tpu_custom_call.1} parent=1 // pred_region
      _
    $region9: #{tpu_custom_call.1} parent=1 // pred_fallthru
      _
    // Predicated region
    $region10: #{tpu_custom_call.1} parent=1 // pred_check
      _
    $region11: #{tpu_custom_call.1} parent=1 // pred_check_branch
      %26 = sbr.rel (0) target = $region13
    $region12: #{tpu_custom_call.1} parent=1 // pred_region
      _
    $region13: #{tpu_custom_call.1} parent=1 // pred_fallthru
      _
    // Predicated region
    $region14: #{tpu_custom_call.1} parent=1 // pred_check
      _
    $region15: #{tpu_custom_call.1} parent=1 // pred_check_branch
      %28 = sbr.rel (0) target = $region17
    $region16: #{tpu_custom_call.1} parent=1 // pred_region
      _
    $region17: #{tpu_custom_call.1} parent=1 // pred_fallthru
      _
    // Predicated region
    $region18: #{tpu_custom_call.1} parent=1 // pred_check
      _
    $region19: #{tpu_custom_call.1} parent=1 // pred_check_branch
      %30 = sbr.rel (0) target = $region21
    $region20: #{tpu_custom_call.1} parent=1 // pred_region
      _
    $region21: #{tpu_custom_call.1} parent=1 // pred_fallthru
      _
    // Predicated region
    $region22: #{tpu_custom_call.1} parent=1 // pred_check
      _
    $region23: #{tpu_custom_call.1} parent=1 // pred_check_branch
      %32 = sbr.rel (0) target = $region25
    $region24: #{tpu_custom_call.1} parent=1 // pred_region
      _
    $region25: #{tpu_custom_call.1} parent=1 // pred_fallthru
      _
    // Predicated region
    $region26: #{tpu_custom_call.1} parent=1 // pred_check
      _
    $region27: #{tpu_custom_call.1} parent=1 // pred_check_branch
      %34 = sbr.rel (0) target = $region29
    $region28: #{tpu_custom_call.1} parent=1 // pred_region
      %36 = vsyncadd [#allocation6], 0
      %s37 = sshll.u32 %s6, 4
      %s38 = int_to_ptr.hbm [resolvable:$true] %s37
      %s39 = sshll.u32 [#allocation5], 4
      %s40 = int_to_ptr.vmem [resolvable:$true] %s39
      %45 = dma.hbm_to_vmem [thread:$0]  %s38, 4096, %s40, [#allocation6], 256, 256, 16
    $region29: #{tpu_custom_call.1} parent=1 // pred_fallthru
      _
    // Predicated region
    $region30: #{tpu_custom_call.1} parent=1 // pred_check
      _
    $region31: #{tpu_custom_call.1} parent=1 // pred_check_branch
      %47 = sbr.rel (0) target = $region33
    $region32: #{tpu_custom_call.1} parent=1 // pred_region
      _
    $region33: #{tpu_custom_call.1} parent=1 // pred_fallthru
      _
    // Predicated region
    $region34: #{tpu_custom_call.1} parent=1 // pred_check
      _
    $region35: #{tpu_custom_call.1} parent=1 // pred_check_branch
      %49 = sbr.rel (0) target = $region37
    $region36: #{tpu_custom_call.1} parent=1 // pred_region
      _
    $region37: #{tpu_custom_call.1} parent=1 // pred_fallthru
      _
    // Predicated region
    $region38: #{tpu_custom_call.1} parent=1 // pred_check
      _
    $region39: #{tpu_custom_call.1} parent=1 // pred_check_branch
      %51 = sbr.rel (0) target = $region41
    $region40: #{tpu_custom_call.1} parent=1 // pred_region
      %53 = vsyncadd [#allocation9], 0
      %s54 = sshll.u32 %s9, 4
      %s55 = int_to_ptr.hbm [resolvable:$true] %s54
      %s56 = sshll.u32 [#allocation8], 4
      %s57 = int_to_ptr.vmem [resolvable:$true] %s56
      %62 = dma.hbm_to_vmem [thread:$0]  %s55, 4096, %s57, [#allocation9], 256, 256, 16
    $region41: #{tpu_custom_call.1} parent=1 // pred_fallthru
      _
    // Predicated region
    $region42: #{tpu_custom_call.1} parent=1 // pred_check
      _
    $region43: #{tpu_custom_call.1} parent=1 // pred_check_branch
      %64 = sbr.rel (0) target = $region45
    $region44: #{tpu_custom_call.1} parent=1 // pred_region
      _
    $region45: #{tpu_custom_call.1} parent=1 // pred_fallthru
      _
    // Predicated region
    $region46: #{tpu_custom_call.1} parent=1 // pred_check
      _
    $region47: #{tpu_custom_call.1} parent=1 // pred_check_branch
      %66 = sbr.rel (0) target = $region49
    $region48: #{tpu_custom_call.1} parent=1 // pred_region
      _
    $region49: #{tpu_custom_call.1} parent=1 // pred_fallthru
      _
    // Predicated region
    $region50: #{tpu_custom_call.1} parent=1 // pred_check
      _
    $region51: #{tpu_custom_call.1} parent=1 // pred_check_branch
      %68 = sbr.rel (0) target = $region53
    $region52: #{tpu_custom_call.1} parent=1 // pred_region
      _
    $region53: #{tpu_custom_call.1} parent=1 // pred_fallthru
      _
    // Predicated region
    $region54: #{tpu_custom_call.1} parent=1 // pred_check
      _
    $region55: #{tpu_custom_call.1} parent=1 // pred_check_branch
      %70 = sbr.rel (0) target = $region57
    $region56: #{tpu_custom_call.1} parent=1 // pred_region
      %72 = dma.done [#allocation6], 4096
    $region57: #{tpu_custom_call.1} parent=1 // pred_fallthru
      _
    // Predicated region
    $region58: #{tpu_custom_call.1} parent=1 // pred_check
      _
    $region59: #{tpu_custom_call.1} parent=1 // pred_check_branch
      %74 = sbr.rel (0) target = $region61
    $region60: #{tpu_custom_call.1} parent=1 // pred_region
      %76 = dma.done [#allocation9], 4096
    $region61: #{tpu_custom_call.1} parent=1 // pred_fallthru
      _
    %v78 = vld [vmem:[%s0] sm:$0xf]
    %v79 = vld [vmem:[%s0 + $0x4] sm:$0xf]
    %v80 = vld [vmem:[%s0 + $0x8] sm:$0xf]
    %v81 = vld [vmem:[%s0 + $0xc] sm:$0xf]
    %v82 = vld [vmem:[%s0 + $0x10] sm:$0xf]
    %v83 = vld [vmem:[%s0 + $0x14] sm:$0xf]
    %v84 = vld [vmem:[%s0 + $0x18] sm:$0xf]
    %v85 = vld [vmem:[%s0 + $0x1c] sm:$0xf]
    %v86 = vld [vmem:[%s5] sm:$0xff]
    %v87 = vld [vmem:[%s5 + $0x8] sm:$0xff]
    %v88 = vld [vmem:[%s5 + $0x10] sm:$0xff]
    %v89 = vld [vmem:[%s5 + $0x18] sm:$0xff]
    %v90 = vld [vmem:[%s7] sm:$0xf]
    %v92 = vperm.slane %v90, 0
    %v93 = vperm.slane %v90, 1
    %v94 = vperm.slane %v90, 2
    %v95 = vperm.slane %v90, 3
    %v108 = vunpack.c.l.b16 %v78
    %v109 = vunpack.c.l.b16 %v79
    %v110 = vunpack.c.l.b16 %v80
    %v111 = vunpack.c.l.b16 %v81
    %v112 = vunpack.c.l.b16 %v82
    %v113 = vunpack.c.l.b16 %v83
    %v114 = vunpack.c.l.b16 %v84
    %v115 = vunpack.c.l.b16 %v85
    %v116 = vpack.c.b16 %v109, %v108
    %v117 = vpack.c.b16 %v111, %v110
    %v118 = vpack.c.b16 %v113, %v112
    %v119 = vpack.c.b16 %v115, %v114
    %v124 = vunpack.c.l.b16 %v86
    %v125 = vunpack.c.h.b16 %v86
    %v126 = vunpack.c.l.b16 %v87
    %v127 = vunpack.c.h.b16 %v87
    %v128 = vunpack.c.l.b16 %v88
    %v129 = vunpack.c.h.b16 %v88
    %v130 = vunpack.c.l.b16 %v89
    %v131 = vunpack.c.h.b16 %v89
    %v132 = vpack.c.b16 %v128, %v124
    %v133 = vpack.c.b16 %v129, %v125
    %v134 = vpack.c.b16 %v130, %v126
    %v135 = vpack.c.b16 %v131, %v127
    %vm140 = vcmask 130048
    %v142 = vsel %vm140, %v116, 0
    %v145 = vsel %vm140, %v117, 0
    %v148 = vsel %vm140, %v118, 0
    %v151 = vsel %vm140, %v119, 0
    %153 = vmatpush.bf16.msra.mxu0 0
    %154 = vmatpush.bf16.msra.mxu0 0
    %155 = vmatpush.bf16.msra.mxu0 0
    %156 = vmatpush.bf16.msra.mxu0 0
    %157 = vmatpush.bf16.msra.mxu0 0
    %158 = vmatpush.bf16.msra.mxu0 0
    %159 = vmatpush.bf16.msra.mxu0 0
    %160 = vmatpush.bf16.msra.mxu0 %v132
    %161 = vmatmul.bf16.gmra.mxu0 %v142
    %v162 = vpop.f32.mrf.mxu0
    %v163 = vadd.f32 %v92, %v162
    %v164 = vpop.f32.mrf.mxu0
    %v165 = vadd.f32 %v92, %v164
    %166 = vmatmul.bf16.gmra.mxu0 %v145
    %v167 = vpop.f32.mrf.mxu0
    %v168 = vadd.f32 %v92, %v167
    %v169 = vpop.f32.mrf.mxu0
    %v170 = vadd.f32 %v92, %v169
    %171 = vmatmul.bf16.gmra.mxu0 %v148
    %v172 = vpop.f32.mrf.mxu0
    %v173 = vadd.f32 %v92, %v172
    %v174 = vpop.f32.mrf.mxu0
    %v175 = vadd.f32 %v92, %v174
    %176 = vmatmul.bf16.gmra.mxu0 %v151
    %v177 = vpop.f32.mrf.mxu0
    %v178 = vadd.f32 %v92, %v177
    %v179 = vpop.f32.mrf.mxu0
    %v180 = vadd.f32 %v92, %v179
    %181 = vdwg.mxu0
    %182 = vmatpush.bf16.msra.mxu0 0
    %183 = vmatpush.bf16.msra.mxu0 0
    %184 = vmatpush.bf16.msra.mxu0 0
    %185 = vmatpush.bf16.msra.mxu0 0
    %186 = vmatpush.bf16.msra.mxu0 0
    %187 = vmatpush.bf16.msra.mxu0 0
    %188 = vmatpush.bf16.msra.mxu0 0
    %189 = vmatpush.bf16.msra.mxu0 %v133
    %190 = vmatmul.bf16.gmra.mxu0 %v142
    %v191 = vpop.f32.mrf.mxu0
    %v192 = vadd.f32 %v93, %v191
    %v193 = vpop.f32.mrf.mxu0
    %v194 = vadd.f32 %v93, %v193
    %195 = vmatmul.bf16.gmra.mxu0 %v145
    %v196 = vpop.f32.mrf.mxu0
    %v197 = vadd.f32 %v93, %v196
    %v198 = vpop.f32.mrf.mxu0
    %v199 = vadd.f32 %v93, %v198
    %200 = vmatmul.bf16.gmra.mxu0 %v148
    %v201 = vpop.f32.mrf.mxu0
    %v202 = vadd.f32 %v93, %v201
    %v203 = vpop.f32.mrf.mxu0
    %v204 = vadd.f32 %v93, %v203
    %205 = vmatmul.bf16.gmra.mxu0 %v151
    %v206 = vpop.f32.mrf.mxu0
    %v207 = vadd.f32 %v93, %v206
    %v208 = vpop.f32.mrf.mxu0
    %v209 = vadd.f32 %v93, %v208
    %210 = vdwg.mxu0
    %211 = vmatpush.bf16.msra.mxu0 0
    %212 = vmatpush.bf16.msra.mxu0 0
    %213 = vmatpush.bf16.msra.mxu0 0
    %214 = vmatpush.bf16.msra.mxu0 0
    %215 = vmatpush.bf16.msra.mxu0 0
    %216 = vmatpush.bf16.msra.mxu0 0
    %217 = vmatpush.bf16.msra.mxu0 0
    %218 = vmatpush.bf16.msra.mxu0 %v134
    %219 = vmatmul.bf16.gmra.mxu0 %v142
    %v220 = vpop.f32.mrf.mxu0
    %v221 = vadd.f32 %v94, %v220
    %v222 = vpop.f32.mrf.mxu0
    %v223 = vadd.f32 %v94, %v222
    %224 = vmatmul.bf16.gmra.mxu0 %v145
    %v225 = vpop.f32.mrf.mxu0
    %v226 = vadd.f32 %v94, %v225
    %v227 = vpop.f32.mrf.mxu0
    %v228 = vadd.f32 %v94, %v227
    %229 = vmatmul.bf16.gmra.mxu0 %v148
    %v230 = vpop.f32.mrf.mxu0
    %v231 = vadd.f32 %v94, %v230
    %v232 = vpop.f32.mrf.mxu0
    %v233 = vadd.f32 %v94, %v232
    %234 = vmatmul.bf16.gmra.mxu0 %v151
    %v235 = vpop.f32.mrf.mxu0
    %v236 = vadd.f32 %v94, %v235
    %v237 = vpop.f32.mrf.mxu0
    %v238 = vadd.f32 %v94, %v237
    %239 = vdwg.mxu0
    %240 = vmatpush.bf16.msra.mxu0 0
    %241 = vmatpush.bf16.msra.mxu0 0
    %242 = vmatpush.bf16.msra.mxu0 0
    %243 = vmatpush.bf16.msra.mxu0 0
    %244 = vmatpush.bf16.msra.mxu0 0
    %245 = vmatpush.bf16.msra.mxu0 0
    %246 = vmatpush.bf16.msra.mxu0 0
    %247 = vmatpush.bf16.msra.mxu0 %v135
    %248 = vmatmul.bf16.gmra.mxu0 %v142
    %v249 = vpop.f32.mrf.mxu0
    %v250 = vadd.f32 %v95, %v249
    %v251 = vpop.f32.mrf.mxu0
    %v252 = vadd.f32 %v95, %v251
    %253 = vmatmul.bf16.gmra.mxu0 %v145
    %v254 = vpop.f32.mrf.mxu0
    %v255 = vadd.f32 %v95, %v254
    %v256 = vpop.f32.mrf.mxu0
    %v257 = vadd.f32 %v95, %v256
    %258 = vmatmul.bf16.gmra.mxu0 %v148
    %v259 = vpop.f32.mrf.mxu0
    %v260 = vadd.f32 %v95, %v259
    %v261 = vpop.f32.mrf.mxu0
    %v262 = vadd.f32 %v95, %v261
    %263 = vmatmul.bf16.gmra.mxu0 %v151
    %v264 = vpop.f32.mrf.mxu0
    %v265 = vadd.f32 %v95, %v264
    %v266 = vpop.f32.mrf.mxu0
    %v267 = vadd.f32 %v95, %v266
    %268 = vdwg.mxu0
    %269 = vst [vmem:[#allocation2] sm:$0xff] %v163
    %270 = vst [vmem:[#allocation2 + $0x8] sm:$0xff] %v192
    %271 = vst [vmem:[#allocation2 + $0x10] sm:$0xff] %v221
    %272 = vst [vmem:[#allocation2 + $0x18] sm:$0xff] %v250
    %273 = vst [vmem:[#allocation2 + $0x20] sm:$0xff] %v165
    %274 = vst [vmem:[#allocation2 + $0x28] sm:$0xff] %v194
    %275 = vst [vmem:[#allocation2 + $0x30] sm:$0xff] %v223
    %276 = vst [vmem:[#allocation2 + $0x38] sm:$0xff] %v252
    %277 = vst [vmem:[#allocation2 + $0x40] sm:$0xff] %v168
    %278 = vst [vmem:[#allocation2 + $0x48] sm:$0xff] %v197
    %279 = vst [vmem:[#allocation2 + $0x50] sm:$0xff] %v226
    %280 = vst [vmem:[#allocation2 + $0x58] sm:$0xff] %v255
    %281 = vst [vmem:[#allocation2 + $0x60] sm:$0xff] %v170
    %282 = vst [vmem:[#allocation2 + $0x68] sm:$0xff] %v199
    %283 = vst [vmem:[#allocation2 + $0x70] sm:$0xff] %v228
    %284 = vst [vmem:[#allocation2 + $0x78] sm:$0xff] %v257
    %285 = vst [vmem:[#allocation2 + $0x80] sm:$0xff] %v173
    %286 = vst [vmem:[#allocation2 + $0x88] sm:$0xff] %v202
    %287 = vst [vmem:[#allocation2 + $0x90] sm:$0xff] %v231
    %288 = vst [vmem:[#allocation2 + $0x98] sm:$0xff] %v260
    %289 = vst [vmem:[#allocation2 + $0xa0] sm:$0xff] %v175
    %290 = vst [vmem:[#allocation2 + $0xa8] sm:$0xff] %v204
    %291 = vst [vmem:[#allocation2 + $0xb0] sm:$0xff] %v233
    %292 = vst [vmem:[#allocation2 + $0xb8] sm:$0xff] %v262
    %293 = vst [vmem:[#allocation2 + $0xc0] sm:$0xff] %v178
    %294 = vst [vmem:[#allocation2 + $0xc8] sm:$0xff] %v207
    %295 = vst [vmem:[#allocation2 + $0xd0] sm:$0xff] %v236
    %296 = vst [vmem:[#allocation2 + $0xd8] sm:$0xff] %v265
    %297 = vst [vmem:[#allocation2 + $0xe0] sm:$0xff] %v180
    %298 = vst [vmem:[#allocation2 + $0xe8] sm:$0xff] %v209
    %299 = vst [vmem:[#allocation2 + $0xf0] sm:$0xff] %v238
    %300 = vst [vmem:[#allocation2 + $0xf8] sm:$0xff] %v267
    %v301 = vld [vmem:[%s1] sm:$0xf]
    %v302 = vld [vmem:[%s1 + $0x4] sm:$0xf]
    %v303 = vld [vmem:[%s1 + $0x8] sm:$0xf]
    %v304 = vld [vmem:[%s1 + $0xc] sm:$0xf]
    %v305 = vld [vmem:[%s1 + $0x10] sm:$0xf]
    %v306 = vld [vmem:[%s1 + $0x14] sm:$0xf]
    %v307 = vld [vmem:[%s1 + $0x18] sm:$0xf]
    %v308 = vld [vmem:[%s1 + $0x1c] sm:$0xf]
    %v309 = vld [vmem:[%s8] sm:$0xff]
    %v310 = vld [vmem:[%s8 + $0x8] sm:$0xff]
    %v311 = vld [vmem:[%s8 + $0x10] sm:$0xff]
    %v312 = vld [vmem:[%s8 + $0x18] sm:$0xff]
    %v313 = vld [vmem:[%s10] sm:$0xf]
    %v315 = vperm.slane %v313, 0
    %v316 = vperm.slane %v313, 1
    %v317 = vperm.slane %v313, 2
    %v318 = vperm.slane %v313, 3
    %v331 = vunpack.c.l.b16 %v301
    %v332 = vunpack.c.l.b16 %v302
    %v333 = vunpack.c.l.b16 %v303
    %v334 = vunpack.c.l.b16 %v304
    %v335 = vunpack.c.l.b16 %v305
    %v336 = vunpack.c.l.b16 %v306
    %v337 = vunpack.c.l.b16 %v307
    %v338 = vunpack.c.l.b16 %v308
    %v339 = vpack.c.b16 %v332, %v331
    %v340 = vpack.c.b16 %v334, %v333
    %v341 = vpack.c.b16 %v336, %v335
    %v342 = vpack.c.b16 %v338, %v337
    %v347 = vunpack.c.l.b16 %v309
    %v348 = vunpack.c.h.b16 %v309
    %v349 = vunpack.c.l.b16 %v310
    %v350 = vunpack.c.h.b16 %v310
    %v351 = vunpack.c.l.b16 %v311
    %v352 = vunpack.c.h.b16 %v311
    %v353 = vunpack.c.l.b16 %v312
    %v354 = vunpack.c.h.b16 %v312
    %v355 = vpack.c.b16 %v351, %v347
    %v356 = vpack.c.b16 %v352, %v348
    %v357 = vpack.c.b16 %v353, %v349
    %v358 = vpack.c.b16 %v354, %v350
    %v364 = vsel %vm140, %v339, 0
    %v367 = vsel %vm140, %v340, 0
    %v370 = vsel %vm140, %v341, 0
    %v373 = vsel %vm140, %v342, 0
    %375 = vmatpush.bf16.msra.mxu0 0
    %376 = vmatpush.bf16.msra.mxu0 0
    %377 = vmatpush.bf16.msra.mxu0 0
    %378 = vmatpush.bf16.msra.mxu0 0
    %379 = vmatpush.bf16.msra.mxu0 0
    %380 = vmatpush.bf16.msra.mxu0 0
    %381 = vmatpush.bf16.msra.mxu0 0
    %382 = vmatpush.bf16.msra.mxu0 %v355
    %383 = vmatmul.bf16.gmra.mxu0 %v364
    %v384 = vpop.f32.mrf.mxu0
    %v385 = vadd.f32 %v315, %v384
    %v386 = vpop.f32.mrf.mxu0
    %v387 = vadd.f32 %v315, %v386
    %388 = vmatmul.bf16.gmra.mxu0 %v367
    %v389 = vpop.f32.mrf.mxu0
    %v390 = vadd.f32 %v315, %v389
    %v391 = vpop.f32.mrf.mxu0
    %v392 = vadd.f32 %v315, %v391
    %393 = vmatmul.bf16.gmra.mxu0 %v370
    %v394 = vpop.f32.mrf.mxu0
    %v395 = vadd.f32 %v315, %v394
    %v396 = vpop.f32.mrf.mxu0
    %v397 = vadd.f32 %v315, %v396
    %398 = vmatmul.bf16.gmra.mxu0 %v373
    %v399 = vpop.f32.mrf.mxu0
    %v400 = vadd.f32 %v315, %v399
    %v401 = vpop.f32.mrf.mxu0
    %v402 = vadd.f32 %v315, %v401
    %403 = vdwg.mxu0
    %404 = vmatpush.bf16.msra.mxu0 0
    %405 = vmatpush.bf16.msra.mxu0 0
    %406 = vmatpush.bf16.msra.mxu0 0
    %407 = vmatpush.bf16.msra.mxu0 0
    %408 = vmatpush.bf16.msra.mxu0 0
    %409 = vmatpush.bf16.msra.mxu0 0
    %410 = vmatpush.bf16.msra.mxu0 0
    %411 = vmatpush.bf16.msra.mxu0 %v356
    %412 = vmatmul.bf16.gmra.mxu0 %v364
    %v413 = vpop.f32.mrf.mxu0
    %v414 = vadd.f32 %v316, %v413
    %v415 = vpop.f32.mrf.mxu0
    %v416 = vadd.f32 %v316, %v415
    %417 = vmatmul.bf16.gmra.mxu0 %v367
    %v418 = vpop.f32.mrf.mxu0
    %v419 = vadd.f32 %v316, %v418
    %v420 = vpop.f32.mrf.mxu0
    %v421 = vadd.f32 %v316, %v420
    %422 = vmatmul.bf16.gmra.mxu0 %v370
    %v423 = vpop.f32.mrf.mxu0
    %v424 = vadd.f32 %v316, %v423
    %v425 = vpop.f32.mrf.mxu0
    %v426 = vadd.f32 %v316, %v425
    %427 = vmatmul.bf16.gmra.mxu0 %v373
    %v428 = vpop.f32.mrf.mxu0
    %v429 = vadd.f32 %v316, %v428
    %v430 = vpop.f32.mrf.mxu0
    %v431 = vadd.f32 %v316, %v430
    %432 = vdwg.mxu0
    %433 = vmatpush.bf16.msra.mxu0 0
    %434 = vmatpush.bf16.msra.mxu0 0
    %435 = vmatpush.bf16.msra.mxu0 0
    %436 = vmatpush.bf16.msra.mxu0 0
    %437 = vmatpush.bf16.msra.mxu0 0
    %438 = vmatpush.bf16.msra.mxu0 0
    %439 = vmatpush.bf16.msra.mxu0 0
    %440 = vmatpush.bf16.msra.mxu0 %v357
    %441 = vmatmul.bf16.gmra.mxu0 %v364
    %v442 = vpop.f32.mrf.mxu0
    %v443 = vadd.f32 %v317, %v442
    %v444 = vpop.f32.mrf.mxu0
    %v445 = vadd.f32 %v317, %v444
    %446 = vmatmul.bf16.gmra.mxu0 %v367
    %v447 = vpop.f32.mrf.mxu0
    %v448 = vadd.f32 %v317, %v447
    %v449 = vpop.f32.mrf.mxu0
    %v450 = vadd.f32 %v317, %v449
    %451 = vmatmul.bf16.gmra.mxu0 %v370
    %v452 = vpop.f32.mrf.mxu0
    %v453 = vadd.f32 %v317, %v452
    %v454 = vpop.f32.mrf.mxu0
    %v455 = vadd.f32 %v317, %v454
    %456 = vmatmul.bf16.gmra.mxu0 %v373
    %v457 = vpop.f32.mrf.mxu0
    %v458 = vadd.f32 %v317, %v457
    %v459 = vpop.f32.mrf.mxu0
    %v460 = vadd.f32 %v317, %v459
    %461 = vdwg.mxu0
    %462 = vmatpush.bf16.msra.mxu0 0
    %463 = vmatpush.bf16.msra.mxu0 0
    %464 = vmatpush.bf16.msra.mxu0 0
    %465 = vmatpush.bf16.msra.mxu0 0
    %466 = vmatpush.bf16.msra.mxu0 0
    %467 = vmatpush.bf16.msra.mxu0 0
    %468 = vmatpush.bf16.msra.mxu0 0
    %469 = vmatpush.bf16.msra.mxu0 %v358
    %470 = vmatmul.bf16.gmra.mxu0 %v364
    %v471 = vpop.f32.mrf.mxu0
    %v472 = vadd.f32 %v318, %v471
    %v473 = vpop.f32.mrf.mxu0
    %v474 = vadd.f32 %v318, %v473
    %475 = vmatmul.bf16.gmra.mxu0 %v367
    %v476 = vpop.f32.mrf.mxu0
    %v477 = vadd.f32 %v318, %v476
    %v478 = vpop.f32.mrf.mxu0
    %v479 = vadd.f32 %v318, %v478
    %480 = vmatmul.bf16.gmra.mxu0 %v370
    %v481 = vpop.f32.mrf.mxu0
    %v482 = vadd.f32 %v318, %v481
    %v483 = vpop.f32.mrf.mxu0
    %v484 = vadd.f32 %v318, %v483
    %485 = vmatmul.bf16.gmra.mxu0 %v373
    %v486 = vpop.f32.mrf.mxu0
    %v487 = vadd.f32 %v318, %v486
    %v488 = vpop.f32.mrf.mxu0
    %v489 = vadd.f32 %v318, %v488
    %490 = vdwg.mxu0
    %491 = vst [vmem:[#allocation3] sm:$0xff] %v385
    %492 = vst [vmem:[#allocation3 + $0x8] sm:$0xff] %v414
    %493 = vst [vmem:[#allocation3 + $0x10] sm:$0xff] %v443
    %494 = vst [vmem:[#allocation3 + $0x18] sm:$0xff] %v472
    %495 = vst [vmem:[#allocation3 + $0x20] sm:$0xff] %v387
    %496 = vst [vmem:[#allocation3 + $0x28] sm:$0xff] %v416
    %497 = vst [vmem:[#allocation3 + $0x30] sm:$0xff] %v445
    %498 = vst [vmem:[#allocation3 + $0x38] sm:$0xff] %v474
    %499 = vst [vmem:[#allocation3 + $0x40] sm:$0xff] %v390
    %500 = vst [vmem:[#allocation3 + $0x48] sm:$0xff] %v419
    %501 = vst [vmem:[#allocation3 + $0x50] sm:$0xff] %v448
    %502 = vst [vmem:[#allocation3 + $0x58] sm:$0xff] %v477
    %503 = vst [vmem:[#allocation3 + $0x60] sm:$0xff] %v392
    %504 = vst [vmem:[#allocation3 + $0x68] sm:$0xff] %v421
    %505 = vst [vmem:[#allocation3 + $0x70] sm:$0xff] %v450
    %506 = vst [vmem:[#allocation3 + $0x78] sm:$0xff] %v479
    %507 = vst [vmem:[#allocation3 + $0x80] sm:$0xff] %v395
    %508 = vst [vmem:[#allocation3 + $0x88] sm:$0xff] %v424
    %509 = vst [vmem:[#allocation3 + $0x90] sm:$0xff] %v453
    %510 = vst [vmem:[#allocation3 + $0x98] sm:$0xff] %v482
    %511 = vst [vmem:[#allocation3 + $0xa0] sm:$0xff] %v397
    %512 = vst [vmem:[#allocation3 + $0xa8] sm:$0xff] %v426
    %513 = vst [vmem:[#allocation3 + $0xb0] sm:$0xff] %v455
    %514 = vst [vmem:[#allocation3 + $0xb8] sm:$0xff] %v484
    %515 = vst [vmem:[#allocation3 + $0xc0] sm:$0xff] %v400
    %516 = vst [vmem:[#allocation3 + $0xc8] sm:$0xff] %v429
    %517 = vst [vmem:[#allocation3 + $0xd0] sm:$0xff] %v458
    %518 = vst [vmem:[#allocation3 + $0xd8] sm:$0xff] %v487
    %519 = vst [vmem:[#allocation3 + $0xe0] sm:$0xff] %v402
    %520 = vst [vmem:[#allocation3 + $0xe8] sm:$0xff] %v431
    %521 = vst [vmem:[#allocation3 + $0xf0] sm:$0xff] %v460
    %522 = vst [vmem:[#allocation3 + $0xf8] sm:$0xff] %v489
    %v523 = vld [vmem:[#allocation5] sm:$0xff]
    %v524 = vld [vmem:[#allocation5 + $0x8] sm:$0xff]
    %v525 = vld [vmem:[#allocation5 + $0x10] sm:$0xff]
    %v526 = vld [vmem:[#allocation5 + $0x18] sm:$0xff]
    %v527 = vld [vmem:[#allocation5 + $0x20] sm:$0xff]
    %v528 = vld [vmem:[#allocation5 + $0x28] sm:$0xff]
    %v529 = vld [vmem:[#allocation5 + $0x30] sm:$0xff]
    %v530 = vld [vmem:[#allocation5 + $0x38] sm:$0xff]
    %v531 = vld [vmem:[#allocation5 + $0x40] sm:$0xff]
    %v532 = vld [vmem:[#allocation5 + $0x48] sm:$0xff]
    %v533 = vld [vmem:[#allocation5 + $0x50] sm:$0xff]
    %v534 = vld [vmem:[#allocation5 + $0x58] sm:$0xff]
    %v535 = vld [vmem:[#allocation5 + $0x60] sm:$0xff]
    %v536 = vld [vmem:[#allocation5 + $0x68] sm:$0xff]
    %v537 = vld [vmem:[#allocation5 + $0x70] sm:$0xff]
    %v538 = vld [vmem:[#allocation5 + $0x78] sm:$0xff]
    %v539 = vld [vmem:[#allocation5 + $0x80] sm:$0xff]
    %v540 = vld [vmem:[#allocation5 + $0x88] sm:$0xff]
    %v541 = vld [vmem:[#allocation5 + $0x90] sm:$0xff]
    %v542 = vld [vmem:[#allocation5 + $0x98] sm:$0xff]
    %v543 = vld [vmem:[#allocation5 + $0xa0] sm:$0xff]
    %v544 = vld [vmem:[#allocation5 + $0xa8] sm:$0xff]
    %v545 = vld [vmem:[#allocation5 + $0xb0] sm:$0xff]
    %v546 = vld [vmem:[#allocation5 + $0xb8] sm:$0xff]
    %v547 = vld [vmem:[#allocation5 + $0xc0] sm:$0xff]
    %v548 = vld [vmem:[#allocation5 + $0xc8] sm:$0xff]
    %v549 = vld [vmem:[#allocation5 + $0xd0] sm:$0xff]
    %v550 = vld [vmem:[#allocation5 + $0xd8] sm:$0xff]
    %v551 = vld [vmem:[#allocation5 + $0xe0] sm:$0xff]
    %v552 = vld [vmem:[#allocation5 + $0xe8] sm:$0xff]
    %v553 = vld [vmem:[#allocation5 + $0xf0] sm:$0xff]
    %v554 = vld [vmem:[#allocation5 + $0xf8] sm:$0xff]
    %v555 = vld [vmem:[#allocation8] sm:$0xff]
    %v556 = vld [vmem:[#allocation8 + $0x8] sm:$0xff]
    %v557 = vld [vmem:[#allocation8 + $0x10] sm:$0xff]
    %v558 = vld [vmem:[#allocation8 + $0x18] sm:$0xff]
    %v559 = vld [vmem:[#allocation8 + $0x20] sm:$0xff]
    %v560 = vld [vmem:[#allocation8 + $0x28] sm:$0xff]
    %v561 = vld [vmem:[#allocation8 + $0x30] sm:$0xff]
    %v562 = vld [vmem:[#allocation8 + $0x38] sm:$0xff]
    %v563 = vld [vmem:[#allocation8 + $0x40] sm:$0xff]
    %v564 = vld [vmem:[#allocation8 + $0x48] sm:$0xff]
    %v565 = vld [vmem:[#allocation8 + $0x50] sm:$0xff]
    %v566 = vld [vmem:[#allocation8 + $0x58] sm:$0xff]
    %v567 = vld [vmem:[#allocation8 + $0x60] sm:$0xff]
    %v568 = vld [vmem:[#allocation8 + $0x68] sm:$0xff]
    %v569 = vld [vmem:[#allocation8 + $0x70] sm:$0xff]
    %v570 = vld [vmem:[#allocation8 + $0x78] sm:$0xff]
    %v571 = vld [vmem:[#allocation8 + $0x80] sm:$0xff]
    %v572 = vld [vmem:[#allocation8 + $0x88] sm:$0xff]
    %v573 = vld [vmem:[#allocation8 + $0x90] sm:$0xff]
    %v574 = vld [vmem:[#allocation8 + $0x98] sm:$0xff]
    %v575 = vld [vmem:[#allocation8 + $0xa0] sm:$0xff]
    %v576 = vld [vmem:[#allocation8 + $0xa8] sm:$0xff]
    %v577 = vld [vmem:[#allocation8 + $0xb0] sm:$0xff]
    %v578 = vld [vmem:[#allocation8 + $0xb8] sm:$0xff]
    %v579 = vld [vmem:[#allocation8 + $0xc0] sm:$0xff]
    %v580 = vld [vmem:[#allocation8 + $0xc8] sm:$0xff]
    %v581 = vld [vmem:[#allocation8 + $0xd0] sm:$0xff]
    %v582 = vld [vmem:[#allocation8 + $0xd8] sm:$0xff]
    %v583 = vld [vmem:[#allocation8 + $0xe0] sm:$0xff]
    %v584 = vld [vmem:[#allocation8 + $0xe8] sm:$0xff]
    %v585 = vld [vmem:[#allocation8 + $0xf0] sm:$0xff]
    %v586 = vld [vmem:[#allocation8 + $0xf8] sm:$0xff]
    %s587 = smul.u32 0, 4
    %s588 = smul.addr %s587, 8
    %s589 = scalar_lea.vmem [#allocation2], %s588
    %v590 = vld [vmem:[%s589] sm:$0xff]
    %v591 = vld [vmem:[%s589 + $0x8] sm:$0xff]
    %v592 = vld [vmem:[%s589 + $0x10] sm:$0xff]
    %v593 = vld [vmem:[%s589 + $0x18] sm:$0xff]
    %v626 = vunpack.c.l.b16 %v523
    %v627 = vunpack.c.h.b16 %v523
    %v628 = vunpack.c.l.b16 %v524
    %v629 = vunpack.c.h.b16 %v524
    %v630 = vunpack.c.l.b16 %v525
    %v631 = vunpack.c.h.b16 %v525
    %v632 = vunpack.c.l.b16 %v526
    %v633 = vunpack.c.h.b16 %v526
    %v634 = vunpack.c.l.b16 %v527
    %v635 = vunpack.c.h.b16 %v527
    %v636 = vunpack.c.l.b16 %v528
    %v637 = vunpack.c.h.b16 %v528
    %v638 = vunpack.c.l.b16 %v529
    %v639 = vunpack.c.h.b16 %v529
    %v640 = vunpack.c.l.b16 %v530
    %v641 = vunpack.c.h.b16 %v530
    %v642 = vunpack.c.l.b16 %v531
    %v643 = vunpack.c.h.b16 %v531
    %v644 = vunpack.c.l.b16 %v532
    %v645 = vunpack.c.h.b16 %v532
    %v646 = vunpack.c.l.b16 %v533
    %v647 = vunpack.c.h.b16 %v533
    %v648 = vunpack.c.l.b16 %v534
    %v649 = vunpack.c.h.b16 %v534
    %v650 = vunpack.c.l.b16 %v535
    %v651 = vunpack.c.h.b16 %v535
    %v652 = vunpack.c.l.b16 %v536
    %v653 = vunpack.c.h.b16 %v536
    %v654 = vunpack.c.l.b16 %v537
    %v655 = vunpack.c.h.b16 %v537
    %v656 = vunpack.c.l.b16 %v538
    %v657 = vunpack.c.h.b16 %v538
    %v658 = vunpack.c.l.b16 %v539
    %v659 = vunpack.c.h.b16 %v539
    %v660 = vunpack.c.l.b16 %v540
    %v661 = vunpack.c.h.b16 %v540
    %v662 = vunpack.c.l.b16 %v541
    %v663 = vunpack.c.h.b16 %v541
    %v664 = vunpack.c.l.b16 %v542
    %v665 = vunpack.c.h.b16 %v542
    %v666 = vunpack.c.l.b16 %v543
    %v667 = vunpack.c.h.b16 %v543
    %v668 = vunpack.c.l.b16 %v544
    %v669 = vunpack.c.h.b16 %v544
    %v670 = vunpack.c.l.b16 %v545
    %v671 = vunpack.c.h.b16 %v545
    %v672 = vunpack.c.l.b16 %v546
    %v673 = vunpack.c.h.b16 %v546
    %v674 = vunpack.c.l.b16 %v547
    %v675 = vunpack.c.h.b16 %v547
    %v676 = vunpack.c.l.b16 %v548
    %v677 = vunpack.c.h.b16 %v548
    %v678 = vunpack.c.l.b16 %v549
    %v679 = vunpack.c.h.b16 %v549
    %v680 = vunpack.c.l.b16 %v550
    %v681 = vunpack.c.h.b16 %v550
    %v682 = vunpack.c.l.b16 %v551
    %v683 = vunpack.c.h.b16 %v551
    %v684 = vunpack.c.l.b16 %v552
    %v685 = vunpack.c.h.b16 %v552
    %v686 = vunpack.c.l.b16 %v553
    %v687 = vunpack.c.h.b16 %v553
    %v688 = vunpack.c.l.b16 %v554
    %v689 = vunpack.c.h.b16 %v554
    %v690 = vpack.c.b16 %v630, %v626
    %v691 = vpack.c.b16 %v631, %v627
    %v692 = vpack.c.b16 %v632, %v628
    %v693 = vpack.c.b16 %v633, %v629
    %v694 = vpack.c.b16 %v638, %v634
    %v695 = vpack.c.b16 %v639, %v635
    %v696 = vpack.c.b16 %v640, %v636
    %v697 = vpack.c.b16 %v641, %v637
    %v698 = vpack.c.b16 %v646, %v642
    %v699 = vpack.c.b16 %v647, %v643
    %v700 = vpack.c.b16 %v648, %v644
    %v701 = vpack.c.b16 %v649, %v645
    %v702 = vpack.c.b16 %v654, %v650
    %v703 = vpack.c.b16 %v655, %v651
    %v704 = vpack.c.b16 %v656, %v652
    %v705 = vpack.c.b16 %v657, %v653
    %v706 = vpack.c.b16 %v662, %v658
    %v707 = vpack.c.b16 %v663, %v659
    %v708 = vpack.c.b16 %v664, %v660
    %v709 = vpack.c.b16 %v665, %v661
    %v710 = vpack.c.b16 %v670, %v666
    %v711 = vpack.c.b16 %v671, %v667
    %v712 = vpack.c.b16 %v672, %v668
    %v713 = vpack.c.b16 %v673, %v669
    %v714 = vpack.c.b16 %v678, %v674
    %v715 = vpack.c.b16 %v679, %v675
    %v716 = vpack.c.b16 %v680, %v676
    %v717 = vpack.c.b16 %v681, %v677
    %v718 = vpack.c.b16 %v686, %v682
    %v719 = vpack.c.b16 %v687, %v683
    %v720 = vpack.c.b16 %v688, %v684
    %v721 = vpack.c.b16 %v689, %v685
    %754 = vmatpush.bf16.msra.mxu0 %v718
    %755 = vmatpush.bf16.msra.mxu0 %v714
    %756 = vmatpush.bf16.msra.mxu0 %v710
    %757 = vmatpush.bf16.msra.mxu0 %v706
    %758 = vmatpush.bf16.msra.mxu0 %v702
    %759 = vmatpush.bf16.msra.mxu0 %v698
    %760 = vmatpush.bf16.msra.mxu0 %v694
    %761 = vmatpush.bf16.msra.mxu0 %v690
    %762 = vmatmul.bf16.gmra.mxu0 0
    %v763 = vpop.f32.mrf.mxu0
    %v764 = vadd.f32 0.0, %v763
    %v765 = vpop.f32.mrf.mxu0
    %766 = vdwg.mxu0
    %767 = vmatpush.bf16.msra.mxu0 %v719
    %768 = vmatpush.bf16.msra.mxu0 %v715
    %769 = vmatpush.bf16.msra.mxu0 %v711
    %770 = vmatpush.bf16.msra.mxu0 %v707
    %771 = vmatpush.bf16.msra.mxu0 %v703
    %772 = vmatpush.bf16.msra.mxu0 %v699
    %773 = vmatpush.bf16.msra.mxu0 %v695
    %774 = vmatpush.bf16.msra.mxu0 %v691
    %775 = vmatmul.bf16.gmra.mxu0 0
    %v776 = vpop.f32.mrf.mxu0
    %v777 = vadd.f32 0.0, %v776
    %v778 = vpop.f32.mrf.mxu0
    %779 = vdwg.mxu0
    %780 = vmatpush.bf16.msra.mxu0 %v720
    %781 = vmatpush.bf16.msra.mxu0 %v716
    %782 = vmatpush.bf16.msra.mxu0 %v712
    %783 = vmatpush.bf16.msra.mxu0 %v708
    %784 = vmatpush.bf16.msra.mxu0 %v704
    %785 = vmatpush.bf16.msra.mxu0 %v700
    %786 = vmatpush.bf16.msra.mxu0 %v696
    %787 = vmatpush.bf16.msra.mxu0 %v692
    %788 = vmatmul.bf16.gmra.mxu0 0
    %v789 = vpop.f32.mrf.mxu0
    %v790 = vadd.f32 0.0, %v789
    %v791 = vpop.f32.mrf.mxu0
    %792 = vdwg.mxu0
    %793 = vmatpush.bf16.msra.mxu0 %v721
    %794 = vmatpush.bf16.msra.mxu0 %v717
    %795 = vmatpush.bf16.msra.mxu0 %v713
    %796 = vmatpush.bf16.msra.mxu0 %v709
    %797 = vmatpush.bf16.msra.mxu0 %v705
    %798 = vmatpush.bf16.msra.mxu0 %v701
    %799 = vmatpush.bf16.msra.mxu0 %v697
    %800 = vmatpush.bf16.msra.mxu0 %v693
    %801 = vmatmul.bf16.gmra.mxu0 0
    %v802 = vpop.f32.mrf.mxu0
    %v803 = vadd.f32 0.0, %v802
    %v804 = vpop.f32.mrf.mxu0
    %805 = vdwg.mxu0
    %v806 = vadd.f32 %v590, %v764
    %v807 = vadd.f32 %v591, %v777
    %v808 = vadd.f32 %v592, %v790
    %v809 = vadd.f32 %v593, %v803
    %v810 = vxor.u32 %v806, 2147483648
    %v811 = vmul.f32 %v810, 1.442695
    %v812 = vpow.pop %v811
    %v813 = vadd.f32 %v812, 1.0
    %v814 = vrcp.pop %v813
    %v815 = vmul.f32 %v813, %v814
    %v816 = vsub.f32 1.0, %v815
    %v817 = vmul.f32 %v814, %v816
    %v818 = vadd.f32 %v814, %v817
    %vm819 = vweird.f32 %v813
    %vm820 = vweird.f32 %v814
    %vm821 = vmor %vm819, %vm820
    %v822 = vsel %vm821, %v814, %v818
    %v823 = vand.u32 2147483647, %v813
    %vm824 = vcmp.eq.f32.partialorder %v823, 8.507059e+37
    %v825 = vand.u32 %v813, 2147483648
    %v826 = vor.u32 1.1754944e-38, %v825
    %v827 = vsel %vm824, %v826, %v822
    %v828 = vmul.f32 1.0, %v827
    %v829 = vxor.u32 %v807, 2147483648
    %v830 = vmul.f32 %v829, 1.442695
    %v831 = vpow.pop %v830
    %v832 = vadd.f32 %v831, 1.0
    %v833 = vrcp.pop %v832
    %v834 = vmul.f32 %v832, %v833
    %v835 = vsub.f32 1.0, %v834
    %v836 = vmul.f32 %v833, %v835
    %v837 = vadd.f32 %v833, %v836
    %vm838 = vweird.f32 %v832
    %vm839 = vweird.f32 %v833
    %vm840 = vmor %vm838, %vm839
    %v841 = vsel %vm840, %v833, %v837
    %v842 = vand.u32 2147483647, %v832
    %vm843 = vcmp.eq.f32.partialorder %v842, 8.507059e+37
    %v844 = vand.u32 %v832, 2147483648
    %v845 = vor.u32 1.1754944e-38, %v844
    %v846 = vsel %vm843, %v845, %v841
    %v847 = vmul.f32 1.0, %v846
    %v848 = vtanh.pop %v808
    %v849 = vxor.u32 %v809, 2147483648
    %v850 = vmul.f32 %v849, 1.442695
    %v851 = vpow.pop %v850
    %v852 = vadd.f32 %v851, 1.0
    %v853 = vrcp.pop %v852
    %v854 = vmul.f32 %v852, %v853
    %v855 = vsub.f32 1.0, %v854
    %v856 = vmul.f32 %v853, %v855
    %v857 = vadd.f32 %v853, %v856
    %vm858 = vweird.f32 %v852
    %vm859 = vweird.f32 %v853
    %vm860 = vmor %vm858, %vm859
    %v861 = vsel %vm860, %v853, %v857
    %v862 = vand.u32 2147483647, %v852
    %vm863 = vcmp.eq.f32.partialorder %v862, 8.507059e+37
    %v864 = vand.u32 %v852, 2147483648
    %v865 = vor.u32 1.1754944e-38, %v864
    %v866 = vsel %vm863, %v865, %v861
    %v867 = vmul.f32 1.0, %v866
    %v868 = vmul.f32 %v847, 0.0
    %v869 = vmul.f32 %v828, %v848
    %v870 = vadd.f32 %v868, %v869
    %v871 = vtanh.pop %v870
    %v872 = vmul.f32 %v867, %v871
    %s873 = smul.u32 1, 4
    %s874 = smul.addr %s873, 8
    %s875 = scalar_lea.vmem [#allocation2], %s874
    %v876 = vld [vmem:[%s875] sm:$0xff]
    %v877 = vld [vmem:[%s875 + $0x8] sm:$0xff]
    %v878 = vld [vmem:[%s875 + $0x10] sm:$0xff]
    %v879 = vld [vmem:[%s875 + $0x18] sm:$0xff]
    %v880 = vpack.c.bf16 %v872, %v872
    %881 = vmatpush.bf16.msra.mxu0 %v718
    %882 = vmatpush.bf16.msra.mxu0 %v714
    %883 = vmatpush.bf16.msra.mxu0 %v710
    %884 = vmatpush.bf16.msra.mxu0 %v706
    %885 = vmatpush.bf16.msra.mxu0 %v702
    %886 = vmatpush.bf16.msra.mxu0 %v698
    %887 = vmatpush.bf16.msra.mxu0 %v694
    %888 = vmatpush.bf16.msra.mxu0 %v690
    %889 = vmatmul.bf16.gmra.mxu0 %v880
    %v890 = vpop.f32.mrf.mxu0
    %v891 = vadd.f32 0.0, %v890
    %v892 = vpop.f32.mrf.mxu0
    %893 = vdwg.mxu0
    %894 = vmatpush.bf16.msra.mxu0 %v719
    %895 = vmatpush.bf16.msra.mxu0 %v715
    %896 = vmatpush.bf16.msra.mxu0 %v711
    %897 = vmatpush.bf16.msra.mxu0 %v707
    %898 = vmatpush.bf16.msra.mxu0 %v703
    %899 = vmatpush.bf16.msra.mxu0 %v699
    %900 = vmatpush.bf16.msra.mxu0 %v695
    %901 = vmatpush.bf16.msra.mxu0 %v691
    %902 = vmatmul.bf16.gmra.mxu0 %v880
    %v903 = vpop.f32.mrf.mxu0
    %v904 = vadd.f32 0.0, %v903
    %v905 = vpop.f32.mrf.mxu0
    %906 = vdwg.mxu0
    %907 = vmatpush.bf16.msra.mxu0 %v720
    %908 = vmatpush.bf16.msra.mxu0 %v716
    %909 = vmatpush.bf16.msra.mxu0 %v712
    %910 = vmatpush.bf16.msra.mxu0 %v708
    %911 = vmatpush.bf16.msra.mxu0 %v704
    %912 = vmatpush.bf16.msra.mxu0 %v700
    %913 = vmatpush.bf16.msra.mxu0 %v696
    %914 = vmatpush.bf16.msra.mxu0 %v692
    %915 = vmatmul.bf16.gmra.mxu0 %v880
    %v916 = vpop.f32.mrf.mxu0
    %v917 = vadd.f32 0.0, %v916
    %v918 = vpop.f32.mrf.mxu0
    %919 = vdwg.mxu0
    %920 = vmatpush.bf16.msra.mxu0 %v721
    %921 = vmatpush.bf16.msra.mxu0 %v717
    %922 = vmatpush.bf16.msra.mxu0 %v713
    %923 = vmatpush.bf16.msra.mxu0 %v709
    %924 = vmatpush.bf16.msra.mxu0 %v705
    %925 = vmatpush.bf16.msra.mxu0 %v701
    %926 = vmatpush.bf16.msra.mxu0 %v697
    %927 = vmatpush.bf16.msra.mxu0 %v693
    %928 = vmatmul.bf16.gmra.mxu0 %v880
    %v929 = vpop.f32.mrf.mxu0
    %v930 = vadd.f32 0.0, %v929
    %v931 = vpop.f32.mrf.mxu0
    %932 = vdwg.mxu0
    %v933 = vadd.f32 %v876, %v891
    %v934 = vadd.f32 %v877, %v904
    %v935 = vadd.f32 %v878, %v917
    %v936 = vadd.f32 %v879, %v930
    %v937 = vxor.u32 %v933, 2147483648
    %v938 = vmul.f32 %v937, 1.442695
    %v939 = vpow.pop %v938
    %v940 = vadd.f32 %v939, 1.0
    %v941 = vrcp.pop %v940
    %v942 = vmul.f32 %v940, %v941
    %v943 = vsub.f32 1.0, %v942
    %v944 = vmul.f32 %v941, %v943
    %v945 = vadd.f32 %v941, %v944
    %vm946 = vweird.f32 %v940
    %vm947 = vweird.f32 %v941
    %vm948 = vmor %vm946, %vm947
    %v949 = vsel %vm948, %v941, %v945
    %v950 = vand.u32 2147483647, %v940
    %vm951 = vcmp.eq.f32.partialorder %v950, 8.507059e+37
    %v952 = vand.u32 %v940, 2147483648
    %v953 = vor.u32 1.1754944e-38, %v952
    %v954 = vsel %vm951, %v953, %v949
    %v955 = vmul.f32 1.0, %v954
    %v956 = vxor.u32 %v934, 2147483648
    %v957 = vmul.f32 %v956, 1.442695
    %v958 = vpow.pop %v957
    %v959 = vadd.f32 %v958, 1.0
    %v960 = vrcp.pop %v959
    %v961 = vmul.f32 %v959, %v960
    %v962 = vsub.f32 1.0, %v961
    %v963 = vmul.f32 %v960, %v962
    %v964 = vadd.f32 %v960, %v963
    %vm965 = vweird.f32 %v959
    %vm966 = vweird.f32 %v960
    %vm967 = vmor %vm965, %vm966
    %v968 = vsel %vm967, %v960, %v964
    %v969 = vand.u32 2147483647, %v959
    %vm970 = vcmp.eq.f32.partialorder %v969, 8.507059e+37
    %v971 = vand.u32 %v959, 2147483648
    %v972 = vor.u32 1.1754944e-38, %v971
    %v973 = vsel %vm970, %v972, %v968
    %v974 = vmul.f32 1.0, %v973
    %v975 = vtanh.pop %v935
    %v976 = vxor.u32 %v936, 2147483648
    %v977 = vmul.f32 %v976, 1.442695
    %v978 = vpow.pop %v977
    %v979 = vadd.f32 %v978, 1.0
    %v980 = vrcp.pop %v979
    %v981 = vmul.f32 %v979, %v980
    %v982 = vsub.f32 1.0, %v981
    %v983 = vmul.f32 %v980, %v982
    %v984 = vadd.f32 %v980, %v983
    %vm985 = vweird.f32 %v979
    %vm986 = vweird.f32 %v980
    %vm987 = vmor %vm985, %vm986
    %v988 = vsel %vm987, %v980, %v984
    %v989 = vand.u32 2147483647, %v979
    %vm990 = vcmp.eq.f32.partialorder %v989, 8.507059e+37
    %v991 = vand.u32 %v979, 2147483648
    %v992 = vor.u32 1.1754944e-38, %v991
    %v993 = vsel %vm990, %v992, %v988
    %v994 = vmul.f32 1.0, %v993
    %v995 = vmul.f32 %v974, %v870
    %v996 = vmul.f32 %v955, %v975
    %v997 = vadd.f32 %v995, %v996
    %v998 = vtanh.pop %v997
    %v999 = vmul.f32 %v994, %v998
    %s1000 = smul.u32 2, 4
    %s1001 = smul.addr %s1000, 8
    %s1002 = scalar_lea.vmem [#allocation2], %s1001
    %v1003 = vld [vmem:[%s1002] sm:$0xff]
    %v1004 = vld [vmem:[%s1002 + $0x8] sm:$0xff]
    %v1005 = vld [vmem:[%s1002 + $0x10] sm:$0xff]
    %v1006 = vld [vmem:[%s1002 + $0x18] sm:$0xff]
    %v1007 = vpack.c.bf16 %v999, %v999
    %1008 = vmatpush.bf16.msra.mxu0 %v718
    %1009 = vmatpush.bf16.msra.mxu0 %v714
    %1010 = vmatpush.bf16.msra.mxu0 %v710
    %1011 = vmatpush.bf16.msra.mxu0 %v706
    %1012 = vmatpush.bf16.msra.mxu0 %v702
    %1013 = vmatpush.bf16.msra.mxu0 %v698
    %1014 = vmatpush.bf16.msra.mxu0 %v694
    %1015 = vmatpush.bf16.msra.mxu0 %v690
    %1016 = vmatmul.bf16.gmra.mxu0 %v1007
    %v1017 = vpop.f32.mrf.mxu0
    %v1018 = vadd.f32 0.0, %v1017
    %v1019 = vpop.f32.mrf.mxu0
    %1020 = vdwg.mxu0
    %1021 = vmatpush.bf16.msra.mxu0 %v719
    %1022 = vmatpush.bf16.msra.mxu0 %v715
    %1023 = vmatpush.bf16.msra.mxu0 %v711
    %1024 = vmatpush.bf16.msra.mxu0 %v707
    %1025 = vmatpush.bf16.msra.mxu0 %v703
    %1026 = vmatpush.bf16.msra.mxu0 %v699
    %1027 = vmatpush.bf16.msra.mxu0 %v695
    %1028 = vmatpush.bf16.msra.mxu0 %v691
    %1029 = vmatmul.bf16.gmra.mxu0 %v1007
    %v1030 = vpop.f32.mrf.mxu0
    %v1031 = vadd.f32 0.0, %v1030
    %v1032 = vpop.f32.mrf.mxu0
    %1033 = vdwg.mxu0
    %1034 = vmatpush.bf16.msra.mxu0 %v720
    %1035 = vmatpush.bf16.msra.mxu0 %v716
    %1036 = vmatpush.bf16.msra.mxu0 %v712
    %1037 = vmatpush.bf16.msra.mxu0 %v708
    %1038 = vmatpush.bf16.msra.mxu0 %v704
    %1039 = vmatpush.bf16.msra.mxu0 %v700
    %1040 = vmatpush.bf16.msra.mxu0 %v696
    %1041 = vmatpush.bf16.msra.mxu0 %v692
    %1042 = vmatmul.bf16.gmra.mxu0 %v1007
    %v1043 = vpop.f32.mrf.mxu0
    %v1044 = vadd.f32 0.0, %v1043
    %v1045 = vpop.f32.mrf.mxu0
    %1046 = vdwg.mxu0
    %1047 = vmatpush.bf16.msra.mxu0 %v721
    %1048 = vmatpush.bf16.msra.mxu0 %v717
    %1049 = vmatpush.bf16.msra.mxu0 %v713
    %1050 = vmatpush.bf16.msra.mxu0 %v709
    %1051 = vmatpush.bf16.msra.mxu0 %v705
    %1052 = vmatpush.bf16.msra.mxu0 %v701
    %1053 = vmatpush.bf16.msra.mxu0 %v697
    %1054 = vmatpush.bf16.msra.mxu0 %v693
    %1055 = vmatmul.bf16.gmra.mxu0 %v1007
    %v1056 = vpop.f32.mrf.mxu0
    %v1057 = vadd.f32 0.0, %v1056
    %v1058 = vpop.f32.mrf.mxu0
    %1059 = vdwg.mxu0
    %v1060 = vadd.f32 %v1003, %v1018
    %v1061 = vadd.f32 %v1004, %v1031
    %v1062 = vadd.f32 %v1005, %v1044
    %v1063 = vadd.f32 %v1006, %v1057
    %v1064 = vxor.u32 %v1060, 2147483648
    %v1065 = vmul.f32 %v1064, 1.442695
    %v1066 = vpow.pop %v1065
    %v1067 = vadd.f32 %v1066, 1.0
    %v1068 = vrcp.pop %v1067
    %v1069 = vmul.f32 %v1067, %v1068
    %v1070 = vsub.f32 1.0, %v1069
    %v1071 = vmul.f32 %v1068, %v1070
    %v1072 = vadd.f32 %v1068, %v1071
    %vm1073 = vweird.f32 %v1067
    %vm1074 = vweird.f32 %v1068
    %vm1075 = vmor %vm1073, %vm1074
    %v1076 = vsel %vm1075, %v1068, %v1072
    %v1077 = vand.u32 2147483647, %v1067
    %vm1078 = vcmp.eq.f32.partialorder %v1077, 8.507059e+37
    %v1079 = vand.u32 %v1067, 2147483648
    %v1080 = vor.u32 1.1754944e-38, %v1079
    %v1081 = vsel %vm1078, %v1080, %v1076
    %v1082 = vmul.f32 1.0, %v1081
    %v1083 = vxor.u32 %v1061, 2147483648
    %v1084 = vmul.f32 %v1083, 1.442695
    %v1085 = vpow.pop %v1084
    %v1086 = vadd.f32 %v1085, 1.0
    %v1087 = vrcp.pop %v1086
    %v1088 = vmul.f32 %v1086, %v1087
    %v1089 = vsub.f32 1.0, %v1088
    %v1090 = vmul.f32 %v1087, %v1089
    %v1091 = vadd.f32 %v1087, %v1090
    %vm1092 = vweird.f32 %v1086
    %vm1093 = vweird.f32 %v1087
    %vm1094 = vmor %vm1092, %vm1093
    %v1095 = vsel %vm1094, %v1087, %v1091
    %v1096 = vand.u32 2147483647, %v1086
    %vm1097 = vcmp.eq.f32.partialorder %v1096, 8.507059e+37
    %v1098 = vand.u32 %v1086, 2147483648
    %v1099 = vor.u32 1.1754944e-38, %v1098
    %v1100 = vsel %vm1097, %v1099, %v1095
    %v1101 = vmul.f32 1.0, %v1100
    %v1102 = vtanh.pop %v1062
    %v1103 = vxor.u32 %v1063, 2147483648
    %v1104 = vmul.f32 %v1103, 1.442695
    %v1105 = vpow.pop %v1104
    %v1106 = vadd.f32 %v1105, 1.0
    %v1107 = vrcp.pop %v1106
    %v1108 = vmul.f32 %v1106, %v1107
    %v1109 = vsub.f32 1.0, %v1108
    %v1110 = vmul.f32 %v1107, %v1109
    %v1111 = vadd.f32 %v1107, %v1110
    %vm1112 = vweird.f32 %v1106
    %vm1113 = vweird.f32 %v1107
    %vm1114 = vmor %vm1112, %vm1113
    %v1115 = vsel %vm1114, %v1107, %v1111
    %v1116 = vand.u32 2147483647, %v1106
    %vm1117 = vcmp.eq.f32.partialorder %v1116, 8.507059e+37
    %v1118 = vand.u32 %v1106, 2147483648
    %v1119 = vor.u32 1.1754944e-38, %v1118
    %v1120 = vsel %vm1117, %v1119, %v1115
    %v1121 = vmul.f32 1.0, %v1120
    %v1122 = vmul.f32 %v1101, %v997
    %v1123 = vmul.f32 %v1082, %v1102
    %v1124 = vadd.f32 %v1122, %v1123
    %v1125 = vtanh.pop %v1124
    %v1126 = vmul.f32 %v1121, %v1125
    %s1127 = smul.u32 3, 4
    %s1128 = smul.addr %s1127, 8
    %s1129 = scalar_lea.vmem [#allocation2], %s1128
    %v1130 = vld [vmem:[%s1129] sm:$0xff]
    %v1131 = vld [vmem:[%s1129 + $0x8] sm:$0xff]
    %v1132 = vld [vmem:[%s1129 + $0x10] sm:$0xff]
    %v1133 = vld [vmem:[%s1129 + $0x18] sm:$0xff]
    %v1134 = vpack.c.bf16 %v1126, %v1126
    %1135 = vmatpush.bf16.msra.mxu0 %v718
    %1136 = vmatpush.bf16.msra.mxu0 %v714
    %1137 = vmatpush.bf16.msra.mxu0 %v710
    %1138 = vmatpush.bf16.msra.mxu0 %v706
    %1139 = vmatpush.bf16.msra.mxu0 %v702
    %1140 = vmatpush.bf16.msra.mxu0 %v698
    %1141 = vmatpush.bf16.msra.mxu0 %v694
    %1142 = vmatpush.bf16.msra.mxu0 %v690
    %1143 = vmatmul.bf16.gmra.mxu0 %v1134
    %v1144 = vpop.f32.mrf.mxu0
    %v1145 = vadd.f32 0.0, %v1144
    %v1146 = vpop.f32.mrf.mxu0
    %1147 = vdwg.mxu0
    %1148 = vmatpush.bf16.msra.mxu0 %v719
    %1149 = vmatpush.bf16.msra.mxu0 %v715
    %1150 = vmatpush.bf16.msra.mxu0 %v711
    %1151 = vmatpush.bf16.msra.mxu0 %v707
    %1152 = vmatpush.bf16.msra.mxu0 %v703
    %1153 = vmatpush.bf16.msra.mxu0 %v699
    %1154 = vmatpush.bf16.msra.mxu0 %v695
    %1155 = vmatpush.bf16.msra.mxu0 %v691
    %1156 = vmatmul.bf16.gmra.mxu0 %v1134
    %v1157 = vpop.f32.mrf.mxu0
    %v1158 = vadd.f32 0.0, %v1157
    %v1159 = vpop.f32.mrf.mxu0
    %1160 = vdwg.mxu0
    %1161 = vmatpush.bf16.msra.mxu0 %v720
    %1162 = vmatpush.bf16.msra.mxu0 %v716
    %1163 = vmatpush.bf16.msra.mxu0 %v712
    %1164 = vmatpush.bf16.msra.mxu0 %v708
    %1165 = vmatpush.bf16.msra.mxu0 %v704
    %1166 = vmatpush.bf16.msra.mxu0 %v700
    %1167 = vmatpush.bf16.msra.mxu0 %v696
    %1168 = vmatpush.bf16.msra.mxu0 %v692
    %1169 = vmatmul.bf16.gmra.mxu0 %v1134
    %v1170 = vpop.f32.mrf.mxu0
    %v1171 = vadd.f32 0.0, %v1170
    %v1172 = vpop.f32.mrf.mxu0
    %1173 = vdwg.mxu0
    %1174 = vmatpush.bf16.msra.mxu0 %v721
    %1175 = vmatpush.bf16.msra.mxu0 %v717
    %1176 = vmatpush.bf16.msra.mxu0 %v713
    %1177 = vmatpush.bf16.msra.mxu0 %v709
    %1178 = vmatpush.bf16.msra.mxu0 %v705
    %1179 = vmatpush.bf16.msra.mxu0 %v701
    %1180 = vmatpush.bf16.msra.mxu0 %v697
    %1181 = vmatpush.bf16.msra.mxu0 %v693
    %1182 = vmatmul.bf16.gmra.mxu0 %v1134
    %v1183 = vpop.f32.mrf.mxu0
    %v1184 = vadd.f32 0.0, %v1183
    %v1185 = vpop.f32.mrf.mxu0
    %1186 = vdwg.mxu0
    %v1187 = vadd.f32 %v1130, %v1145
    %v1188 = vadd.f32 %v1131, %v1158
    %v1189 = vadd.f32 %v1132, %v1171
    %v1190 = vadd.f32 %v1133, %v1184
    %v1191 = vxor.u32 %v1187, 2147483648
    %v1192 = vmul.f32 %v1191, 1.442695
    %v1193 = vpow.pop %v1192
    %v1194 = vadd.f32 %v1193, 1.0
    %v1195 = vrcp.pop %v1194
    %v1196 = vmul.f32 %v1194, %v1195
    %v1197 = vsub.f32 1.0, %v1196
    %v1198 = vmul.f32 %v1195, %v1197
    %v1199 = vadd.f32 %v1195, %v1198
    %vm1200 = vweird.f32 %v1194
    %vm1201 = vweird.f32 %v1195
    %vm1202 = vmor %vm1200, %vm1201
    %v1203 = vsel %vm1202, %v1195, %v1199
    %v1204 = vand.u32 2147483647, %v1194
    %vm1205 = vcmp.eq.f32.partialorder %v1204, 8.507059e+37
    %v1206 = vand.u32 %v1194, 2147483648
    %v1207 = vor.u32 1.1754944e-38, %v1206
    %v1208 = vsel %vm1205, %v1207, %v1203
    %v1209 = vmul.f32 1.0, %v1208
    %v1210 = vxor.u32 %v1188, 2147483648
    %v1211 = vmul.f32 %v1210, 1.442695
    %v1212 = vpow.pop %v1211
    %v1213 = vadd.f32 %v1212, 1.0
    %v1214 = vrcp.pop %v1213
    %v1215 = vmul.f32 %v1213, %v1214
    %v1216 = vsub.f32 1.0, %v1215
    %v1217 = vmul.f32 %v1214, %v1216
    %v1218 = vadd.f32 %v1214, %v1217
    %vm1219 = vweird.f32 %v1213
    %vm1220 = vweird.f32 %v1214
    %vm1221 = vmor %vm1219, %vm1220
    %v1222 = vsel %vm1221, %v1214, %v1218
    %v1223 = vand.u32 2147483647, %v1213
    %vm1224 = vcmp.eq.f32.partialorder %v1223, 8.507059e+37
    %v1225 = vand.u32 %v1213, 2147483648
    %v1226 = vor.u32 1.1754944e-38, %v1225
    %v1227 = vsel %vm1224, %v1226, %v1222
    %v1228 = vmul.f32 1.0, %v1227
    %v1229 = vtanh.pop %v1189
    %v1230 = vxor.u32 %v1190, 2147483648
    %v1231 = vmul.f32 %v1230, 1.442695
    %v1232 = vpow.pop %v1231
    %v1233 = vadd.f32 %v1232, 1.0
    %v1234 = vrcp.pop %v1233
    %v1235 = vmul.f32 %v1233, %v1234
    %v1236 = vsub.f32 1.0, %v1235
    %v1237 = vmul.f32 %v1234, %v1236
    %v1238 = vadd.f32 %v1234, %v1237
    %vm1239 = vweird.f32 %v1233
    %vm1240 = vweird.f32 %v1234
    %vm1241 = vmor %vm1239, %vm1240
    %v1242 = vsel %vm1241, %v1234, %v1238
    %v1243 = vand.u32 2147483647, %v1233
    %vm1244 = vcmp.eq.f32.partialorder %v1243, 8.507059e+37
    %v1245 = vand.u32 %v1233, 2147483648
    %v1246 = vor.u32 1.1754944e-38, %v1245
    %v1247 = vsel %vm1244, %v1246, %v1242
    %v1248 = vmul.f32 1.0, %v1247
    %v1249 = vmul.f32 %v1228, %v1124
    %v1250 = vmul.f32 %v1209, %v1229
    %v1251 = vadd.f32 %v1249, %v1250
    %v1252 = vtanh.pop %v1251
    %v1253 = vmul.f32 %v1248, %v1252
    %s1254 = smul.u32 4, 4
    %s1255 = smul.addr %s1254, 8
    %s1256 = scalar_lea.vmem [#allocation2], %s1255
    %v1257 = vld [vmem:[%s1256] sm:$0xff]
    %v1258 = vld [vmem:[%s1256 + $0x8] sm:$0xff]
    %v1259 = vld [vmem:[%s1256 + $0x10] sm:$0xff]
    %v1260 = vld [vmem:[%s1256 + $0x18] sm:$0xff]
    %v1261 = vpack.c.bf16 %v1253, %v1253
    %1262 = vmatpush.bf16.msra.mxu0 %v718
    %1263 = vmatpush.bf16.msra.mxu0 %v714
    %1264 = vmatpush.bf16.msra.mxu0 %v710
    %1265 = vmatpush.bf16.msra.mxu0 %v706
    %1266 = vmatpush.bf16.msra.mxu0 %v702
    %1267 = vmatpush.bf16.msra.mxu0 %v698
    %1268 = vmatpush.bf16.msra.mxu0 %v694
    %1269 = vmatpush.bf16.msra.mxu0 %v690
    %1270 = vmatmul.bf16.gmra.mxu0 %v1261
    %v1271 = vpop.f32.mrf.mxu0
    %v1272 = vadd.f32 0.0, %v1271
    %v1273 = vpop.f32.mrf.mxu0
    %1274 = vdwg.mxu0
    %1275 = vmatpush.bf16.msra.mxu0 %v719
    %1276 = vmatpush.bf16.msra.mxu0 %v715
    %1277 = vmatpush.bf16.msra.mxu0 %v711
    %1278 = vmatpush.bf16.msra.mxu0 %v707
    %1279 = vmatpush.bf16.msra.mxu0 %v703
    %1280 = vmatpush.bf16.msra.mxu0 %v699
    %1281 = vmatpush.bf16.msra.mxu0 %v695
    %1282 = vmatpush.bf16.msra.mxu0 %v691
    %1283 = vmatmul.bf16.gmra.mxu0 %v1261
    %v1284 = vpop.f32.mrf.mxu0
    %v1285 = vadd.f32 0.0, %v1284
    %v1286 = vpop.f32.mrf.mxu0
    %1287 = vdwg.mxu0
    %1288 = vmatpush.bf16.msra.mxu0 %v720
    %1289 = vmatpush.bf16.msra.mxu0 %v716
    %1290 = vmatpush.bf16.msra.mxu0 %v712
    %1291 = vmatpush.bf16.msra.mxu0 %v708
    %1292 = vmatpush.bf16.msra.mxu0 %v704
    %1293 = vmatpush.bf16.msra.mxu0 %v700
    %1294 = vmatpush.bf16.msra.mxu0 %v696
    %1295 = vmatpush.bf16.msra.mxu0 %v692
    %1296 = vmatmul.bf16.gmra.mxu0 %v1261
    %v1297 = vpop.f32.mrf.mxu0
    %v1298 = vadd.f32 0.0, %v1297
    %v1299 = vpop.f32.mrf.mxu0
    %1300 = vdwg.mxu0
    %1301 = vmatpush.bf16.msra.mxu0 %v721
    %1302 = vmatpush.bf16.msra.mxu0 %v717
    %1303 = vmatpush.bf16.msra.mxu0 %v713
    %1304 = vmatpush.bf16.msra.mxu0 %v709
    %1305 = vmatpush.bf16.msra.mxu0 %v705
    %1306 = vmatpush.bf16.msra.mxu0 %v701
    %1307 = vmatpush.bf16.msra.mxu0 %v697
    %1308 = vmatpush.bf16.msra.mxu0 %v693
    %1309 = vmatmul.bf16.gmra.mxu0 %v1261
    %v1310 = vpop.f32.mrf.mxu0
    %v1311 = vadd.f32 0.0, %v1310
    %v1312 = vpop.f32.mrf.mxu0
    %1313 = vdwg.mxu0
    %v1314 = vadd.f32 %v1257, %v1272
    %v1315 = vadd.f32 %v1258, %v1285
    %v1316 = vadd.f32 %v1259, %v1298
    %v1317 = vadd.f32 %v1260, %v1311
    %v1318 = vxor.u32 %v1314, 2147483648
    %v1319 = vmul.f32 %v1318, 1.442695
    %v1320 = vpow.pop %v1319
    %v1321 = vadd.f32 %v1320, 1.0
    %v1322 = vrcp.pop %v1321
    %v1323 = vmul.f32 %v1321, %v1322
    %v1324 = vsub.f32 1.0, %v1323
    %v1325 = vmul.f32 %v1322, %v1324
    %v1326 = vadd.f32 %v1322, %v1325
    %vm1327 = vweird.f32 %v1321
    %vm1328 = vweird.f32 %v1322
    %vm1329 = vmor %vm1327, %vm1328
    %v1330 = vsel %vm1329, %v1322, %v1326
    %v1331 = vand.u32 2147483647, %v1321
    %vm1332 = vcmp.eq.f32.partialorder %v1331, 8.507059e+37
    %v1333 = vand.u32 %v1321, 2147483648
    %v1334 = vor.u32 1.1754944e-38, %v1333
    %v1335 = vsel %vm1332, %v1334, %v1330
    %v1336 = vmul.f32 1.0, %v1335
    %v1337 = vxor.u32 %v1315, 2147483648
    %v1338 = vmul.f32 %v1337, 1.442695
    %v1339 = vpow.pop %v1338
    %v1340 = vadd.f32 %v1339, 1.0
    %v1341 = vrcp.pop %v1340
    %v1342 = vmul.f32 %v1340, %v1341
    %v1343 = vsub.f32 1.0, %v1342
    %v1344 = vmul.f32 %v1341, %v1343
    %v1345 = vadd.f32 %v1341, %v1344
    %vm1346 = vweird.f32 %v1340
    %vm1347 = vweird.f32 %v1341
    %vm1348 = vmor %vm1346, %vm1347
    %v1349 = vsel %vm1348, %v1341, %v1345
    %v1350 = vand.u32 2147483647, %v1340
    %vm1351 = vcmp.eq.f32.partialorder %v1350, 8.507059e+37
    %v1352 = vand.u32 %v1340, 2147483648
    %v1353 = vor.u32 1.1754944e-38, %v1352
    %v1354 = vsel %vm1351, %v1353, %v1349
    %v1355 = vmul.f32 1.0, %v1354
    %v1356 = vtanh.pop %v1316
    %v1357 = vxor.u32 %v1317, 2147483648
    %v1358 = vmul.f32 %v1357, 1.442695
    %v1359 = vpow.pop %v1358
    %v1360 = vadd.f32 %v1359, 1.0
    %v1361 = vrcp.pop %v1360
    %v1362 = vmul.f32 %v1360, %v1361
    %v1363 = vsub.f32 1.0, %v1362
    %v1364 = vmul.f32 %v1361, %v1363
    %v1365 = vadd.f32 %v1361, %v1364
    %vm1366 = vweird.f32 %v1360
    %vm1367 = vweird.f32 %v1361
    %vm1368 = vmor %vm1366, %vm1367
    %v1369 = vsel %vm1368, %v1361, %v1365
    %v1370 = vand.u32 2147483647, %v1360
    %vm1371 = vcmp.eq.f32.partialorder %v1370, 8.507059e+37
    %v1372 = vand.u32 %v1360, 2147483648
    %v1373 = vor.u32 1.1754944e-38, %v1372
    %v1374 = vsel %vm1371, %v1373, %v1369
    %v1375 = vmul.f32 1.0, %v1374
    %v1376 = vmul.f32 %v1355, %v1251
    %v1377 = vmul.f32 %v1336, %v1356
    %v1378 = vadd.f32 %v1376, %v1377
    %v1379 = vtanh.pop %v1378
    %v1380 = vmul.f32 %v1375, %v1379
    %s1381 = smul.u32 5, 4
    %s1382 = smul.addr %s1381, 8
    %s1383 = scalar_lea.vmem [#allocation2], %s1382
    %v1384 = vld [vmem:[%s1383] sm:$0xff]
    %v1385 = vld [vmem:[%s1383 + $0x8] sm:$0xff]
    %v1386 = vld [vmem:[%s1383 + $0x10] sm:$0xff]
    %v1387 = vld [vmem:[%s1383 + $0x18] sm:$0xff]
    %v1388 = vpack.c.bf16 %v1380, %v1380
    %1389 = vmatpush.bf16.msra.mxu0 %v718
    %1390 = vmatpush.bf16.msra.mxu0 %v714
    %1391 = vmatpush.bf16.msra.mxu0 %v710
    %1392 = vmatpush.bf16.msra.mxu0 %v706
    %1393 = vmatpush.bf16.msra.mxu0 %v702
    %1394 = vmatpush.bf16.msra.mxu0 %v698
    %1395 = vmatpush.bf16.msra.mxu0 %v694
    %1396 = vmatpush.bf16.msra.mxu0 %v690
    %1397 = vmatmul.bf16.gmra.mxu0 %v1388
    %v1398 = vpop.f32.mrf.mxu0
    %v1399 = vadd.f32 0.0, %v1398
    %v1400 = vpop.f32.mrf.mxu0
    %1401 = vdwg.mxu0
    %1402 = vmatpush.bf16.msra.mxu0 %v719
    %1403 = vmatpush.bf16.msra.mxu0 %v715
    %1404 = vmatpush.bf16.msra.mxu0 %v711
    %1405 = vmatpush.bf16.msra.mxu0 %v707
    %1406 = vmatpush.bf16.msra.mxu0 %v703
    %1407 = vmatpush.bf16.msra.mxu0 %v699
    %1408 = vmatpush.bf16.msra.mxu0 %v695
    %1409 = vmatpush.bf16.msra.mxu0 %v691
    %1410 = vmatmul.bf16.gmra.mxu0 %v1388
    %v1411 = vpop.f32.mrf.mxu0
    %v1412 = vadd.f32 0.0, %v1411
    %v1413 = vpop.f32.mrf.mxu0
    %1414 = vdwg.mxu0
    %1415 = vmatpush.bf16.msra.mxu0 %v720
    %1416 = vmatpush.bf16.msra.mxu0 %v716
    %1417 = vmatpush.bf16.msra.mxu0 %v712
    %1418 = vmatpush.bf16.msra.mxu0 %v708
    %1419 = vmatpush.bf16.msra.mxu0 %v704
    %1420 = vmatpush.bf16.msra.mxu0 %v700
    %1421 = vmatpush.bf16.msra.mxu0 %v696
    %1422 = vmatpush.bf16.msra.mxu0 %v692
    %1423 = vmatmul.bf16.gmra.mxu0 %v1388
    %v1424 = vpop.f32.mrf.mxu0
    %v1425 = vadd.f32 0.0, %v1424
    %v1426 = vpop.f32.mrf.mxu0
    %1427 = vdwg.mxu0
    %1428 = vmatpush.bf16.msra.mxu0 %v721
    %1429 = vmatpush.bf16.msra.mxu0 %v717
    %1430 = vmatpush.bf16.msra.mxu0 %v713
    %1431 = vmatpush.bf16.msra.mxu0 %v709
    %1432 = vmatpush.bf16.msra.mxu0 %v705
    %1433 = vmatpush.bf16.msra.mxu0 %v701
    %1434 = vmatpush.bf16.msra.mxu0 %v697
    %1435 = vmatpush.bf16.msra.mxu0 %v693
    %1436 = vmatmul.bf16.gmra.mxu0 %v1388
    %v1437 = vpop.f32.mrf.mxu0
    %v1438 = vadd.f32 0.0, %v1437
    %v1439 = vpop.f32.mrf.mxu0
    %1440 = vdwg.mxu0
    %v1441 = vadd.f32 %v1384, %v1399
    %v1442 = vadd.f32 %v1385, %v1412
    %v1443 = vadd.f32 %v1386, %v1425
    %v1444 = vadd.f32 %v1387, %v1438
    %v1445 = vxor.u32 %v1441, 2147483648
    %v1446 = vmul.f32 %v1445, 1.442695
    %v1447 = vpow.pop %v1446
    %v1448 = vadd.f32 %v1447, 1.0
    %v1449 = vrcp.pop %v1448
    %v1450 = vmul.f32 %v1448, %v1449
    %v1451 = vsub.f32 1.0, %v1450
    %v1452 = vmul.f32 %v1449, %v1451
    %v1453 = vadd.f32 %v1449, %v1452
    %vm1454 = vweird.f32 %v1448
    %vm1455 = vweird.f32 %v1449
    %vm1456 = vmor %vm1454, %vm1455
    %v1457 = vsel %vm1456, %v1449, %v1453
    %v1458 = vand.u32 2147483647, %v1448
    %vm1459 = vcmp.eq.f32.partialorder %v1458, 8.507059e+37
    %v1460 = vand.u32 %v1448, 2147483648
    %v1461 = vor.u32 1.1754944e-38, %v1460
    %v1462 = vsel %vm1459, %v1461, %v1457
    %v1463 = vmul.f32 1.0, %v1462
    %v1464 = vxor.u32 %v1442, 2147483648
    %v1465 = vmul.f32 %v1464, 1.442695
    %v1466 = vpow.pop %v1465
    %v1467 = vadd.f32 %v1466, 1.0
    %v1468 = vrcp.pop %v1467
    %v1469 = vmul.f32 %v1467, %v1468
    %v1470 = vsub.f32 1.0, %v1469
    %v1471 = vmul.f32 %v1468, %v1470
    %v1472 = vadd.f32 %v1468, %v1471
    %vm1473 = vweird.f32 %v1467
    %vm1474 = vweird.f32 %v1468
    %vm1475 = vmor %vm1473, %vm1474
    %v1476 = vsel %vm1475, %v1468, %v1472
    %v1477 = vand.u32 2147483647, %v1467
    %vm1478 = vcmp.eq.f32.partialorder %v1477, 8.507059e+37
    %v1479 = vand.u32 %v1467, 2147483648
    %v1480 = vor.u32 1.1754944e-38, %v1479
    %v1481 = vsel %vm1478, %v1480, %v1476
    %v1482 = vmul.f32 1.0, %v1481
    %v1483 = vtanh.pop %v1443
    %v1484 = vxor.u32 %v1444, 2147483648
    %v1485 = vmul.f32 %v1484, 1.442695
    %v1486 = vpow.pop %v1485
    %v1487 = vadd.f32 %v1486, 1.0
    %v1488 = vrcp.pop %v1487
    %v1489 = vmul.f32 %v1487, %v1488
    %v1490 = vsub.f32 1.0, %v1489
    %v1491 = vmul.f32 %v1488, %v1490
    %v1492 = vadd.f32 %v1488, %v1491
    %vm1493 = vweird.f32 %v1487
    %vm1494 = vweird.f32 %v1488
    %vm1495 = vmor %vm1493, %vm1494
    %v1496 = vsel %vm1495, %v1488, %v1492
    %v1497 = vand.u32 2147483647, %v1487
    %vm1498 = vcmp.eq.f32.partialorder %v1497, 8.507059e+37
    %v1499 = vand.u32 %v1487, 2147483648
    %v1500 = vor.u32 1.1754944e-38, %v1499
    %v1501 = vsel %vm1498, %v1500, %v1496
    %v1502 = vmul.f32 1.0, %v1501
    %v1503 = vmul.f32 %v1482, %v1378
    %v1504 = vmul.f32 %v1463, %v1483
    %v1505 = vadd.f32 %v1503, %v1504
    %v1506 = vtanh.pop %v1505
    %v1507 = vmul.f32 %v1502, %v1506
    %s1508 = smul.u32 6, 4
    %s1509 = smul.addr %s1508, 8
    %s1510 = scalar_lea.vmem [#allocation2], %s1509
    %v1511 = vld [vmem:[%s1510] sm:$0xff]
    %v1512 = vld [vmem:[%s1510 + $0x8] sm:$0xff]
    %v1513 = vld [vmem:[%s1510 + $0x10] sm:$0xff]
    %v1514 = vld [vmem:[%s1510 + $0x18] sm:$0xff]
    %v1515 = vpack.c.bf16 %v1507, %v1507
    %1516 = vmatpush.bf16.msra.mxu0 %v718
    %1517 = vmatpush.bf16.msra.mxu0 %v714
    %1518 = vmatpush.bf16.msra.mxu0 %v710
    %1519 = vmatpush.bf16.msra.mxu0 %v706
    %1520 = vmatpush.bf16.msra.mxu0 %v702
    %1521 = vmatpush.bf16.msra.mxu0 %v698
    %1522 = vmatpush.bf16.msra.mxu0 %v694
    %1523 = vmatpush.bf16.msra.mxu0 %v690
    %1524 = vmatmul.bf16.gmra.mxu0 %v1515
    %v1525 = vpop.f32.mrf.mxu0
    %v1526 = vadd.f32 0.0, %v1525
    %v1527 = vpop.f32.mrf.mxu0
    %1528 = vdwg.mxu0
    %1529 = vmatpush.bf16.msra.mxu0 %v719
    %1530 = vmatpush.bf16.msra.mxu0 %v715
    %1531 = vmatpush.bf16.msra.mxu0 %v711
    %1532 = vmatpush.bf16.msra.mxu0 %v707
    %1533 = vmatpush.bf16.msra.mxu0 %v703
    %1534 = vmatpush.bf16.msra.mxu0 %v699
    %1535 = vmatpush.bf16.msra.mxu0 %v695
    %1536 = vmatpush.bf16.msra.mxu0 %v691
    %1537 = vmatmul.bf16.gmra.mxu0 %v1515
    %v1538 = vpop.f32.mrf.mxu0
    %v1539 = vadd.f32 0.0, %v1538
    %v1540 = vpop.f32.mrf.mxu0
    %1541 = vdwg.mxu0
    %1542 = vmatpush.bf16.msra.mxu0 %v720
    %1543 = vmatpush.bf16.msra.mxu0 %v716
    %1544 = vmatpush.bf16.msra.mxu0 %v712
    %1545 = vmatpush.bf16.msra.mxu0 %v708
    %1546 = vmatpush.bf16.msra.mxu0 %v704
    %1547 = vmatpush.bf16.msra.mxu0 %v700
    %1548 = vmatpush.bf16.msra.mxu0 %v696
    %1549 = vmatpush.bf16.msra.mxu0 %v692
    %1550 = vmatmul.bf16.gmra.mxu0 %v1515
    %v1551 = vpop.f32.mrf.mxu0
    %v1552 = vadd.f32 0.0, %v1551
    %v1553 = vpop.f32.mrf.mxu0
    %1554 = vdwg.mxu0
    %1555 = vmatpush.bf16.msra.mxu0 %v721
    %1556 = vmatpush.bf16.msra.mxu0 %v717
    %1557 = vmatpush.bf16.msra.mxu0 %v713
    %1558 = vmatpush.bf16.msra.mxu0 %v709
    %1559 = vmatpush.bf16.msra.mxu0 %v705
    %1560 = vmatpush.bf16.msra.mxu0 %v701
    %1561 = vmatpush.bf16.msra.mxu0 %v697
    %1562 = vmatpush.bf16.msra.mxu0 %v693
    %1563 = vmatmul.bf16.gmra.mxu0 %v1515
    %v1564 = vpop.f32.mrf.mxu0
    %v1565 = vadd.f32 0.0, %v1564
    %v1566 = vpop.f32.mrf.mxu0
    %1567 = vdwg.mxu0
    %v1568 = vadd.f32 %v1511, %v1526
    %v1569 = vadd.f32 %v1512, %v1539
    %v1570 = vadd.f32 %v1513, %v1552
    %v1571 = vadd.f32 %v1514, %v1565
    %v1572 = vxor.u32 %v1568, 2147483648
    %v1573 = vmul.f32 %v1572, 1.442695
    %v1574 = vpow.pop %v1573
    %v1575 = vadd.f32 %v1574, 1.0
    %v1576 = vrcp.pop %v1575
    %v1577 = vmul.f32 %v1575, %v1576
    %v1578 = vsub.f32 1.0, %v1577
    %v1579 = vmul.f32 %v1576, %v1578
    %v1580 = vadd.f32 %v1576, %v1579
    %vm1581 = vweird.f32 %v1575
    %vm1582 = vweird.f32 %v1576
    %vm1583 = vmor %vm1581, %vm1582
    %v1584 = vsel %vm1583, %v1576, %v1580
    %v1585 = vand.u32 2147483647, %v1575
    %vm1586 = vcmp.eq.f32.partialorder %v1585, 8.507059e+37
    %v1587 = vand.u32 %v1575, 2147483648
    %v1588 = vor.u32 1.1754944e-38, %v1587
    %v1589 = vsel %vm1586, %v1588, %v1584
    %v1590 = vmul.f32 1.0, %v1589
    %v1591 = vxor.u32 %v1569, 2147483648
    %v1592 = vmul.f32 %v1591, 1.442695
    %v1593 = vpow.pop %v1592
    %v1594 = vadd.f32 %v1593, 1.0
    %v1595 = vrcp.pop %v1594
    %v1596 = vmul.f32 %v1594, %v1595
    %v1597 = vsub.f32 1.0, %v1596
    %v1598 = vmul.f32 %v1595, %v1597
    %v1599 = vadd.f32 %v1595, %v1598
    %vm1600 = vweird.f32 %v1594
    %vm1601 = vweird.f32 %v1595
    %vm1602 = vmor %vm1600, %vm1601
    %v1603 = vsel %vm1602, %v1595, %v1599
    %v1604 = vand.u32 2147483647, %v1594
    %vm1605 = vcmp.eq.f32.partialorder %v1604, 8.507059e+37
    %v1606 = vand.u32 %v1594, 2147483648
    %v1607 = vor.u32 1.1754944e-38, %v1606
    %v1608 = vsel %vm1605, %v1607, %v1603
    %v1609 = vmul.f32 1.0, %v1608
    %v1610 = vtanh.pop %v1570
    %v1611 = vxor.u32 %v1571, 2147483648
    %v1612 = vmul.f32 %v1611, 1.442695
    %v1613 = vpow.pop %v1612
    %v1614 = vadd.f32 %v1613, 1.0
    %v1615 = vrcp.pop %v1614
    %v1616 = vmul.f32 %v1614, %v1615
    %v1617 = vsub.f32 1.0, %v1616
    %v1618 = vmul.f32 %v1615, %v1617
    %v1619 = vadd.f32 %v1615, %v1618
    %vm1620 = vweird.f32 %v1614
    %vm1621 = vweird.f32 %v1615
    %vm1622 = vmor %vm1620, %vm1621
    %v1623 = vsel %vm1622, %v1615, %v1619
    %v1624 = vand.u32 2147483647, %v1614
    %vm1625 = vcmp.eq.f32.partialorder %v1624, 8.507059e+37
    %v1626 = vand.u32 %v1614, 2147483648
    %v1627 = vor.u32 1.1754944e-38, %v1626
    %v1628 = vsel %vm1625, %v1627, %v1623
    %v1629 = vmul.f32 1.0, %v1628
    %v1630 = vmul.f32 %v1609, %v1505
    %v1631 = vmul.f32 %v1590, %v1610
    %v1632 = vadd.f32 %v1630, %v1631
    %v1633 = vtanh.pop %v1632
    %v1634 = vmul.f32 %v1629, %v1633
    %s1635 = smul.u32 7, 4
    %s1636 = smul.addr %s1635, 8
    %s1637 = scalar_lea.vmem [#allocation2], %s1636
    %v1638 = vld [vmem:[%s1637] sm:$0xff]
    %v1639 = vld [vmem:[%s1637 + $0x8] sm:$0xff]
    %v1640 = vld [vmem:[%s1637 + $0x10] sm:$0xff]
    %v1641 = vld [vmem:[%s1637 + $0x18] sm:$0xff]
    %v1642 = vpack.c.bf16 %v1634, %v1634
    %1643 = vmatpush.bf16.msra.mxu0 %v718
    %1644 = vmatpush.bf16.msra.mxu0 %v714
    %1645 = vmatpush.bf16.msra.mxu0 %v710
    %1646 = vmatpush.bf16.msra.mxu0 %v706
    %1647 = vmatpush.bf16.msra.mxu0 %v702
    %1648 = vmatpush.bf16.msra.mxu0 %v698
    %1649 = vmatpush.bf16.msra.mxu0 %v694
    %1650 = vmatpush.bf16.msra.mxu0 %v690
    %1651 = vmatmul.bf16.gmra.mxu0 %v1642
    %v1652 = vpop.f32.mrf.mxu0
    %v1653 = vadd.f32 0.0, %v1652
    %v1654 = vpop.f32.mrf.mxu0
    %1655 = vdwg.mxu0
    %1656 = vmatpush.bf16.msra.mxu0 %v719
    %1657 = vmatpush.bf16.msra.mxu0 %v715
    %1658 = vmatpush.bf16.msra.mxu0 %v711
    %1659 = vmatpush.bf16.msra.mxu0 %v707
    %1660 = vmatpush.bf16.msra.mxu0 %v703
    %1661 = vmatpush.bf16.msra.mxu0 %v699
    %1662 = vmatpush.bf16.msra.mxu0 %v695
    %1663 = vmatpush.bf16.msra.mxu0 %v691
    %1664 = vmatmul.bf16.gmra.mxu0 %v1642
    %v1665 = vpop.f32.mrf.mxu0
    %v1666 = vadd.f32 0.0, %v1665
    %v1667 = vpop.f32.mrf.mxu0
    %1668 = vdwg.mxu0
    %1669 = vmatpush.bf16.msra.mxu0 %v720
    %1670 = vmatpush.bf16.msra.mxu0 %v716
    %1671 = vmatpush.bf16.msra.mxu0 %v712
    %1672 = vmatpush.bf16.msra.mxu0 %v708
    %1673 = vmatpush.bf16.msra.mxu0 %v704
    %1674 = vmatpush.bf16.msra.mxu0 %v700
    %1675 = vmatpush.bf16.msra.mxu0 %v696
    %1676 = vmatpush.bf16.msra.mxu0 %v692
    %1677 = vmatmul.bf16.gmra.mxu0 %v1642
    %v1678 = vpop.f32.mrf.mxu0
    %v1679 = vadd.f32 0.0, %v1678
    %v1680 = vpop.f32.mrf.mxu0
    %1681 = vdwg.mxu0
    %1682 = vmatpush.bf16.msra.mxu0 %v721
    %1683 = vmatpush.bf16.msra.mxu0 %v717
    %1684 = vmatpush.bf16.msra.mxu0 %v713
    %1685 = vmatpush.bf16.msra.mxu0 %v709
    %1686 = vmatpush.bf16.msra.mxu0 %v705
    %1687 = vmatpush.bf16.msra.mxu0 %v701
    %1688 = vmatpush.bf16.msra.mxu0 %v697
    %1689 = vmatpush.bf16.msra.mxu0 %v693
    %1690 = vmatmul.bf16.gmra.mxu0 %v1642
    %v1691 = vpop.f32.mrf.mxu0
    %v1692 = vadd.f32 0.0, %v1691
    %v1693 = vpop.f32.mrf.mxu0
    %1694 = vdwg.mxu0
    %v1695 = vadd.f32 %v1638, %v1653
    %v1696 = vadd.f32 %v1639, %v1666
    %v1697 = vadd.f32 %v1640, %v1679
    %v1698 = vadd.f32 %v1641, %v1692
    %v1699 = vxor.u32 %v1695, 2147483648
    %v1700 = vmul.f32 %v1699, 1.442695
    %v1701 = vpow.pop %v1700
    %v1702 = vadd.f32 %v1701, 1.0
    %v1703 = vrcp.pop %v1702
    %v1704 = vmul.f32 %v1702, %v1703
    %v1705 = vsub.f32 1.0, %v1704
    %v1706 = vmul.f32 %v1703, %v1705
    %v1707 = vadd.f32 %v1703, %v1706
    %vm1708 = vweird.f32 %v1702
    %vm1709 = vweird.f32 %v1703
    %vm1710 = vmor %vm1708, %vm1709
    %v1711 = vsel %vm1710, %v1703, %v1707
    %v1712 = vand.u32 2147483647, %v1702
    %vm1713 = vcmp.eq.f32.partialorder %v1712, 8.507059e+37
    %v1714 = vand.u32 %v1702, 2147483648
    %v1715 = vor.u32 1.1754944e-38, %v1714
    %v1716 = vsel %vm1713, %v1715, %v1711
    %v1717 = vmul.f32 1.0, %v1716
    %v1718 = vxor.u32 %v1696, 2147483648
    %v1719 = vmul.f32 %v1718, 1.442695
    %v1720 = vpow.pop %v1719
    %v1721 = vadd.f32 %v1720, 1.0
    %v1722 = vrcp.pop %v1721
    %v1723 = vmul.f32 %v1721, %v1722
    %v1724 = vsub.f32 1.0, %v1723
    %v1725 = vmul.f32 %v1722, %v1724
    %v1726 = vadd.f32 %v1722, %v1725
    %vm1727 = vweird.f32 %v1721
    %vm1728 = vweird.f32 %v1722
    %vm1729 = vmor %vm1727, %vm1728
    %v1730 = vsel %vm1729, %v1722, %v1726
    %v1731 = vand.u32 2147483647, %v1721
    %vm1732 = vcmp.eq.f32.partialorder %v1731, 8.507059e+37
    %v1733 = vand.u32 %v1721, 2147483648
    %v1734 = vor.u32 1.1754944e-38, %v1733
    %v1735 = vsel %vm1732, %v1734, %v1730
    %v1736 = vmul.f32 1.0, %v1735
    %v1737 = vtanh.pop %v1697
    %v1738 = vxor.u32 %v1698, 2147483648
    %v1739 = vmul.f32 %v1738, 1.442695
    %v1740 = vpow.pop %v1739
    %v1741 = vadd.f32 %v1740, 1.0
    %v1742 = vrcp.pop %v1741
    %v1743 = vmul.f32 %v1741, %v1742
    %v1744 = vsub.f32 1.0, %v1743
    %v1745 = vmul.f32 %v1742, %v1744
    %v1746 = vadd.f32 %v1742, %v1745
    %vm1747 = vweird.f32 %v1741
    %vm1748 = vweird.f32 %v1742
    %vm1749 = vmor %vm1747, %vm1748
    %v1750 = vsel %vm1749, %v1742, %v1746
    %v1751 = vand.u32 2147483647, %v1741
    %vm1752 = vcmp.eq.f32.partialorder %v1751, 8.507059e+37
    %v1753 = vand.u32 %v1741, 2147483648
    %v1754 = vor.u32 1.1754944e-38, %v1753
    %v1755 = vsel %vm1752, %v1754, %v1750
    %v1756 = vmul.f32 1.0, %v1755
    %v1757 = vmul.f32 %v1736, %v1632
    %v1758 = vmul.f32 %v1717, %v1737
    %v1759 = vadd.f32 %v1757, %v1758
    %v1760 = vtanh.pop %v1759
    %v1761 = vmul.f32 %v1756, %v1760
    %s1762 = smul.addr %s587, 8
    %s1763 = scalar_lea.vmem [#allocation3], %s1762
    %v1764 = vld [vmem:[%s1763] sm:$0xff]
    %v1765 = vld [vmem:[%s1763 + $0x8] sm:$0xff]
    %v1766 = vld [vmem:[%s1763 + $0x10] sm:$0xff]
    %v1767 = vld [vmem:[%s1763 + $0x18] sm:$0xff]
    %v1768 = vpack.c.bf16 %v1761, %v1761
    %v1801 = vunpack.c.l.b16 %v555
    %v1802 = vunpack.c.h.b16 %v555
    %v1803 = vunpack.c.l.b16 %v556
    %v1804 = vunpack.c.h.b16 %v556
    %v1805 = vunpack.c.l.b16 %v557
    %v1806 = vunpack.c.h.b16 %v557
    %v1807 = vunpack.c.l.b16 %v558
    %v1808 = vunpack.c.h.b16 %v558
    %v1809 = vunpack.c.l.b16 %v559
    %v1810 = vunpack.c.h.b16 %v559
    %v1811 = vunpack.c.l.b16 %v560
    %v1812 = vunpack.c.h.b16 %v560
    %v1813 = vunpack.c.l.b16 %v561
    %v1814 = vunpack.c.h.b16 %v561
    %v1815 = vunpack.c.l.b16 %v562
    %v1816 = vunpack.c.h.b16 %v562
    %v1817 = vunpack.c.l.b16 %v563
    %v1818 = vunpack.c.h.b16 %v563
    %v1819 = vunpack.c.l.b16 %v564
    %v1820 = vunpack.c.h.b16 %v564
    %v1821 = vunpack.c.l.b16 %v565
    %v1822 = vunpack.c.h.b16 %v565
    %v1823 = vunpack.c.l.b16 %v566
    %v1824 = vunpack.c.h.b16 %v566
    %v1825 = vunpack.c.l.b16 %v567
    %v1826 = vunpack.c.h.b16 %v567
    %v1827 = vunpack.c.l.b16 %v568
    %v1828 = vunpack.c.h.b16 %v568
    %v1829 = vunpack.c.l.b16 %v569
    %v1830 = vunpack.c.h.b16 %v569
    %v1831 = vunpack.c.l.b16 %v570
    %v1832 = vunpack.c.h.b16 %v570
    %v1833 = vunpack.c.l.b16 %v571
    %v1834 = vunpack.c.h.b16 %v571
    %v1835 = vunpack.c.l.b16 %v572
    %v1836 = vunpack.c.h.b16 %v572
    %v1837 = vunpack.c.l.b16 %v573
    %v1838 = vunpack.c.h.b16 %v573
    %v1839 = vunpack.c.l.b16 %v574
    %v1840 = vunpack.c.h.b16 %v574
    %v1841 = vunpack.c.l.b16 %v575
    %v1842 = vunpack.c.h.b16 %v575
    %v1843 = vunpack.c.l.b16 %v576
    %v1844 = vunpack.c.h.b16 %v576
    %v1845 = vunpack.c.l.b16 %v577
    %v1846 = vunpack.c.h.b16 %v577
    %v1847 = vunpack.c.l.b16 %v578
    %v1848 = vunpack.c.h.b16 %v578
    %v1849 = vunpack.c.l.b16 %v579
    %v1850 = vunpack.c.h.b16 %v579
    %v1851 = vunpack.c.l.b16 %v580
    %v1852 = vunpack.c.h.b16 %v580
    %v1853 = vunpack.c.l.b16 %v581
    %v1854 = vunpack.c.h.b16 %v581
    %v1855 = vunpack.c.l.b16 %v582
    %v1856 = vunpack.c.h.b16 %v582
    %v1857 = vunpack.c.l.b16 %v583
    %v1858 = vunpack.c.h.b16 %v583
    %v1859 = vunpack.c.l.b16 %v584
    %v1860 = vunpack.c.h.b16 %v584
    %v1861 = vunpack.c.l.b16 %v585
    %v1862 = vunpack.c.h.b16 %v585
    %v1863 = vunpack.c.l.b16 %v586
    %v1864 = vunpack.c.h.b16 %v586
    %v1865 = vpack.c.b16 %v1805, %v1801
    %v1866 = vpack.c.b16 %v1806, %v1802
    %v1867 = vpack.c.b16 %v1807, %v1803
    %v1868 = vpack.c.b16 %v1808, %v1804
    %v1869 = vpack.c.b16 %v1813, %v1809
    %v1870 = vpack.c.b16 %v1814, %v1810
    %v1871 = vpack.c.b16 %v1815, %v1811
    %v1872 = vpack.c.b16 %v1816, %v1812
    %v1873 = vpack.c.b16 %v1821, %v1817
    %v1874 = vpack.c.b16 %v1822, %v1818
    %v1875 = vpack.c.b16 %v1823, %v1819
    %v1876 = vpack.c.b16 %v1824, %v1820
    %v1877 = vpack.c.b16 %v1829, %v1825
    %v1878 = vpack.c.b16 %v1830, %v1826
    %v1879 = vpack.c.b16 %v1831, %v1827
    %v1880 = vpack.c.b16 %v1832, %v1828
    %v1881 = vpack.c.b16 %v1837, %v1833
    %v1882 = vpack.c.b16 %v1838, %v1834
    %v1883 = vpack.c.b16 %v1839, %v1835
    %v1884 = vpack.c.b16 %v1840, %v1836
    %v1885 = vpack.c.b16 %v1845, %v1841
    %v1886 = vpack.c.b16 %v1846, %v1842
    %v1887 = vpack.c.b16 %v1847, %v1843
    %v1888 = vpack.c.b16 %v1848, %v1844
    %v1889 = vpack.c.b16 %v1853, %v1849
    %v1890 = vpack.c.b16 %v1854, %v1850
    %v1891 = vpack.c.b16 %v1855, %v1851
    %v1892 = vpack.c.b16 %v1856, %v1852
    %v1893 = vpack.c.b16 %v1861, %v1857
    %v1894 = vpack.c.b16 %v1862, %v1858
    %v1895 = vpack.c.b16 %v1863, %v1859
    %v1896 = vpack.c.b16 %v1864, %v1860
    %1929 = vmatpush.bf16.msra.mxu0 %v1893
    %1930 = vmatpush.bf16.msra.mxu0 %v1889
    %1931 = vmatpush.bf16.msra.mxu0 %v1885
    %1932 = vmatpush.bf16.msra.mxu0 %v1881
    %1933 = vmatpush.bf16.msra.mxu0 %v1877
    %1934 = vmatpush.bf16.msra.mxu0 %v1873
    %1935 = vmatpush.bf16.msra.mxu0 %v1869
    %1936 = vmatpush.bf16.msra.mxu0 %v1865
    %1937 = vmatmul.bf16.gmra.mxu0 %v1768
    %v1938 = vpop.f32.mrf.mxu0
    %v1939 = vadd.f32 0.0, %v1938
    %v1940 = vpop.f32.mrf.mxu0
    %1941 = vdwg.mxu0
    %1942 = vmatpush.bf16.msra.mxu0 %v1894
    %1943 = vmatpush.bf16.msra.mxu0 %v1890
    %1944 = vmatpush.bf16.msra.mxu0 %v1886
    %1945 = vmatpush.bf16.msra.mxu0 %v1882
    %1946 = vmatpush.bf16.msra.mxu0 %v1878
    %1947 = vmatpush.bf16.msra.mxu0 %v1874
    %1948 = vmatpush.bf16.msra.mxu0 %v1870
    %1949 = vmatpush.bf16.msra.mxu0 %v1866
    %1950 = vmatmul.bf16.gmra.mxu0 %v1768
    %v1951 = vpop.f32.mrf.mxu0
    %v1952 = vadd.f32 0.0, %v1951
    %v1953 = vpop.f32.mrf.mxu0
    %1954 = vdwg.mxu0
    %1955 = vmatpush.bf16.msra.mxu0 %v1895
    %1956 = vmatpush.bf16.msra.mxu0 %v1891
    %1957 = vmatpush.bf16.msra.mxu0 %v1887
    %1958 = vmatpush.bf16.msra.mxu0 %v1883
    %1959 = vmatpush.bf16.msra.mxu0 %v1879
    %1960 = vmatpush.bf16.msra.mxu0 %v1875
    %1961 = vmatpush.bf16.msra.mxu0 %v1871
    %1962 = vmatpush.bf16.msra.mxu0 %v1867
    %1963 = vmatmul.bf16.gmra.mxu0 %v1768
    %v1964 = vpop.f32.mrf.mxu0
    %v1965 = vadd.f32 0.0, %v1964
    %v1966 = vpop.f32.mrf.mxu0
    %1967 = vdwg.mxu0
    %1968 = vmatpush.bf16.msra.mxu0 %v1896
    %1969 = vmatpush.bf16.msra.mxu0 %v1892
    %1970 = vmatpush.bf16.msra.mxu0 %v1888
    %1971 = vmatpush.bf16.msra.mxu0 %v1884
    %1972 = vmatpush.bf16.msra.mxu0 %v1880
    %1973 = vmatpush.bf16.msra.mxu0 %v1876
    %1974 = vmatpush.bf16.msra.mxu0 %v1872
    %1975 = vmatpush.bf16.msra.mxu0 %v1868
    %1976 = vmatmul.bf16.gmra.mxu0 %v1768
    %v1977 = vpop.f32.mrf.mxu0
    %v1978 = vadd.f32 0.0, %v1977
    %v1979 = vpop.f32.mrf.mxu0
    %1980 = vdwg.mxu0
    %v1981 = vadd.f32 %v1764, %v1939
    %v1982 = vadd.f32 %v1765, %v1952
    %v1983 = vadd.f32 %v1766, %v1965
    %v1984 = vadd.f32 %v1767, %v1978
    %v1985 = vxor.u32 %v1981, 2147483648
    %v1986 = vmul.f32 %v1985, 1.442695
    %v1987 = vpow.pop %v1986
    %v1988 = vadd.f32 %v1987, 1.0
    %v1989 = vrcp.pop %v1988
    %v1990 = vmul.f32 %v1988, %v1989
    %v1991 = vsub.f32 1.0, %v1990
    %v1992 = vmul.f32 %v1989, %v1991
    %v1993 = vadd.f32 %v1989, %v1992
    %vm1994 = vweird.f32 %v1988
    %vm1995 = vweird.f32 %v1989
    %vm1996 = vmor %vm1994, %vm1995
    %v1997 = vsel %vm1996, %v1989, %v1993
    %v1998 = vand.u32 2147483647, %v1988
    %vm1999 = vcmp.eq.f32.partialorder %v1998, 8.507059e+37
    %v2000 = vand.u32 %v1988, 2147483648
    %v2001 = vor.u32 1.1754944e-38, %v2000
    %v2002 = vsel %vm1999, %v2001, %v1997
    %v2003 = vmul.f32 1.0, %v2002
    %v2004 = vxor.u32 %v1982, 2147483648
    %v2005 = vmul.f32 %v2004, 1.442695
    %v2006 = vpow.pop %v2005
    %v2007 = vadd.f32 %v2006, 1.0
    %v2008 = vrcp.pop %v2007
    %v2009 = vmul.f32 %v2007, %v2008
    %v2010 = vsub.f32 1.0, %v2009
    %v2011 = vmul.f32 %v2008, %v2010
    %v2012 = vadd.f32 %v2008, %v2011
    %vm2013 = vweird.f32 %v2007
    %vm2014 = vweird.f32 %v2008
    %vm2015 = vmor %vm2013, %vm2014
    %v2016 = vsel %vm2015, %v2008, %v2012
    %v2017 = vand.u32 2147483647, %v2007
    %vm2018 = vcmp.eq.f32.partialorder %v2017, 8.507059e+37
    %v2019 = vand.u32 %v2007, 2147483648
    %v2020 = vor.u32 1.1754944e-38, %v2019
    %v2021 = vsel %vm2018, %v2020, %v2016
    %v2022 = vmul.f32 1.0, %v2021
    %v2023 = vtanh.pop %v1983
    %v2024 = vxor.u32 %v1984, 2147483648
    %v2025 = vmul.f32 %v2024, 1.442695
    %v2026 = vpow.pop %v2025
    %v2027 = vadd.f32 %v2026, 1.0
    %v2028 = vrcp.pop %v2027
    %v2029 = vmul.f32 %v2027, %v2028
    %v2030 = vsub.f32 1.0, %v2029
    %v2031 = vmul.f32 %v2028, %v2030
    %v2032 = vadd.f32 %v2028, %v2031
    %vm2033 = vweird.f32 %v2027
    %vm2034 = vweird.f32 %v2028
    %vm2035 = vmor %vm2033, %vm2034
    %v2036 = vsel %vm2035, %v2028, %v2032
    %v2037 = vand.u32 2147483647, %v2027
    %vm2038 = vcmp.eq.f32.partialorder %v2037, 8.507059e+37
    %v2039 = vand.u32 %v2027, 2147483648
    %v2040 = vor.u32 1.1754944e-38, %v2039
    %v2041 = vsel %vm2038, %v2040, %v2036
    %v2042 = vmul.f32 1.0, %v2041
    %v2043 = vmul.f32 %v2022, %v1759
    %v2044 = vmul.f32 %v2003, %v2023
    %v2045 = vadd.f32 %v2043, %v2044
    %v2046 = vtanh.pop %v2045
    %v2047 = vmul.f32 %v2042, %v2046
    %v2048 = vpack.c.bf16 %v2047, %v2047
    %2049 = vst [vmem:[#allocation4] sm:$0xf] %v2048
    %s2050 = smul.addr %s873, 8
    %s2051 = scalar_lea.vmem [#allocation3], %s2050
    %v2052 = vld [vmem:[%s2051] sm:$0xff]
    %v2053 = vld [vmem:[%s2051 + $0x8] sm:$0xff]
    %v2054 = vld [vmem:[%s2051 + $0x10] sm:$0xff]
    %v2055 = vld [vmem:[%s2051 + $0x18] sm:$0xff]
    %2056 = vmatpush.bf16.msra.mxu0 %v1893
    %2057 = vmatpush.bf16.msra.mxu0 %v1889
    %2058 = vmatpush.bf16.msra.mxu0 %v1885
    %2059 = vmatpush.bf16.msra.mxu0 %v1881
    %2060 = vmatpush.bf16.msra.mxu0 %v1877
    %2061 = vmatpush.bf16.msra.mxu0 %v1873
    %2062 = vmatpush.bf16.msra.mxu0 %v1869
    %2063 = vmatpush.bf16.msra.mxu0 %v1865
    %2064 = vmatmul.bf16.gmra.mxu0 %v2048
    %v2065 = vpop.f32.mrf.mxu0
    %v2066 = vadd.f32 0.0, %v2065
    %v2067 = vpop.f32.mrf.mxu0
    %2068 = vdwg.mxu0
    %2069 = vmatpush.bf16.msra.mxu0 %v1894
    %2070 = vmatpush.bf16.msra.mxu0 %v1890
    %2071 = vmatpush.bf16.msra.mxu0 %v1886
    %2072 = vmatpush.bf16.msra.mxu0 %v1882
    %2073 = vmatpush.bf16.msra.mxu0 %v1878
    %2074 = vmatpush.bf16.msra.mxu0 %v1874
    %2075 = vmatpush.bf16.msra.mxu0 %v1870
    %2076 = vmatpush.bf16.msra.mxu0 %v1866
    %2077 = vmatmul.bf16.gmra.mxu0 %v2048
    %v2078 = vpop.f32.mrf.mxu0
    %v2079 = vadd.f32 0.0, %v2078
    %v2080 = vpop.f32.mrf.mxu0
    %2081 = vdwg.mxu0
    %2082 = vmatpush.bf16.msra.mxu0 %v1895
    %2083 = vmatpush.bf16.msra.mxu0 %v1891
    %2084 = vmatpush.bf16.msra.mxu0 %v1887
    %2085 = vmatpush.bf16.msra.mxu0 %v1883
    %2086 = vmatpush.bf16.msra.mxu0 %v1879
    %2087 = vmatpush.bf16.msra.mxu0 %v1875
    %2088 = vmatpush.bf16.msra.mxu0 %v1871
    %2089 = vmatpush.bf16.msra.mxu0 %v1867
    %2090 = vmatmul.bf16.gmra.mxu0 %v2048
    %v2091 = vpop.f32.mrf.mxu0
    %v2092 = vadd.f32 0.0, %v2091
    %v2093 = vpop.f32.mrf.mxu0
    %2094 = vdwg.mxu0
    %2095 = vmatpush.bf16.msra.mxu0 %v1896
    %2096 = vmatpush.bf16.msra.mxu0 %v1892
    %2097 = vmatpush.bf16.msra.mxu0 %v1888
    %2098 = vmatpush.bf16.msra.mxu0 %v1884
    %2099 = vmatpush.bf16.msra.mxu0 %v1880
    %2100 = vmatpush.bf16.msra.mxu0 %v1876
    %2101 = vmatpush.bf16.msra.mxu0 %v1872
    %2102 = vmatpush.bf16.msra.mxu0 %v1868
    %2103 = vmatmul.bf16.gmra.mxu0 %v2048
    %v2104 = vpop.f32.mrf.mxu0
    %v2105 = vadd.f32 0.0, %v2104
    %v2106 = vpop.f32.mrf.mxu0
    %2107 = vdwg.mxu0
    %v2108 = vadd.f32 %v2052, %v2066
    %v2109 = vadd.f32 %v2053, %v2079
    %v2110 = vadd.f32 %v2054, %v2092
    %v2111 = vadd.f32 %v2055, %v2105
    %v2112 = vxor.u32 %v2108, 2147483648
    %v2113 = vmul.f32 %v2112, 1.442695
    %v2114 = vpow.pop %v2113
    %v2115 = vadd.f32 %v2114, 1.0
    %v2116 = vrcp.pop %v2115
    %v2117 = vmul.f32 %v2115, %v2116
    %v2118 = vsub.f32 1.0, %v2117
    %v2119 = vmul.f32 %v2116, %v2118
    %v2120 = vadd.f32 %v2116, %v2119
    %vm2121 = vweird.f32 %v2115
    %vm2122 = vweird.f32 %v2116
    %vm2123 = vmor %vm2121, %vm2122
    %v2124 = vsel %vm2123, %v2116, %v2120
    %v2125 = vand.u32 2147483647, %v2115
    %vm2126 = vcmp.eq.f32.partialorder %v2125, 8.507059e+37
    %v2127 = vand.u32 %v2115, 2147483648
    %v2128 = vor.u32 1.1754944e-38, %v2127
    %v2129 = vsel %vm2126, %v2128, %v2124
    %v2130 = vmul.f32 1.0, %v2129
    %v2131 = vxor.u32 %v2109, 2147483648
    %v2132 = vmul.f32 %v2131, 1.442695
    %v2133 = vpow.pop %v2132
    %v2134 = vadd.f32 %v2133, 1.0
    %v2135 = vrcp.pop %v2134
    %v2136 = vmul.f32 %v2134, %v2135
    %v2137 = vsub.f32 1.0, %v2136
    %v2138 = vmul.f32 %v2135, %v2137
    %v2139 = vadd.f32 %v2135, %v2138
    %vm2140 = vweird.f32 %v2134
    %vm2141 = vweird.f32 %v2135
    %vm2142 = vmor %vm2140, %vm2141
    %v2143 = vsel %vm2142, %v2135, %v2139
    %v2144 = vand.u32 2147483647, %v2134
    %vm2145 = vcmp.eq.f32.partialorder %v2144, 8.507059e+37
    %v2146 = vand.u32 %v2134, 2147483648
    %v2147 = vor.u32 1.1754944e-38, %v2146
    %v2148 = vsel %vm2145, %v2147, %v2143
    %v2149 = vmul.f32 1.0, %v2148
    %v2150 = vtanh.pop %v2110
    %v2151 = vxor.u32 %v2111, 2147483648
    %v2152 = vmul.f32 %v2151, 1.442695
    %v2153 = vpow.pop %v2152
    %v2154 = vadd.f32 %v2153, 1.0
    %v2155 = vrcp.pop %v2154
    %v2156 = vmul.f32 %v2154, %v2155
    %v2157 = vsub.f32 1.0, %v2156
    %v2158 = vmul.f32 %v2155, %v2157
    %v2159 = vadd.f32 %v2155, %v2158
    %vm2160 = vweird.f32 %v2154
    %vm2161 = vweird.f32 %v2155
    %vm2162 = vmor %vm2160, %vm2161
    %v2163 = vsel %vm2162, %v2155, %v2159
    %v2164 = vand.u32 2147483647, %v2154
    %vm2165 = vcmp.eq.f32.partialorder %v2164, 8.507059e+37
    %v2166 = vand.u32 %v2154, 2147483648
    %v2167 = vor.u32 1.1754944e-38, %v2166
    %v2168 = vsel %vm2165, %v2167, %v2163
    %v2169 = vmul.f32 1.0, %v2168
    %v2170 = vmul.f32 %v2149, %v2045
    %v2171 = vmul.f32 %v2130, %v2150
    %v2172 = vadd.f32 %v2170, %v2171
    %v2173 = vtanh.pop %v2172
    %v2174 = vmul.f32 %v2169, %v2173
    %v2175 = vpack.c.bf16 %v2174, %v2174
    %s2176 = scalar_lea.vmem [#allocation4], 4
    %2177 = vst [vmem:[%s2176] sm:$0xf] %v2175
    %s2178 = smul.addr %s1000, 8
    %s2179 = scalar_lea.vmem [#allocation3], %s2178
    %v2180 = vld [vmem:[%s2179] sm:$0xff]
    %v2181 = vld [vmem:[%s2179 + $0x8] sm:$0xff]
    %v2182 = vld [vmem:[%s2179 + $0x10] sm:$0xff]
    %v2183 = vld [vmem:[%s2179 + $0x18] sm:$0xff]
    %2184 = vmatpush.bf16.msra.mxu0 %v1893
    %2185 = vmatpush.bf16.msra.mxu0 %v1889
    %2186 = vmatpush.bf16.msra.mxu0 %v1885
    %2187 = vmatpush.bf16.msra.mxu0 %v1881
    %2188 = vmatpush.bf16.msra.mxu0 %v1877
    %2189 = vmatpush.bf16.msra.mxu0 %v1873
    %2190 = vmatpush.bf16.msra.mxu0 %v1869
    %2191 = vmatpush.bf16.msra.mxu0 %v1865
    %2192 = vmatmul.bf16.gmra.mxu0 %v2175
    %v2193 = vpop.f32.mrf.mxu0
    %v2194 = vadd.f32 0.0, %v2193
    %v2195 = vpop.f32.mrf.mxu0
    %2196 = vdwg.mxu0
    %2197 = vmatpush.bf16.msra.mxu0 %v1894
    %2198 = vmatpush.bf16.msra.mxu0 %v1890
    %2199 = vmatpush.bf16.msra.mxu0 %v1886
    %2200 = vmatpush.bf16.msra.mxu0 %v1882
    %2201 = vmatpush.bf16.msra.mxu0 %v1878
    %2202 = vmatpush.bf16.msra.mxu0 %v1874
    %2203 = vmatpush.bf16.msra.mxu0 %v1870
    %2204 = vmatpush.bf16.msra.mxu0 %v1866
    %2205 = vmatmul.bf16.gmra.mxu0 %v2175
    %v2206 = vpop.f32.mrf.mxu0
    %v2207 = vadd.f32 0.0, %v2206
    %v2208 = vpop.f32.mrf.mxu0
    %2209 = vdwg.mxu0
    %2210 = vmatpush.bf16.msra.mxu0 %v1895
    %2211 = vmatpush.bf16.msra.mxu0 %v1891
    %2212 = vmatpush.bf16.msra.mxu0 %v1887
    %2213 = vmatpush.bf16.msra.mxu0 %v1883
    %2214 = vmatpush.bf16.msra.mxu0 %v1879
    %2215 = vmatpush.bf16.msra.mxu0 %v1875
    %2216 = vmatpush.bf16.msra.mxu0 %v1871
    %2217 = vmatpush.bf16.msra.mxu0 %v1867
    %2218 = vmatmul.bf16.gmra.mxu0 %v2175
    %v2219 = vpop.f32.mrf.mxu0
    %v2220 = vadd.f32 0.0, %v2219
    %v2221 = vpop.f32.mrf.mxu0
    %2222 = vdwg.mxu0
    %2223 = vmatpush.bf16.msra.mxu0 %v1896
    %2224 = vmatpush.bf16.msra.mxu0 %v1892
    %2225 = vmatpush.bf16.msra.mxu0 %v1888
    %2226 = vmatpush.bf16.msra.mxu0 %v1884
    %2227 = vmatpush.bf16.msra.mxu0 %v1880
    %2228 = vmatpush.bf16.msra.mxu0 %v1876
    %2229 = vmatpush.bf16.msra.mxu0 %v1872
    %2230 = vmatpush.bf16.msra.mxu0 %v1868
    %2231 = vmatmul.bf16.gmra.mxu0 %v2175
    %v2232 = vpop.f32.mrf.mxu0
    %v2233 = vadd.f32 0.0, %v2232
    %v2234 = vpop.f32.mrf.mxu0
    %2235 = vdwg.mxu0
    %v2236 = vadd.f32 %v2180, %v2194
    %v2237 = vadd.f32 %v2181, %v2207
    %v2238 = vadd.f32 %v2182, %v2220
    %v2239 = vadd.f32 %v2183, %v2233
    %v2240 = vxor.u32 %v2236, 2147483648
    %v2241 = vmul.f32 %v2240, 1.442695
    %v2242 = vpow.pop %v2241
    %v2243 = vadd.f32 %v2242, 1.0
    %v2244 = vrcp.pop %v2243
    %v2245 = vmul.f32 %v2243, %v2244
    %v2246 = vsub.f32 1.0, %v2245
    %v2247 = vmul.f32 %v2244, %v2246
    %v2248 = vadd.f32 %v2244, %v2247
    %vm2249 = vweird.f32 %v2243
    %vm2250 = vweird.f32 %v2244
    %vm2251 = vmor %vm2249, %vm2250
    %v2252 = vsel %vm2251, %v2244, %v2248
    %v2253 = vand.u32 2147483647, %v2243
    %vm2254 = vcmp.eq.f32.partialorder %v2253, 8.507059e+37
    %v2255 = vand.u32 %v2243, 2147483648
    %v2256 = vor.u32 1.1754944e-38, %v2255
    %v2257 = vsel %vm2254, %v2256, %v2252
    %v2258 = vmul.f32 1.0, %v2257
    %v2259 = vxor.u32 %v2237, 2147483648
    %v2260 = vmul.f32 %v2259, 1.442695
    %v2261 = vpow.pop %v2260
    %v2262 = vadd.f32 %v2261, 1.0
    %v2263 = vrcp.pop %v2262
    %v2264 = vmul.f32 %v2262, %v2263
    %v2265 = vsub.f32 1.0, %v2264
    %v2266 = vmul.f32 %v2263, %v2265
    %v2267 = vadd.f32 %v2263, %v2266
    %vm2268 = vweird.f32 %v2262
    %vm2269 = vweird.f32 %v2263
    %vm2270 = vmor %vm2268, %vm2269
    %v2271 = vsel %vm2270, %v2263, %v2267
    %v2272 = vand.u32 2147483647, %v2262
    %vm2273 = vcmp.eq.f32.partialorder %v2272, 8.507059e+37
    %v2274 = vand.u32 %v2262, 2147483648
    %v2275 = vor.u32 1.1754944e-38, %v2274
    %v2276 = vsel %vm2273, %v2275, %v2271
    %v2277 = vmul.f32 1.0, %v2276
    %v2278 = vtanh.pop %v2238
    %v2279 = vxor.u32 %v2239, 2147483648
    %v2280 = vmul.f32 %v2279, 1.442695
    %v2281 = vpow.pop %v2280
    %v2282 = vadd.f32 %v2281, 1.0
    %v2283 = vrcp.pop %v2282
    %v2284 = vmul.f32 %v2282, %v2283
    %v2285 = vsub.f32 1.0, %v2284
    %v2286 = vmul.f32 %v2283, %v2285
    %v2287 = vadd.f32 %v2283, %v2286
    %vm2288 = vweird.f32 %v2282
    %vm2289 = vweird.f32 %v2283
    %vm2290 = vmor %vm2288, %vm2289
    %v2291 = vsel %vm2290, %v2283, %v2287
    %v2292 = vand.u32 2147483647, %v2282
    %vm2293 = vcmp.eq.f32.partialorder %v2292, 8.507059e+37
    %v2294 = vand.u32 %v2282, 2147483648
    %v2295 = vor.u32 1.1754944e-38, %v2294
    %v2296 = vsel %vm2293, %v2295, %v2291
    %v2297 = vmul.f32 1.0, %v2296
    %v2298 = vmul.f32 %v2277, %v2172
    %v2299 = vmul.f32 %v2258, %v2278
    %v2300 = vadd.f32 %v2298, %v2299
    %v2301 = vtanh.pop %v2300
    %v2302 = vmul.f32 %v2297, %v2301
    %v2303 = vpack.c.bf16 %v2302, %v2302
    %s2304 = scalar_lea.vmem [#allocation4], 8
    %2305 = vst [vmem:[%s2304] sm:$0xf] %v2303
    %s2306 = smul.addr %s1127, 8
    %s2307 = scalar_lea.vmem [#allocation3], %s2306
    %v2308 = vld [vmem:[%s2307] sm:$0xff]
    %v2309 = vld [vmem:[%s2307 + $0x8] sm:$0xff]
    %v2310 = vld [vmem:[%s2307 + $0x10] sm:$0xff]
    %v2311 = vld [vmem:[%s2307 + $0x18] sm:$0xff]
    %2312 = vmatpush.bf16.msra.mxu0 %v1893
    %2313 = vmatpush.bf16.msra.mxu0 %v1889
    %2314 = vmatpush.bf16.msra.mxu0 %v1885
    %2315 = vmatpush.bf16.msra.mxu0 %v1881
    %2316 = vmatpush.bf16.msra.mxu0 %v1877
    %2317 = vmatpush.bf16.msra.mxu0 %v1873
    %2318 = vmatpush.bf16.msra.mxu0 %v1869
    %2319 = vmatpush.bf16.msra.mxu0 %v1865
    %2320 = vmatmul.bf16.gmra.mxu0 %v2303
    %v2321 = vpop.f32.mrf.mxu0
    %v2322 = vadd.f32 0.0, %v2321
    %v2323 = vpop.f32.mrf.mxu0
    %2324 = vdwg.mxu0
    %2325 = vmatpush.bf16.msra.mxu0 %v1894
    %2326 = vmatpush.bf16.msra.mxu0 %v1890
    %2327 = vmatpush.bf16.msra.mxu0 %v1886
    %2328 = vmatpush.bf16.msra.mxu0 %v1882
    %2329 = vmatpush.bf16.msra.mxu0 %v1878
    %2330 = vmatpush.bf16.msra.mxu0 %v1874
    %2331 = vmatpush.bf16.msra.mxu0 %v1870
    %2332 = vmatpush.bf16.msra.mxu0 %v1866
    %2333 = vmatmul.bf16.gmra.mxu0 %v2303
    %v2334 = vpop.f32.mrf.mxu0
    %v2335 = vadd.f32 0.0, %v2334
    %v2336 = vpop.f32.mrf.mxu0
    %2337 = vdwg.mxu0
    %2338 = vmatpush.bf16.msra.mxu0 %v1895
    %2339 = vmatpush.bf16.msra.mxu0 %v1891
    %2340 = vmatpush.bf16.msra.mxu0 %v1887
    %2341 = vmatpush.bf16.msra.mxu0 %v1883
    %2342 = vmatpush.bf16.msra.mxu0 %v1879
    %2343 = vmatpush.bf16.msra.mxu0 %v1875
    %2344 = vmatpush.bf16.msra.mxu0 %v1871
    %2345 = vmatpush.bf16.msra.mxu0 %v1867
    %2346 = vmatmul.bf16.gmra.mxu0 %v2303
    %v2347 = vpop.f32.mrf.mxu0
    %v2348 = vadd.f32 0.0, %v2347
    %v2349 = vpop.f32.mrf.mxu0
    %2350 = vdwg.mxu0
    %2351 = vmatpush.bf16.msra.mxu0 %v1896
    %2352 = vmatpush.bf16.msra.mxu0 %v1892
    %2353 = vmatpush.bf16.msra.mxu0 %v1888
    %2354 = vmatpush.bf16.msra.mxu0 %v1884
    %2355 = vmatpush.bf16.msra.mxu0 %v1880
    %2356 = vmatpush.bf16.msra.mxu0 %v1876
    %2357 = vmatpush.bf16.msra.mxu0 %v1872
    %2358 = vmatpush.bf16.msra.mxu0 %v1868
    %2359 = vmatmul.bf16.gmra.mxu0 %v2303
    %v2360 = vpop.f32.mrf.mxu0
    %v2361 = vadd.f32 0.0, %v2360
    %v2362 = vpop.f32.mrf.mxu0
    %2363 = vdwg.mxu0
    %v2364 = vadd.f32 %v2308, %v2322
    %v2365 = vadd.f32 %v2309, %v2335
    %v2366 = vadd.f32 %v2310, %v2348
    %v2367 = vadd.f32 %v2311, %v2361
    %v2368 = vxor.u32 %v2364, 2147483648
    %v2369 = vmul.f32 %v2368, 1.442695
    %v2370 = vpow.pop %v2369
    %v2371 = vadd.f32 %v2370, 1.0
    %v2372 = vrcp.pop %v2371
    %v2373 = vmul.f32 %v2371, %v2372
    %v2374 = vsub.f32 1.0, %v2373
    %v2375 = vmul.f32 %v2372, %v2374
    %v2376 = vadd.f32 %v2372, %v2375
    %vm2377 = vweird.f32 %v2371
    %vm2378 = vweird.f32 %v2372
    %vm2379 = vmor %vm2377, %vm2378
    %v2380 = vsel %vm2379, %v2372, %v2376
    %v2381 = vand.u32 2147483647, %v2371
    %vm2382 = vcmp.eq.f32.partialorder %v2381, 8.507059e+37
    %v2383 = vand.u32 %v2371, 2147483648
    %v2384 = vor.u32 1.1754944e-38, %v2383
    %v2385 = vsel %vm2382, %v2384, %v2380
    %v2386 = vmul.f32 1.0, %v2385
    %v2387 = vxor.u32 %v2365, 2147483648
    %v2388 = vmul.f32 %v2387, 1.442695
    %v2389 = vpow.pop %v2388
    %v2390 = vadd.f32 %v2389, 1.0
    %v2391 = vrcp.pop %v2390
    %v2392 = vmul.f32 %v2390, %v2391
    %v2393 = vsub.f32 1.0, %v2392
    %v2394 = vmul.f32 %v2391, %v2393
    %v2395 = vadd.f32 %v2391, %v2394
    %vm2396 = vweird.f32 %v2390
    %vm2397 = vweird.f32 %v2391
    %vm2398 = vmor %vm2396, %vm2397
    %v2399 = vsel %vm2398, %v2391, %v2395
    %v2400 = vand.u32 2147483647, %v2390
    %vm2401 = vcmp.eq.f32.partialorder %v2400, 8.507059e+37
    %v2402 = vand.u32 %v2390, 2147483648
    %v2403 = vor.u32 1.1754944e-38, %v2402
    %v2404 = vsel %vm2401, %v2403, %v2399
    %v2405 = vmul.f32 1.0, %v2404
    %v2406 = vtanh.pop %v2366
    %v2407 = vxor.u32 %v2367, 2147483648
    %v2408 = vmul.f32 %v2407, 1.442695
    %v2409 = vpow.pop %v2408
    %v2410 = vadd.f32 %v2409, 1.0
    %v2411 = vrcp.pop %v2410
    %v2412 = vmul.f32 %v2410, %v2411
    %v2413 = vsub.f32 1.0, %v2412
    %v2414 = vmul.f32 %v2411, %v2413
    %v2415 = vadd.f32 %v2411, %v2414
    %vm2416 = vweird.f32 %v2410
    %vm2417 = vweird.f32 %v2411
    %vm2418 = vmor %vm2416, %vm2417
    %v2419 = vsel %vm2418, %v2411, %v2415
    %v2420 = vand.u32 2147483647, %v2410
    %vm2421 = vcmp.eq.f32.partialorder %v2420, 8.507059e+37
    %v2422 = vand.u32 %v2410, 2147483648
    %v2423 = vor.u32 1.1754944e-38, %v2422
    %v2424 = vsel %vm2421, %v2423, %v2419
    %v2425 = vmul.f32 1.0, %v2424
    %v2426 = vmul.f32 %v2405, %v2300
    %v2427 = vmul.f32 %v2386, %v2406
    %v2428 = vadd.f32 %v2426, %v2427
    %v2429 = vtanh.pop %v2428
    %v2430 = vmul.f32 %v2425, %v2429
    %v2431 = vpack.c.bf16 %v2430, %v2430
    %s2432 = scalar_lea.vmem [#allocation4], 12
    %2433 = vst [vmem:[%s2432] sm:$0xf] %v2431
    %s2434 = smul.addr %s1254, 8
    %s2435 = scalar_lea.vmem [#allocation3], %s2434
    %v2436 = vld [vmem:[%s2435] sm:$0xff]
    %v2437 = vld [vmem:[%s2435 + $0x8] sm:$0xff]
    %v2438 = vld [vmem:[%s2435 + $0x10] sm:$0xff]
    %v2439 = vld [vmem:[%s2435 + $0x18] sm:$0xff]
    %2440 = vmatpush.bf16.msra.mxu0 %v1893
    %2441 = vmatpush.bf16.msra.mxu0 %v1889
    %2442 = vmatpush.bf16.msra.mxu0 %v1885
    %2443 = vmatpush.bf16.msra.mxu0 %v1881
    %2444 = vmatpush.bf16.msra.mxu0 %v1877
    %2445 = vmatpush.bf16.msra.mxu0 %v1873
    %2446 = vmatpush.bf16.msra.mxu0 %v1869
    %2447 = vmatpush.bf16.msra.mxu0 %v1865
    %2448 = vmatmul.bf16.gmra.mxu0 %v2431
    %v2449 = vpop.f32.mrf.mxu0
    %v2450 = vadd.f32 0.0, %v2449
    %v2451 = vpop.f32.mrf.mxu0
    %2452 = vdwg.mxu0
    %2453 = vmatpush.bf16.msra.mxu0 %v1894
    %2454 = vmatpush.bf16.msra.mxu0 %v1890
    %2455 = vmatpush.bf16.msra.mxu0 %v1886
    %2456 = vmatpush.bf16.msra.mxu0 %v1882
    %2457 = vmatpush.bf16.msra.mxu0 %v1878
    %2458 = vmatpush.bf16.msra.mxu0 %v1874
    %2459 = vmatpush.bf16.msra.mxu0 %v1870
    %2460 = vmatpush.bf16.msra.mxu0 %v1866
    %2461 = vmatmul.bf16.gmra.mxu0 %v2431
    %v2462 = vpop.f32.mrf.mxu0
    %v2463 = vadd.f32 0.0, %v2462
    %v2464 = vpop.f32.mrf.mxu0
    %2465 = vdwg.mxu0
    %2466 = vmatpush.bf16.msra.mxu0 %v1895
    %2467 = vmatpush.bf16.msra.mxu0 %v1891
    %2468 = vmatpush.bf16.msra.mxu0 %v1887
    %2469 = vmatpush.bf16.msra.mxu0 %v1883
    %2470 = vmatpush.bf16.msra.mxu0 %v1879
    %2471 = vmatpush.bf16.msra.mxu0 %v1875
    %2472 = vmatpush.bf16.msra.mxu0 %v1871
    %2473 = vmatpush.bf16.msra.mxu0 %v1867
    %2474 = vmatmul.bf16.gmra.mxu0 %v2431
    %v2475 = vpop.f32.mrf.mxu0
    %v2476 = vadd.f32 0.0, %v2475
    %v2477 = vpop.f32.mrf.mxu0
    %2478 = vdwg.mxu0
    %2479 = vmatpush.bf16.msra.mxu0 %v1896
    %2480 = vmatpush.bf16.msra.mxu0 %v1892
    %2481 = vmatpush.bf16.msra.mxu0 %v1888
    %2482 = vmatpush.bf16.msra.mxu0 %v1884
    %2483 = vmatpush.bf16.msra.mxu0 %v1880
    %2484 = vmatpush.bf16.msra.mxu0 %v1876
    %2485 = vmatpush.bf16.msra.mxu0 %v1872
    %2486 = vmatpush.bf16.msra.mxu0 %v1868
    %2487 = vmatmul.bf16.gmra.mxu0 %v2431
    %v2488 = vpop.f32.mrf.mxu0
    %v2489 = vadd.f32 0.0, %v2488
    %v2490 = vpop.f32.mrf.mxu0
    %2491 = vdwg.mxu0
    %v2492 = vadd.f32 %v2436, %v2450
    %v2493 = vadd.f32 %v2437, %v2463
    %v2494 = vadd.f32 %v2438, %v2476
    %v2495 = vadd.f32 %v2439, %v2489
    %v2496 = vxor.u32 %v2492, 2147483648
    %v2497 = vmul.f32 %v2496, 1.442695
    %v2498 = vpow.pop %v2497
    %v2499 = vadd.f32 %v2498, 1.0
    %v2500 = vrcp.pop %v2499
    %v2501 = vmul.f32 %v2499, %v2500
    %v2502 = vsub.f32 1.0, %v2501
    %v2503 = vmul.f32 %v2500, %v2502
    %v2504 = vadd.f32 %v2500, %v2503
    %vm2505 = vweird.f32 %v2499
    %vm2506 = vweird.f32 %v2500
    %vm2507 = vmor %vm2505, %vm2506
    %v2508 = vsel %vm2507, %v2500, %v2504
    %v2509 = vand.u32 2147483647, %v2499
    %vm2510 = vcmp.eq.f32.partialorder %v2509, 8.507059e+37
    %v2511 = vand.u32 %v2499, 2147483648
    %v2512 = vor.u32 1.1754944e-38, %v2511
    %v2513 = vsel %vm2510, %v2512, %v2508
    %v2514 = vmul.f32 1.0, %v2513
    %v2515 = vxor.u32 %v2493, 2147483648
    %v2516 = vmul.f32 %v2515, 1.442695
    %v2517 = vpow.pop %v2516
    %v2518 = vadd.f32 %v2517, 1.0
    %v2519 = vrcp.pop %v2518
    %v2520 = vmul.f32 %v2518, %v2519
    %v2521 = vsub.f32 1.0, %v2520
    %v2522 = vmul.f32 %v2519, %v2521
    %v2523 = vadd.f32 %v2519, %v2522
    %vm2524 = vweird.f32 %v2518
    %vm2525 = vweird.f32 %v2519
    %vm2526 = vmor %vm2524, %vm2525
    %v2527 = vsel %vm2526, %v2519, %v2523
    %v2528 = vand.u32 2147483647, %v2518
    %vm2529 = vcmp.eq.f32.partialorder %v2528, 8.507059e+37
    %v2530 = vand.u32 %v2518, 2147483648
    %v2531 = vor.u32 1.1754944e-38, %v2530
    %v2532 = vsel %vm2529, %v2531, %v2527
    %v2533 = vmul.f32 1.0, %v2532
    %v2534 = vtanh.pop %v2494
    %v2535 = vxor.u32 %v2495, 2147483648
    %v2536 = vmul.f32 %v2535, 1.442695
    %v2537 = vpow.pop %v2536
    %v2538 = vadd.f32 %v2537, 1.0
    %v2539 = vrcp.pop %v2538
    %v2540 = vmul.f32 %v2538, %v2539
    %v2541 = vsub.f32 1.0, %v2540
    %v2542 = vmul.f32 %v2539, %v2541
    %v2543 = vadd.f32 %v2539, %v2542
    %vm2544 = vweird.f32 %v2538
    %vm2545 = vweird.f32 %v2539
    %vm2546 = vmor %vm2544, %vm2545
    %v2547 = vsel %vm2546, %v2539, %v2543
    %v2548 = vand.u32 2147483647, %v2538
    %vm2549 = vcmp.eq.f32.partialorder %v2548, 8.507059e+37
    %v2550 = vand.u32 %v2538, 2147483648
    %v2551 = vor.u32 1.1754944e-38, %v2550
    %v2552 = vsel %vm2549, %v2551, %v2547
    %v2553 = vmul.f32 1.0, %v2552
    %v2554 = vmul.f32 %v2533, %v2428
    %v2555 = vmul.f32 %v2514, %v2534
    %v2556 = vadd.f32 %v2554, %v2555
    %v2557 = vtanh.pop %v2556
    %v2558 = vmul.f32 %v2553, %v2557
    %v2559 = vpack.c.bf16 %v2558, %v2558
    %s2560 = scalar_lea.vmem [#allocation4], 16
    %2561 = vst [vmem:[%s2560] sm:$0xf] %v2559
    %s2562 = smul.addr %s1381, 8
    %s2563 = scalar_lea.vmem [#allocation3], %s2562
    %v2564 = vld [vmem:[%s2563] sm:$0xff]
    %v2565 = vld [vmem:[%s2563 + $0x8] sm:$0xff]
    %v2566 = vld [vmem:[%s2563 + $0x10] sm:$0xff]
    %v2567 = vld [vmem:[%s2563 + $0x18] sm:$0xff]
    %2568 = vmatpush.bf16.msra.mxu0 %v1893
    %2569 = vmatpush.bf16.msra.mxu0 %v1889
    %2570 = vmatpush.bf16.msra.mxu0 %v1885
    %2571 = vmatpush.bf16.msra.mxu0 %v1881
    %2572 = vmatpush.bf16.msra.mxu0 %v1877
    %2573 = vmatpush.bf16.msra.mxu0 %v1873
    %2574 = vmatpush.bf16.msra.mxu0 %v1869
    %2575 = vmatpush.bf16.msra.mxu0 %v1865
    %2576 = vmatmul.bf16.gmra.mxu0 %v2559
    %v2577 = vpop.f32.mrf.mxu0
    %v2578 = vadd.f32 0.0, %v2577
    %v2579 = vpop.f32.mrf.mxu0
    %2580 = vdwg.mxu0
    %2581 = vmatpush.bf16.msra.mxu0 %v1894
    %2582 = vmatpush.bf16.msra.mxu0 %v1890
    %2583 = vmatpush.bf16.msra.mxu0 %v1886
    %2584 = vmatpush.bf16.msra.mxu0 %v1882
    %2585 = vmatpush.bf16.msra.mxu0 %v1878
    %2586 = vmatpush.bf16.msra.mxu0 %v1874
    %2587 = vmatpush.bf16.msra.mxu0 %v1870
    %2588 = vmatpush.bf16.msra.mxu0 %v1866
    %2589 = vmatmul.bf16.gmra.mxu0 %v2559
    %v2590 = vpop.f32.mrf.mxu0
    %v2591 = vadd.f32 0.0, %v2590
    %v2592 = vpop.f32.mrf.mxu0
    %2593 = vdwg.mxu0
    %2594 = vmatpush.bf16.msra.mxu0 %v1895
    %2595 = vmatpush.bf16.msra.mxu0 %v1891
    %2596 = vmatpush.bf16.msra.mxu0 %v1887
    %2597 = vmatpush.bf16.msra.mxu0 %v1883
    %2598 = vmatpush.bf16.msra.mxu0 %v1879
    %2599 = vmatpush.bf16.msra.mxu0 %v1875
    %2600 = vmatpush.bf16.msra.mxu0 %v1871
    %2601 = vmatpush.bf16.msra.mxu0 %v1867
    %2602 = vmatmul.bf16.gmra.mxu0 %v2559
    %v2603 = vpop.f32.mrf.mxu0
    %v2604 = vadd.f32 0.0, %v2603
    %v2605 = vpop.f32.mrf.mxu0
    %2606 = vdwg.mxu0
    %2607 = vmatpush.bf16.msra.mxu0 %v1896
    %2608 = vmatpush.bf16.msra.mxu0 %v1892
    %2609 = vmatpush.bf16.msra.mxu0 %v1888
    %2610 = vmatpush.bf16.msra.mxu0 %v1884
    %2611 = vmatpush.bf16.msra.mxu0 %v1880
    %2612 = vmatpush.bf16.msra.mxu0 %v1876
    %2613 = vmatpush.bf16.msra.mxu0 %v1872
    %2614 = vmatpush.bf16.msra.mxu0 %v1868
    %2615 = vmatmul.bf16.gmra.mxu0 %v2559
    %v2616 = vpop.f32.mrf.mxu0
    %v2617 = vadd.f32 0.0, %v2616
    %v2618 = vpop.f32.mrf.mxu0
    %2619 = vdwg.mxu0
    %v2620 = vadd.f32 %v2564, %v2578
    %v2621 = vadd.f32 %v2565, %v2591
    %v2622 = vadd.f32 %v2566, %v2604
    %v2623 = vadd.f32 %v2567, %v2617
    %v2624 = vxor.u32 %v2620, 2147483648
    %v2625 = vmul.f32 %v2624, 1.442695
    %v2626 = vpow.pop %v2625
    %v2627 = vadd.f32 %v2626, 1.0
    %v2628 = vrcp.pop %v2627
    %v2629 = vmul.f32 %v2627, %v2628
    %v2630 = vsub.f32 1.0, %v2629
    %v2631 = vmul.f32 %v2628, %v2630
    %v2632 = vadd.f32 %v2628, %v2631
    %vm2633 = vweird.f32 %v2627
    %vm2634 = vweird.f32 %v2628
    %vm2635 = vmor %vm2633, %vm2634
    %v2636 = vsel %vm2635, %v2628, %v2632
    %v2637 = vand.u32 2147483647, %v2627
    %vm2638 = vcmp.eq.f32.partialorder %v2637, 8.507059e+37
    %v2639 = vand.u32 %v2627, 2147483648
    %v2640 = vor.u32 1.1754944e-38, %v2639
    %v2641 = vsel %vm2638, %v2640, %v2636
    %v2642 = vmul.f32 1.0, %v2641
    %v2643 = vxor.u32 %v2621, 2147483648
    %v2644 = vmul.f32 %v2643, 1.442695
    %v2645 = vpow.pop %v2644
    %v2646 = vadd.f32 %v2645, 1.0
    %v2647 = vrcp.pop %v2646
    %v2648 = vmul.f32 %v2646, %v2647
    %v2649 = vsub.f32 1.0, %v2648
    %v2650 = vmul.f32 %v2647, %v2649
    %v2651 = vadd.f32 %v2647, %v2650
    %vm2652 = vweird.f32 %v2646
    %vm2653 = vweird.f32 %v2647
    %vm2654 = vmor %vm2652, %vm2653
    %v2655 = vsel %vm2654, %v2647, %v2651
    %v2656 = vand.u32 2147483647, %v2646
    %vm2657 = vcmp.eq.f32.partialorder %v2656, 8.507059e+37
    %v2658 = vand.u32 %v2646, 2147483648
    %v2659 = vor.u32 1.1754944e-38, %v2658
    %v2660 = vsel %vm2657, %v2659, %v2655
    %v2661 = vmul.f32 1.0, %v2660
    %v2662 = vtanh.pop %v2622
    %v2663 = vxor.u32 %v2623, 2147483648
    %v2664 = vmul.f32 %v2663, 1.442695
    %v2665 = vpow.pop %v2664
    %v2666 = vadd.f32 %v2665, 1.0
    %v2667 = vrcp.pop %v2666
    %v2668 = vmul.f32 %v2666, %v2667
    %v2669 = vsub.f32 1.0, %v2668
    %v2670 = vmul.f32 %v2667, %v2669
    %v2671 = vadd.f32 %v2667, %v2670
    %vm2672 = vweird.f32 %v2666
    %vm2673 = vweird.f32 %v2667
    %vm2674 = vmor %vm2672, %vm2673
    %v2675 = vsel %vm2674, %v2667, %v2671
    %v2676 = vand.u32 2147483647, %v2666
    %vm2677 = vcmp.eq.f32.partialorder %v2676, 8.507059e+37
    %v2678 = vand.u32 %v2666, 2147483648
    %v2679 = vor.u32 1.1754944e-38, %v2678
    %v2680 = vsel %vm2677, %v2679, %v2675
    %v2681 = vmul.f32 1.0, %v2680
    %v2682 = vmul.f32 %v2661, %v2556
    %v2683 = vmul.f32 %v2642, %v2662
    %v2684 = vadd.f32 %v2682, %v2683
    %v2685 = vtanh.pop %v2684
    %v2686 = vmul.f32 %v2681, %v2685
    %v2687 = vpack.c.bf16 %v2686, %v2686
    %s2688 = scalar_lea.vmem [#allocation4], 20
    %2689 = vst [vmem:[%s2688] sm:$0xf] %v2687
    %s2690 = smul.addr %s1508, 8
    %s2691 = scalar_lea.vmem [#allocation3], %s2690
    %v2692 = vld [vmem:[%s2691] sm:$0xff]
    %v2693 = vld [vmem:[%s2691 + $0x8] sm:$0xff]
    %v2694 = vld [vmem:[%s2691 + $0x10] sm:$0xff]
    %v2695 = vld [vmem:[%s2691 + $0x18] sm:$0xff]
    %2696 = vmatpush.bf16.msra.mxu0 %v1893
    %2697 = vmatpush.bf16.msra.mxu0 %v1889
    %2698 = vmatpush.bf16.msra.mxu0 %v1885
    %2699 = vmatpush.bf16.msra.mxu0 %v1881
    %2700 = vmatpush.bf16.msra.mxu0 %v1877
    %2701 = vmatpush.bf16.msra.mxu0 %v1873
    %2702 = vmatpush.bf16.msra.mxu0 %v1869
    %2703 = vmatpush.bf16.msra.mxu0 %v1865
    %2704 = vmatmul.bf16.gmra.mxu0 %v2687
    %v2705 = vpop.f32.mrf.mxu0
    %v2706 = vadd.f32 0.0, %v2705
    %v2707 = vpop.f32.mrf.mxu0
    %2708 = vdwg.mxu0
    %2709 = vmatpush.bf16.msra.mxu0 %v1894
    %2710 = vmatpush.bf16.msra.mxu0 %v1890
    %2711 = vmatpush.bf16.msra.mxu0 %v1886
    %2712 = vmatpush.bf16.msra.mxu0 %v1882
    %2713 = vmatpush.bf16.msra.mxu0 %v1878
    %2714 = vmatpush.bf16.msra.mxu0 %v1874
    %2715 = vmatpush.bf16.msra.mxu0 %v1870
    %2716 = vmatpush.bf16.msra.mxu0 %v1866
    %2717 = vmatmul.bf16.gmra.mxu0 %v2687
    %v2718 = vpop.f32.mrf.mxu0
    %v2719 = vadd.f32 0.0, %v2718
    %v2720 = vpop.f32.mrf.mxu0
    %2721 = vdwg.mxu0
    %2722 = vmatpush.bf16.msra.mxu0 %v1895
    %2723 = vmatpush.bf16.msra.mxu0 %v1891
    %2724 = vmatpush.bf16.msra.mxu0 %v1887
    %2725 = vmatpush.bf16.msra.mxu0 %v1883
    %2726 = vmatpush.bf16.msra.mxu0 %v1879
    %2727 = vmatpush.bf16.msra.mxu0 %v1875
    %2728 = vmatpush.bf16.msra.mxu0 %v1871
    %2729 = vmatpush.bf16.msra.mxu0 %v1867
    %2730 = vmatmul.bf16.gmra.mxu0 %v2687
    %v2731 = vpop.f32.mrf.mxu0
    %v2732 = vadd.f32 0.0, %v2731
    %v2733 = vpop.f32.mrf.mxu0
    %2734 = vdwg.mxu0
    %2735 = vmatpush.bf16.msra.mxu0 %v1896
    %2736 = vmatpush.bf16.msra.mxu0 %v1892
    %2737 = vmatpush.bf16.msra.mxu0 %v1888
    %2738 = vmatpush.bf16.msra.mxu0 %v1884
    %2739 = vmatpush.bf16.msra.mxu0 %v1880
    %2740 = vmatpush.bf16.msra.mxu0 %v1876
    %2741 = vmatpush.bf16.msra.mxu0 %v1872
    %2742 = vmatpush.bf16.msra.mxu0 %v1868
    %2743 = vmatmul.bf16.gmra.mxu0 %v2687
    %v2744 = vpop.f32.mrf.mxu0
    %v2745 = vadd.f32 0.0, %v2744
    %v2746 = vpop.f32.mrf.mxu0
    %2747 = vdwg.mxu0
    %v2748 = vadd.f32 %v2692, %v2706
    %v2749 = vadd.f32 %v2693, %v2719
    %v2750 = vadd.f32 %v2694, %v2732
    %v2751 = vadd.f32 %v2695, %v2745
    %v2752 = vxor.u32 %v2748, 2147483648
    %v2753 = vmul.f32 %v2752, 1.442695
    %v2754 = vpow.pop %v2753
    %v2755 = vadd.f32 %v2754, 1.0
    %v2756 = vrcp.pop %v2755
    %v2757 = vmul.f32 %v2755, %v2756
    %v2758 = vsub.f32 1.0, %v2757
    %v2759 = vmul.f32 %v2756, %v2758
    %v2760 = vadd.f32 %v2756, %v2759
    %vm2761 = vweird.f32 %v2755
    %vm2762 = vweird.f32 %v2756
    %vm2763 = vmor %vm2761, %vm2762
    %v2764 = vsel %vm2763, %v2756, %v2760
    %v2765 = vand.u32 2147483647, %v2755
    %vm2766 = vcmp.eq.f32.partialorder %v2765, 8.507059e+37
    %v2767 = vand.u32 %v2755, 2147483648
    %v2768 = vor.u32 1.1754944e-38, %v2767
    %v2769 = vsel %vm2766, %v2768, %v2764
    %v2770 = vmul.f32 1.0, %v2769
    %v2771 = vxor.u32 %v2749, 2147483648
    %v2772 = vmul.f32 %v2771, 1.442695
    %v2773 = vpow.pop %v2772
    %v2774 = vadd.f32 %v2773, 1.0
    %v2775 = vrcp.pop %v2774
    %v2776 = vmul.f32 %v2774, %v2775
    %v2777 = vsub.f32 1.0, %v2776
    %v2778 = vmul.f32 %v2775, %v2777
    %v2779 = vadd.f32 %v2775, %v2778
    %vm2780 = vweird.f32 %v2774
    %vm2781 = vweird.f32 %v2775
    %vm2782 = vmor %vm2780, %vm2781
    %v2783 = vsel %vm2782, %v2775, %v2779
    %v2784 = vand.u32 2147483647, %v2774
    %vm2785 = vcmp.eq.f32.partialorder %v2784, 8.507059e+37
    %v2786 = vand.u32 %v2774, 2147483648
    %v2787 = vor.u32 1.1754944e-38, %v2786
    %v2788 = vsel %vm2785, %v2787, %v2783
    %v2789 = vmul.f32 1.0, %v2788
    %v2790 = vtanh.pop %v2750
    %v2791 = vxor.u32 %v2751, 2147483648
    %v2792 = vmul.f32 %v2791, 1.442695
    %v2793 = vpow.pop %v2792
    %v2794 = vadd.f32 %v2793, 1.0
    %v2795 = vrcp.pop %v2794
    %v2796 = vmul.f32 %v2794, %v2795
    %v2797 = vsub.f32 1.0, %v2796
    %v2798 = vmul.f32 %v2795, %v2797
    %v2799 = vadd.f32 %v2795, %v2798
    %vm2800 = vweird.f32 %v2794
    %vm2801 = vweird.f32 %v2795
    %vm2802 = vmor %vm2800, %vm2801
    %v2803 = vsel %vm2802, %v2795, %v2799
    %v2804 = vand.u32 2147483647, %v2794
    %vm2805 = vcmp.eq.f32.partialorder %v2804, 8.507059e+37
    %v2806 = vand.u32 %v2794, 2147483648
    %v2807 = vor.u32 1.1754944e-38, %v2806
    %v2808 = vsel %vm2805, %v2807, %v2803
    %v2809 = vmul.f32 1.0, %v2808
    %v2810 = vmul.f32 %v2789, %v2684
    %v2811 = vmul.f32 %v2770, %v2790
    %v2812 = vadd.f32 %v2810, %v2811
    %v2813 = vtanh.pop %v2812
    %v2814 = vmul.f32 %v2809, %v2813
    %v2815 = vpack.c.bf16 %v2814, %v2814
    %s2816 = scalar_lea.vmem [#allocation4], 24
    %2817 = vst [vmem:[%s2816] sm:$0xf] %v2815
    %s2818 = smul.addr %s1635, 8
    %s2819 = scalar_lea.vmem [#allocation3], %s2818
    %v2820 = vld [vmem:[%s2819] sm:$0xff]
    %v2821 = vld [vmem:[%s2819 + $0x8] sm:$0xff]
    %v2822 = vld [vmem:[%s2819 + $0x10] sm:$0xff]
    %v2823 = vld [vmem:[%s2819 + $0x18] sm:$0xff]
    %2824 = vmatpush.bf16.msra.mxu0 %v1893
    %2825 = vmatpush.bf16.msra.mxu0 %v1889
    %2826 = vmatpush.bf16.msra.mxu0 %v1885
    %2827 = vmatpush.bf16.msra.mxu0 %v1881
    %2828 = vmatpush.bf16.msra.mxu0 %v1877
    %2829 = vmatpush.bf16.msra.mxu0 %v1873
    %2830 = vmatpush.bf16.msra.mxu0 %v1869
    %2831 = vmatpush.bf16.msra.mxu0 %v1865
    %2832 = vmatmul.bf16.gmra.mxu0 %v2815
    %v2833 = vpop.f32.mrf.mxu0
    %v2834 = vadd.f32 0.0, %v2833
    %v2835 = vpop.f32.mrf.mxu0
    %2836 = vdwg.mxu0
    %2837 = vmatpush.bf16.msra.mxu0 %v1894
    %2838 = vmatpush.bf16.msra.mxu0 %v1890
    %2839 = vmatpush.bf16.msra.mxu0 %v1886
    %2840 = vmatpush.bf16.msra.mxu0 %v1882
    %2841 = vmatpush.bf16.msra.mxu0 %v1878
    %2842 = vmatpush.bf16.msra.mxu0 %v1874
    %2843 = vmatpush.bf16.msra.mxu0 %v1870
    %2844 = vmatpush.bf16.msra.mxu0 %v1866
    %2845 = vmatmul.bf16.gmra.mxu0 %v2815
    %v2846 = vpop.f32.mrf.mxu0
    %v2847 = vadd.f32 0.0, %v2846
    %v2848 = vpop.f32.mrf.mxu0
    %2849 = vdwg.mxu0
    %2850 = vmatpush.bf16.msra.mxu0 %v1895
    %2851 = vmatpush.bf16.msra.mxu0 %v1891
    %2852 = vmatpush.bf16.msra.mxu0 %v1887
    %2853 = vmatpush.bf16.msra.mxu0 %v1883
    %2854 = vmatpush.bf16.msra.mxu0 %v1879
    %2855 = vmatpush.bf16.msra.mxu0 %v1875
    %2856 = vmatpush.bf16.msra.mxu0 %v1871
    %2857 = vmatpush.bf16.msra.mxu0 %v1867
    %2858 = vmatmul.bf16.gmra.mxu0 %v2815
    %v2859 = vpop.f32.mrf.mxu0
    %v2860 = vadd.f32 0.0, %v2859
    %v2861 = vpop.f32.mrf.mxu0
    %2862 = vdwg.mxu0
    %2863 = vmatpush.bf16.msra.mxu0 %v1896
    %2864 = vmatpush.bf16.msra.mxu0 %v1892
    %2865 = vmatpush.bf16.msra.mxu0 %v1888
    %2866 = vmatpush.bf16.msra.mxu0 %v1884
    %2867 = vmatpush.bf16.msra.mxu0 %v1880
    %2868 = vmatpush.bf16.msra.mxu0 %v1876
    %2869 = vmatpush.bf16.msra.mxu0 %v1872
    %2870 = vmatpush.bf16.msra.mxu0 %v1868
    %2871 = vmatmul.bf16.gmra.mxu0 %v2815
    %v2872 = vpop.f32.mrf.mxu0
    %v2873 = vadd.f32 0.0, %v2872
    %v2874 = vpop.f32.mrf.mxu0
    %2875 = vdwg.mxu0
    %v2876 = vadd.f32 %v2820, %v2834
    %v2877 = vadd.f32 %v2821, %v2847
    %v2878 = vadd.f32 %v2822, %v2860
    %v2879 = vadd.f32 %v2823, %v2873
    %v2880 = vxor.u32 %v2876, 2147483648
    %v2881 = vmul.f32 %v2880, 1.442695
    %v2882 = vpow.pop %v2881
    %v2883 = vadd.f32 %v2882, 1.0
    %v2884 = vrcp.pop %v2883
    %v2885 = vmul.f32 %v2883, %v2884
    %v2886 = vsub.f32 1.0, %v2885
    %v2887 = vmul.f32 %v2884, %v2886
    %v2888 = vadd.f32 %v2884, %v2887
    %vm2889 = vweird.f32 %v2883
    %vm2890 = vweird.f32 %v2884
    %vm2891 = vmor %vm2889, %vm2890
    %v2892 = vsel %vm2891, %v2884, %v2888
    %v2893 = vand.u32 2147483647, %v2883
    %vm2894 = vcmp.eq.f32.partialorder %v2893, 8.507059e+37
    %v2895 = vand.u32 %v2883, 2147483648
    %v2896 = vor.u32 1.1754944e-38, %v2895
    %v2897 = vsel %vm2894, %v2896, %v2892
    %v2898 = vmul.f32 1.0, %v2897
    %v2899 = vxor.u32 %v2877, 2147483648
    %v2900 = vmul.f32 %v2899, 1.442695
    %v2901 = vpow.pop %v2900
    %v2902 = vadd.f32 %v2901, 1.0
    %v2903 = vrcp.pop %v2902
    %v2904 = vmul.f32 %v2902, %v2903
    %v2905 = vsub.f32 1.0, %v2904
    %v2906 = vmul.f32 %v2903, %v2905
    %v2907 = vadd.f32 %v2903, %v2906
    %vm2908 = vweird.f32 %v2902
    %vm2909 = vweird.f32 %v2903
    %vm2910 = vmor %vm2908, %vm2909
    %v2911 = vsel %vm2910, %v2903, %v2907
    %v2912 = vand.u32 2147483647, %v2902
    %vm2913 = vcmp.eq.f32.partialorder %v2912, 8.507059e+37
    %v2914 = vand.u32 %v2902, 2147483648
    %v2915 = vor.u32 1.1754944e-38, %v2914
    %v2916 = vsel %vm2913, %v2915, %v2911
    %v2917 = vmul.f32 1.0, %v2916
    %v2918 = vtanh.pop %v2878
    %v2919 = vxor.u32 %v2879, 2147483648
    %v2920 = vmul.f32 %v2919, 1.442695
    %v2921 = vpow.pop %v2920
    %v2922 = vadd.f32 %v2921, 1.0
    %v2923 = vrcp.pop %v2922
    %v2924 = vmul.f32 %v2922, %v2923
    %v2925 = vsub.f32 1.0, %v2924
    %v2926 = vmul.f32 %v2923, %v2925
    %v2927 = vadd.f32 %v2923, %v2926
    %vm2928 = vweird.f32 %v2922
    %vm2929 = vweird.f32 %v2923
    %vm2930 = vmor %vm2928, %vm2929
    %v2931 = vsel %vm2930, %v2923, %v2927
    %v2932 = vand.u32 2147483647, %v2922
    %vm2933 = vcmp.eq.f32.partialorder %v2932, 8.507059e+37
    %v2934 = vand.u32 %v2922, 2147483648
    %v2935 = vor.u32 1.1754944e-38, %v2934
    %v2936 = vsel %vm2933, %v2935, %v2931
    %v2937 = vmul.f32 1.0, %v2936
    %v2938 = vmul.f32 %v2917, %v2812
    %v2939 = vmul.f32 %v2898, %v2918
    %v2940 = vadd.f32 %v2938, %v2939
    %v2941 = vtanh.pop %v2940
    %v2942 = vmul.f32 %v2937, %v2941
    %v2943 = vpack.c.bf16 %v2942, %v2942
    %s2944 = scalar_lea.vmem [#allocation4], 28
    %2945 = vst [vmem:[%s2944] sm:$0xf] %v2943
    %v2946 = vld [vmem:[#allocation4] sm:$0xf]
    %v2947 = vld [vmem:[#allocation4 + $0x4] sm:$0xf]
    %v2948 = vld [vmem:[#allocation4 + $0x8] sm:$0xf]
    %v2949 = vld [vmem:[#allocation4 + $0xc] sm:$0xf]
    %v2950 = vld [vmem:[#allocation4 + $0x10] sm:$0xf]
    %v2951 = vld [vmem:[#allocation4 + $0x14] sm:$0xf]
    %v2952 = vld [vmem:[#allocation4 + $0x18] sm:$0xf]
    %v2953 = vld [vmem:[#allocation4 + $0x1c] sm:$0xf]
    %v2954 = vld [vmem:[%s11] sm:$0xf]
    %v2955 = vld [vmem:[%s11 + $0x4] sm:$0xf]
    %v2956 = vld [vmem:[%s11 + $0x8] sm:$0xf]
    %v2957 = vld [vmem:[%s11 + $0xc] sm:$0xf]
    %v2958 = vld [vmem:[%s11 + $0x10] sm:$0xf]
    %v2959 = vld [vmem:[%s11 + $0x14] sm:$0xf]
    %v2960 = vld [vmem:[%s11 + $0x18] sm:$0xf]
    %v2961 = vld [vmem:[%s11 + $0x1c] sm:$0xf]
    %v2962 = vld [vmem:[%s11 + $0x20] sm:$0xf]
    %v2963 = vld [vmem:[%s11 + $0x24] sm:$0xf]
    %v2964 = vld [vmem:[%s11 + $0x28] sm:$0xf]
    %v2965 = vld [vmem:[%s11 + $0x2c] sm:$0xf]
    %v2966 = vld [vmem:[%s11 + $0x30] sm:$0xf]
    %v2967 = vld [vmem:[%s11 + $0x34] sm:$0xf]
    %v2968 = vld [vmem:[%s11 + $0x38] sm:$0xf]
    %v2969 = vld [vmem:[%s11 + $0x3c] sm:$0xf]
    %v2970 = vld [vmem:[%s12] sm:$0x1]
    %v2972 = vperm.slane %v2970, 0
    %v2982 = vunpack.c.l.b16 %v2946
    %v2983 = vunpack.c.l.b16 %v2947
    %v2984 = vunpack.c.l.b16 %v2948
    %v2985 = vunpack.c.l.b16 %v2949
    %v2986 = vunpack.c.l.b16 %v2950
    %v2987 = vunpack.c.l.b16 %v2951
    %v2988 = vunpack.c.l.b16 %v2952
    %v2989 = vunpack.c.l.b16 %v2953
    %v2990 = vpack.c.b16 %v2983, %v2982
    %v2991 = vpack.c.b16 %v2985, %v2984
    %v2992 = vpack.c.b16 %v2987, %v2986
    %v2993 = vpack.c.b16 %v2989, %v2988
    %v3014 = vunpack.c.l.b16 %v2954
    %v3015 = vunpack.c.l.b16 %v2955
    %v3016 = vunpack.c.l.b16 %v2956
    %v3017 = vunpack.c.l.b16 %v2957
    %v3018 = vunpack.c.l.b16 %v2958
    %v3019 = vunpack.c.l.b16 %v2959
    %v3020 = vunpack.c.l.b16 %v2960
    %v3021 = vunpack.c.l.b16 %v2961
    %v3022 = vunpack.c.l.b16 %v2962
    %v3023 = vunpack.c.l.b16 %v2963
    %v3024 = vunpack.c.l.b16 %v2964
    %v3025 = vunpack.c.l.b16 %v2965
    %v3026 = vunpack.c.l.b16 %v2966
    %v3027 = vunpack.c.l.b16 %v2967
    %v3028 = vunpack.c.l.b16 %v2968
    %v3029 = vunpack.c.l.b16 %v2969
    %v3030 = vpack.c.b16 %v3015, %v3014
    %v3031 = vpack.c.b16 %v3017, %v3016
    %v3032 = vpack.c.b16 %v3019, %v3018
    %v3033 = vpack.c.b16 %v3021, %v3020
    %v3034 = vpack.c.b16 %v3023, %v3022
    %v3035 = vpack.c.b16 %v3025, %v3024
    %v3036 = vpack.c.b16 %v3027, %v3026
    %v3037 = vpack.c.b16 %v3029, %v3028
    %3046 = vmatpush.bf16.msra.mxu0 %v3037
    %3047 = vmatpush.bf16.msra.mxu0 %v3036
    %3048 = vmatpush.bf16.msra.mxu0 %v3035
    %3049 = vmatpush.bf16.msra.mxu0 %v3034
    %3050 = vmatpush.bf16.msra.mxu0 %v3033
    %3051 = vmatpush.bf16.msra.mxu0 %v3032
    %3052 = vmatpush.bf16.msra.mxu0 %v3031
    %3053 = vmatpush.bf16.msra.mxu0 %v3030
    %3054 = vmatmul.bf16.gmra.mxu0 %v2990
    %v3055 = vpop.f32.mrf.mxu0
    %v3056 = vadd.f32 %v2972, %v3055
    %v3057 = vpop.f32.mrf.mxu0
    %v3058 = vadd.f32 %v2972, %v3057
    %3059 = vmatmul.bf16.gmra.mxu0 %v2991
    %v3060 = vpop.f32.mrf.mxu0
    %v3061 = vadd.f32 %v2972, %v3060
    %v3062 = vpop.f32.mrf.mxu0
    %v3063 = vadd.f32 %v2972, %v3062
    %3064 = vmatmul.bf16.gmra.mxu0 %v2992
    %v3065 = vpop.f32.mrf.mxu0
    %v3066 = vadd.f32 %v2972, %v3065
    %v3067 = vpop.f32.mrf.mxu0
    %v3068 = vadd.f32 %v2972, %v3067
    %3069 = vmatmul.bf16.gmra.mxu0 %v2993
    %v3070 = vpop.f32.mrf.mxu0
    %v3071 = vadd.f32 %v2972, %v3070
    %v3072 = vpop.f32.mrf.mxu0
    %v3073 = vadd.f32 %v2972, %v3072
    %3074 = vdwg.mxu0
    %3075 = vmax.xlane.f32.xlu0 %v3056
    %v3076 = vpop.xlane.xlu0 %3075
    %3077 = vmax.xlane.f32.xlu0 %v3058
    %v3078 = vpop.xlane.xlu0 %3077
    %3079 = vmax.xlane.f32.xlu0 %v3061
    %v3080 = vpop.xlane.xlu0 %3079
    %3081 = vmax.xlane.f32.xlu0 %v3063
    %v3082 = vpop.xlane.xlu0 %3081
    %3083 = vmax.xlane.f32.xlu0 %v3066
    %v3084 = vpop.xlane.xlu0 %3083
    %3085 = vmax.xlane.f32.xlu0 %v3068
    %v3086 = vpop.xlane.xlu0 %3085
    %3087 = vmax.xlane.f32.xlu0 %v3071
    %v3088 = vpop.xlane.xlu0 %3087
    %3089 = vmax.xlane.f32.xlu0 %v3073
    %v3090 = vpop.xlane.xlu0 %3089
    %v3091 = vsub.f32 %v3056, %v3076
    %v3092 = vsub.f32 %v3058, %v3078
    %v3093 = vsub.f32 %v3061, %v3080
    %v3094 = vsub.f32 %v3063, %v3082
    %v3095 = vsub.f32 %v3066, %v3084
    %v3096 = vsub.f32 %v3068, %v3086
    %v3097 = vsub.f32 %v3071, %v3088
    %v3098 = vsub.f32 %v3073, %v3090
    %v3099 = vmul.f32 %v3091, 1.442695
    %v3100 = vpow.pop %v3099
    %v3101 = vmul.f32 %v3092, 1.442695
    %v3102 = vpow.pop %v3101
    %v3103 = vmul.f32 %v3093, 1.442695
    %v3104 = vpow.pop %v3103
    %v3105 = vmul.f32 %v3094, 1.442695
    %v3106 = vpow.pop %v3105
    %v3107 = vmul.f32 %v3095, 1.442695
    %v3108 = vpow.pop %v3107
    %v3109 = vmul.f32 %v3096, 1.442695
    %v3110 = vpow.pop %v3109
    %v3111 = vmul.f32 %v3097, 1.442695
    %v3112 = vpow.pop %v3111
    %v3113 = vmul.f32 %v3098, 1.442695
    %v3114 = vpow.pop %v3113
    %3115 = vadd.xlane.f32.xlu0 %v3100
    %v3116 = vpop.xlane.xlu0 %3115
    %3117 = vadd.xlane.f32.xlu0 %v3102
    %v3118 = vpop.xlane.xlu0 %3117
    %3119 = vadd.xlane.f32.xlu0 %v3104
    %v3120 = vpop.xlane.xlu0 %3119
    %3121 = vadd.xlane.f32.xlu0 %v3106
    %v3122 = vpop.xlane.xlu0 %3121
    %3123 = vadd.xlane.f32.xlu0 %v3108
    %v3124 = vpop.xlane.xlu0 %3123
    %3125 = vadd.xlane.f32.xlu0 %v3110
    %v3126 = vpop.xlane.xlu0 %3125
    %3127 = vadd.xlane.f32.xlu0 %v3112
    %v3128 = vpop.xlane.xlu0 %3127
    %3129 = vadd.xlane.f32.xlu0 %v3114
    %v3130 = vpop.xlane.xlu0 %3129
    %v3131 = vlog2.pop %v3116
    %v3132 = vmul.f32 %v3131, 0.6931472
    %v3133 = vlog2.pop %v3118
    %v3134 = vmul.f32 %v3133, 0.6931472
    %v3135 = vlog2.pop %v3120
    %v3136 = vmul.f32 %v3135, 0.6931472
    %v3137 = vlog2.pop %v3122
    %v3138 = vmul.f32 %v3137, 0.6931472
    %v3139 = vlog2.pop %v3124
    %v3140 = vmul.f32 %v3139, 0.6931472
    %v3141 = vlog2.pop %v3126
    %v3142 = vmul.f32 %v3141, 0.6931472
    %v3143 = vlog2.pop %v3128
    %v3144 = vmul.f32 %v3143, 0.6931472
    %v3145 = vlog2.pop %v3130
    %v3146 = vmul.f32 %v3145, 0.6931472
    %v3147 = vadd.f32 %v3076, %v3132
    %v3148 = vadd.f32 %v3078, %v3134
    %v3149 = vadd.f32 %v3080, %v3136
    %v3150 = vadd.f32 %v3082, %v3138
    %v3151 = vadd.f32 %v3084, %v3140
    %v3152 = vadd.f32 %v3086, %v3142
    %v3153 = vadd.f32 %v3088, %v3144
    %v3154 = vadd.f32 %v3090, %v3146
    %v3155 = vunpack.c.l.bf16 %v2946
    %v3156 = vunpack.c.l.bf16 %v2947
    %v3157 = vunpack.c.l.bf16 %v2948
    %v3158 = vunpack.c.l.bf16 %v2949
    %v3159 = vunpack.c.l.bf16 %v2950
    %v3160 = vunpack.c.l.bf16 %v2951
    %v3161 = vunpack.c.l.bf16 %v2952
    %v3162 = vunpack.c.l.bf16 %v2953
    %v3163 = vld [vmem:[%s2] sm:$0xff]
    %v3164 = vld [vmem:[%s2 + $0x8] sm:$0xff]
    %v3165 = vld [vmem:[%s2 + $0x10] sm:$0xff]
    %v3166 = vld [vmem:[%s2 + $0x18] sm:$0xff]
    %v3167 = vld [vmem:[%s2 + $0x20] sm:$0xff]
    %v3168 = vld [vmem:[%s2 + $0x28] sm:$0xff]
    %v3169 = vld [vmem:[%s2 + $0x30] sm:$0xff]
    %v3170 = vld [vmem:[%s2 + $0x38] sm:$0xff]
    %v3171 = vmul.f32 %v3155, %v3163
    %v3172 = vmul.f32 %v3156, %v3164
    %v3173 = vmul.f32 %v3157, %v3165
    %v3174 = vmul.f32 %v3158, %v3166
    %v3175 = vmul.f32 %v3159, %v3167
    %v3176 = vmul.f32 %v3160, %v3168
    %v3177 = vmul.f32 %v3161, %v3169
    %v3178 = vmul.f32 %v3162, %v3170
    %3179 = vadd.xlane.f32.xlu0 %v3171
    %v3180 = vpop.xlane.xlu0 %3179
    %3181 = vadd.xlane.f32.xlu0 %v3172
    %v3182 = vpop.xlane.xlu0 %3181
    %3183 = vadd.xlane.f32.xlu0 %v3173
    %v3184 = vpop.xlane.xlu0 %3183
    %3185 = vadd.xlane.f32.xlu0 %v3174
    %v3186 = vpop.xlane.xlu0 %3185
    %3187 = vadd.xlane.f32.xlu0 %v3175
    %v3188 = vpop.xlane.xlu0 %3187
    %3189 = vadd.xlane.f32.xlu0 %v3176
    %v3190 = vpop.xlane.xlu0 %3189
    %3191 = vadd.xlane.f32.xlu0 %v3177
    %v3192 = vpop.xlane.xlu0 %3191
    %3193 = vadd.xlane.f32.xlu0 %v3178
    %v3194 = vpop.xlane.xlu0 %3193
    %v3195 = vld [vmem:[%s3] sm:$0xff]
    %v3196 = vld [vmem:[%s3 + $0x8] sm:$0xff]
    %v3197 = vld [vmem:[%s3 + $0x10] sm:$0xff]
    %v3198 = vld [vmem:[%s3 + $0x18] sm:$0xff]
    %v3199 = vld [vmem:[%s3 + $0x20] sm:$0xff]
    %v3200 = vld [vmem:[%s3 + $0x28] sm:$0xff]
    %v3201 = vld [vmem:[%s3 + $0x30] sm:$0xff]
    %v3202 = vld [vmem:[%s3 + $0x38] sm:$0xff]
    %v3203 = vadd.f32 %v3180, %v3195
    %v3204 = vadd.f32 %v3182, %v3196
    %v3205 = vadd.f32 %v3184, %v3197
    %v3206 = vadd.f32 %v3186, %v3198
    %v3207 = vadd.f32 %v3188, %v3199
    %v3208 = vadd.f32 %v3190, %v3200
    %v3209 = vadd.f32 %v3192, %v3201
    %v3210 = vadd.f32 %v3194, %v3202
    %v3211 = vld [vmem:[%s4] sm:$0xff]
    %v3212 = vld [vmem:[%s4 + $0x8] sm:$0xff]
    %v3213 = vld [vmem:[%s4 + $0x10] sm:$0xff]
    %v3214 = vld [vmem:[%s4 + $0x18] sm:$0xff]
    %v3215 = vld [vmem:[%s4 + $0x20] sm:$0xff]
    %v3216 = vld [vmem:[%s4 + $0x28] sm:$0xff]
    %v3217 = vld [vmem:[%s4 + $0x30] sm:$0xff]
    %v3218 = vld [vmem:[%s4 + $0x38] sm:$0xff]
    %v3219 = vsub.f32 %v3147, %v3203
    %v3220 = vsub.f32 %v3148, %v3204
    %v3221 = vsub.f32 %v3149, %v3205
    %v3222 = vsub.f32 %v3150, %v3206
    %v3223 = vsub.f32 %v3151, %v3207
    %v3224 = vsub.f32 %v3152, %v3208
    %v3225 = vsub.f32 %v3153, %v3209
    %v3226 = vsub.f32 %v3154, %v3210
    %v3227 = vmul.f32 %v3211, %v3219
    %v3228 = vmul.f32 %v3212, %v3220
    %v3229 = vmul.f32 %v3213, %v3221
    %v3230 = vmul.f32 %v3214, %v3222
    %v3231 = vmul.f32 %v3215, %v3223
    %v3232 = vmul.f32 %v3216, %v3224
    %v3233 = vmul.f32 %v3217, %v3225
    %v3234 = vmul.f32 %v3218, %v3226
    %vm3235 = vcmask 7168
    %v3236 = vsel %vm3235, %v3227, 0.0
    %v3237 = vsel %vm3235, %v3228, 0.0
    %v3238 = vadd.f32 %v3236, %v3237
    %v3239 = vsel %vm3235, %v3229, 0.0
    %v3240 = vadd.f32 %v3238, %v3239
    %v3241 = vsel %vm3235, %v3230, 0.0
    %v3242 = vadd.f32 %v3240, %v3241
    %v3243 = vsel %vm3235, %v3231, 0.0
    %v3244 = vadd.f32 %v3242, %v3243
    %v3245 = vsel %vm3235, %v3232, 0.0
    %v3246 = vadd.f32 %v3244, %v3245
    %v3247 = vsel %vm3235, %v3233, 0.0
    %v3248 = vadd.f32 %v3246, %v3247
    %v3249 = vsel %vm3235, %v3234, 0.0
    %v3250 = vadd.f32 %v3248, %v3249
    %v3251 = vrot.slane %v3250, 4
    %v3252 = vadd.f32 %v3250, %v3251
    %v3253 = vrot.slane %v3252, 2
    %v3254 = vadd.f32 %v3252, %v3253
    %v3255 = vrot.slane %v3254, 1
    %v3256 = vadd.f32 %v3254, %v3255
    %vm3257 = vcmask 0
    %3258 = vst.msk [vmem:[#allocation10] sm:$0x1] %vm3257, %v3256
    // Predicated region
    $region62: #{tpu_custom_call.1} parent=1 // pred_check
      _
    $region63: #{tpu_custom_call.1} parent=1 // pred_check_branch
      %3260 = sbr.rel (0) target = $region65
    $region64: #{tpu_custom_call.1} parent=1 // pred_region
      %3262 = vsyncadd [#allocation7], 0
      %s3264 = sshll.u32 [#allocation10], 4
      %s3265 = int_to_ptr.vmem [resolvable:$true] %s3264
      %s3266 = sshll.u32 %s13, 4
      %s3267 = int_to_ptr.hbm [resolvable:$true] %s3266
      %3269 = dma.vmem_to_hbm [thread:$0]  %s3265, 16, %s3267, [#allocation7]
    $region65: #{tpu_custom_call.1} parent=1 // pred_fallthru
      _
    // Predicated region
    $region66: #{tpu_custom_call.1} parent=1 // pred_check
      _
    $region67: #{tpu_custom_call.1} parent=1 // pred_check_branch
      %3271 = sbr.rel (0) target = $region69
    $region68: #{tpu_custom_call.1} parent=1 // pred_region
      %3273 = dma.done [#allocation7], 16
    $region69: #{tpu_custom_call.1} parent=1 // pred_fallthru
      _
    %3274 = vsyncpa [#allocation6], 1
    %3275 = vsyncpa [#allocation9], 1
    %3276 = vsyncpa [#allocation7], 1

</llo_original>
